<compile_context>
chip_gen: v5e
topology: v5e:2x2
jax: 0.10.0
libtpu: 0.0.40
codegen_flags: <defaults>
</compile_context>

<pallas_src>
import jax
import jax.numpy as jnp
from jax.experimental import pallas as pl
from jax.experimental.pallas import tpu as pltpu

# ----- wargs (small synthetic hyper-parameters) -----
SRC_WEMB = 16      # wargs.src_wemb_size
TRG_WEMB = 16      # wargs.trg_wemb_size
ENC_HID = 32       # wargs.enc_hid_size
DEC_HID = 32       # wargs.dec_hid_size
ALIGN = 32         # wargs.align_size
OUT_SIZE = 16      # wargs.out_size (max_out=True -> ls/ly/lc project to 2*OUT_SIZE)
SRC_VOCAB = 50
TRG_VOCAB = 60
PAD = 0

F32 = jnp.float32
BF16 = jnp.bfloat16


def _mxu(a, w):
    """bf16 operands into the MXU, f32 accumulation."""
    return jnp.dot(a.astype(w.dtype), w, preferred_element_type=F32)


def _gru_step(p, h, m, Wh_zr, Whh):
    """One GRU step; x-side projections + biases are precomputed in `p`.

    p: (B, 3H) = [z | r | h] input projections, h: (B, H), m: (B, 1).
    """
    # TODO(synk): the groundhog GRU class is not in the source snippet; standard
    # GRU gate semantics (z/r gates, masked state carry) are implemented.
    H = h.shape[-1]
    hzr = _mxu(h, Wh_zr)                                      # (B, 2H)
    z = jax.nn.sigmoid(p[:, :H] + hzr[:, :H])
    r = jax.nn.sigmoid(p[:, H:2 * H] + hzr[:, H:])
    h_above = jnp.tanh(p[:, 2 * H:] + _mxu(r * h, Whh))
    h_t = (1.0 - z) * h + z * h_above
    return m * h_t + (1.0 - m) * h


# -------------------- fused NMT forward kernel --------------------
def nmt_kernel(src_ids_ref, trg_ids_ref, xm3_ref, ym3_ref, ym_flat_ref,
               Wxv_ref, bx_ref, Whf_ref, Whb_ref,
               Ws0_ref, Wha_ref, Wyv_ref, Ws_ref, Wc_ref, b_ref,
               out_ref,
               xs_h_s, s_all_s, ctail_s):
    L, B, _ = xm3_ref.shape
    Ly = ym3_ref.shape[0]
    H, D, A, O = ENC_HID, DEC_HID, ALIGN, OUT_SIZE
    SV = Wxv_ref.shape[0]
    TV = Wyv_ref.shape[0]

    xm3 = xm3_ref[...]                                        # (L, B, 1)  f32
    ym3 = ym3_ref[...]                                        # (Ly, B, 1) f32

    # ---------------- encoder: bi-directional GRU ----------------
    # Embedding lookup is fused into the input projection: Wxv = src_emb @
    # [Wx_fwd | Wx_bwd] (built offline), so one one-hot (L*B, V) @ (V, 6H)
    # matmul does lookup + both-direction gate projections for every timestep.
    src_oh = jnp.where(
        src_ids_ref[...] == jax.lax.broadcasted_iota(jnp.int32, (L * B, SV), 1),
        1.0, 0.0).astype(BF16)
    xp = (jnp.dot(src_oh, Wxv_ref[...], preferred_element_type=F32)
          + bx_ref[...]).reshape(L, B, 6 * H)

    Whf = Whf_ref[...]                                        # (H, 3H) = [z|r|h]
    Whb = Whb_ref[...]
    Whf_zr, Whf_h = Whf[:, :2 * H], Whf[:, 2 * H:]
    Whb_zr, Whb_h = Whb[:, :2 * H], Whb[:, 2 * H:]

    hf = jnp.zeros((B, H), F32)
    hb = jnp.zeros((B, H), F32)
    # Fully-unrolled interleaved fwd/bwd recurrence; per-step hidden states are
    # written straight into the xs_h VMEM scratch (no stack/concat epilogue).
    # TODO(synk): switch to lax.fori_loop(..., unroll=True) for L beyond ~16.
    for i in range(L):
        kb = L - 1 - i
        hf = _gru_step(xp[i, :, :3 * H], hf, xm3[i], Whf_zr, Whf_h)
        hb = _gru_step(xp[kb, :, 3 * H:], hb, xm3[kb], Whb_zr, Whb_h)
        xs_h_s[i, :, :H] = hf
        xs_h_s[kb, :, H:] = hb

    xs_h = xs_h_s[...]                                        # (L, B, 2H)
    h0_left = hb                                              # backward final state

    # ---------------- decoder: attention + conditional GRU ----------------
    # ---- unpack fused parameters (static slices, done once) ----
    b = b_ref[...]                                            # (1, D + 2A + 3D + 2O)
    bs0 = b[:, :D]
    bha = b[:, D:D + A]                # bha + bsa (sa bias folded into uh)
    wa1 = b[:, D + A:D + 2 * A]        # a1 weight row (a1 bias cancels in softmax)
    by = b[:, D + 2 * A:]              # [bz | br | bh | b_maxout_even|odd]

    Ws = Ws_ref[...]                   # (D, A + 3D + 2O) = [Wsa|Wsz|Wsr|Wsh|Wls]
    Wsa_zr = Ws[:, :A + 2 * D]
    Wsh = Ws[:, A + 2 * D:A + 3 * D]
    Wls = Ws[:, A + 3 * D:]
    Wc = Wc_ref[...]                   # (2H, 3D + 2O) = [Wcz|Wcr|Wch|Wlc]

    # ---- hoisted, loop-invariant projections ----
    s = jnp.tanh(_mxu(h0_left, Ws0_ref[...]) + bs0)           # s0
    uh = (_mxu(xs_h.reshape(L * B, 2 * H), Wha_ref[...]) + bha).reshape(L, B, A)

    # Target embedding folded into Wyv = trg_emb @ [Wyz|Wyr|Wyh|Wly]; the one
    # one-hot matmul yields every step's GRU y-gates + step_out ly tail.
    trg_oh = jnp.where(
        trg_ids_ref[...] == jax.lax.broadcasted_iota(jnp.int32, (Ly * B, TV), 1),
        1.0, 0.0).astype(BF16)
    yproj_flat = jnp.dot(trg_oh, Wyv_ref[...], preferred_element_type=F32) + by
    yproj = yproj_flat.reshape(Ly, B, 3 * D + 2 * O)

    # Loop-invariant broadcast of the a1 weight row, hoisted (JAX does not CSE
    # broadcast_in_dim, so it would otherwise be re-emitted Ly times).
    wa1_b = jnp.broadcast_to(wa1[None, :, :], (L, B, A))

    # Fully-unrolled target recurrence: only state/context-dependent work stays
    # in the loop; the step_out projection is deferred to one batched matmul.
    # TODO(synk): on v6e/v7x the tanh/exp/alpha elementwise math could run in
    # bf16; kept f32 here for v5e portability.
    for k in range(Ly):
        yp = yproj[k]                   # (B, 3D + 2O)
        ymk = ym3[k]                    # (B, 1)

        # --- attention (sa and the GRU z/r s-projections share one matmul) ---
        sfused = _mxu(s, Wsa_zr)        # (B, A + 2D)
        sa = sfused[:, :A]
        s_zr = sfused[:, A:]
        t = jnp.tanh(sa[None, :, :] + uh)                        # (L, B, A)
        score = jnp.sum(t * wa1_b, axis=-1, keepdims=True)       # (L, B, 1)
        score = score - jnp.max(score, axis=0, keepdims=True)    # stable softmax
        e = jnp.exp(score) * xm3
        denom = jnp.sum(e, axis=0, keepdims=True)
        # TODO(synk): approx reciprocal assumes >=1 unmasked source token/column.
        alpha = e * pl.reciprocal(denom, approx=True)
        attend = jnp.sum(alpha * xs_h, axis=0)                   # (B, 2H)

        # --- conditional GRU (y_tm1, s_tm1, attend); lc fused into cproj ---
        cproj = _mxu(attend, Wc)                                 # (B, 3D + 2O)
        z = jax.nn.sigmoid(yp[:, :D] + s_zr[:, :D] + cproj[:, :D])
        r = jax.nn.sigmoid(yp[:, D:2 * D] + s_zr[:, D:] + cproj[:, D:2 * D])
        h_above = jnp.tanh(yp[:, 2 * D:3 * D] + _mxu(r * s, Wsh)
                           + cproj[:, 2 * D:3 * D])
        s_new = (1.0 - z) * s + z * h_above
        s_new = ymk * s_new + (1.0 - ymk) * s

        # Stash for the deferred step_out; only the current s stays live.
        s_all_s[k * B:(k + 1) * B, :] = s_new
        ctail_s[k * B:(k + 1) * B, :] = cproj[:, 3 * D:]
        s = s_new

    # ---------------- deferred step_out / maxout / ys-mask ----------------
    # One (Ly*B, D) @ (D, 2O) matmul replaces Ly tiny per-step matmuls, and the
    # whole logit tensor is written with a single store.
    lo = _mxu(s_all_s[...], Wls) + yproj_flat[:, 3 * D:] + ctail_s[...]
    logit = jnp.maximum(lo[:, :O], lo[:, O:]) * ym_flat_ref[...]   # (Ly*B, O)
    out_ref[...] = logit


# -------------------- wrapper --------------------
_VMEM = pl.BlockSpec(memory_space=pltpu.MemorySpace.VMEM)


def nmt_forward(srcs, trgs, srcs_m, trgs_m, params):
    enc_params, dec_params = params
    Ls, B = srcs.shape
    Ly = trgs.shape[0]

    src_ids = srcs.reshape(Ls * B, 1).astype(jnp.int32)
    trg_ids = trgs.reshape(Ly * B, 1).astype(jnp.int32)
    xm3 = srcs_m[:, :, None].astype(F32)          # (Ls, B, 1)
    ym3 = trgs_m[:, :, None].astype(F32)          # (Ly, B, 1)
    ym_flat = trgs_m.reshape(Ly * B, 1).astype(F32)

    n_in = 5 + len(enc_params) + len(dec_params)
    logit_flat = pl.pallas_call(
        nmt_kernel,
        out_shape=jax.ShapeDtypeStruct((Ly * B, OUT_SIZE), F32),
        in_specs=[_VMEM] * n_in,
        out_specs=_VMEM,
        scratch_shapes=[
            pltpu.VMEM((Ls, B, 2 * ENC_HID), F32),      # xs_h (encoder output)
            pltpu.VMEM((Ly * B, DEC_HID), F32),         # per-step s_t
            pltpu.VMEM((Ly * B, 2 * OUT_SIZE), F32),    # per-step lc(attend) tail
        ],
    )(src_ids, trg_ids, xm3, ym3, ym_flat, *enc_params, *dec_params)
    return logit_flat.reshape(Ly, B, OUT_SIZE)


# -------------------- deterministic parameter construction --------------------
def build_params(key):
    keys = iter(jax.random.split(key, 64))
    nrm = lambda shape: 0.1 * jax.random.normal(next(keys), shape, dtype=F32)

    src_emb = nrm((SRC_VOCAB, SRC_WEMB)).at[PAD].set(0.0)
    trg_emb = nrm((TRG_VOCAB, TRG_WEMB)).at[PAD].set(0.0)

    # ----- encoder: fused [z|r|h] gate weights, fwd+bwd x-projections fused -----
    def enc_dir():
        Wx = jnp.concatenate([nrm((SRC_WEMB, ENC_HID)) for _ in range(3)], axis=1)
        Wh = jnp.concatenate([nrm((ENC_HID, ENC_HID)) for _ in range(3)], axis=1)
        bg = jnp.concatenate([nrm((1, ENC_HID)) for _ in range(3)], axis=1)
        return Wx, Wh, bg

    Wx_f, Wh_f, b_f = enc_dir()
    Wx_b, Wh_b, b_b = enc_dir()
    Wx_fb = jnp.concatenate([Wx_f, Wx_b], axis=1)                # (E, 6H) f32
    bx_fb = jnp.concatenate([b_f, b_b], axis=1)                  # (1, 6H) f32
    # Fold the source embedding into the fused input projection (lookup == one-hot matmul).
    Wxv = (src_emb @ Wx_fb).astype(BF16)                         # (SRC_VOCAB, 6H)
    enc_params = (Wxv, bx_fb, Wh_f.astype(BF16), Wh_b.astype(BF16))

    # ----- decoder -----
    Ws0, bs0 = nrm((ENC_HID, DEC_HID)), nrm((1, DEC_HID))
    Wha, bha = nrm((2 * ENC_HID, ALIGN)), nrm((1, ALIGN))
    Wsa, bsa = nrm((DEC_HID, ALIGN)), nrm((1, ALIGN))
    wa1 = nrm((1, ALIGN))
    # a1 bias omitted: a constant added before exp cancels in the softmax.

    def cgru_gate():   # (Wy, Ws, Wc, bias)
        return (nrm((TRG_WEMB, DEC_HID)), nrm((DEC_HID, DEC_HID)),
                nrm((2 * ENC_HID, DEC_HID)), nrm((1, DEC_HID)))

    Wyz, Wsz, Wcz, bz = cgru_gate()
    Wyr, Wsr, Wcr, br = cgru_gate()
    Wyh, Wsh, Wch, bh = cgru_gate()

    Wls, bls = nrm((DEC_HID, 2 * OUT_SIZE)), nrm((2 * OUT_SIZE,))
    Wly, bly = nrm((TRG_WEMB, 2 * OUT_SIZE)), nrm((2 * OUT_SIZE,))
    Wlc, blc = nrm((2 * ENC_HID, 2 * OUT_SIZE)), nrm((2 * OUT_SIZE,))
    b_all = bls + bly + blc
    # maxout pairs (2i, 2i+1) -> [even | odd] column split (no in-kernel reshape)
    eo = lambda W: jnp.concatenate([W[:, 0::2], W[:, 1::2]], axis=1)
    Wls_eo, Wly_eo, Wlc_eo = eo(Wls), eo(Wly), eo(Wlc)
    b_eo = jnp.concatenate([b_all[0::2], b_all[1::2]])[None, :]   # (1, 2*OUT)

    Wy_pack = jnp.concatenate([Wyz, Wyr, Wyh, Wly_eo], axis=1)    # (TRG_WEMB, 3D+2O)
    # Fold the target embedding into the fused y projection.
    Wyv = (trg_emb @ Wy_pack).astype(BF16)                        # (TRG_VOCAB, 3D+2O)
    Ws_pack = jnp.concatenate([Wsa, Wsz, Wsr, Wsh, Wls_eo], axis=1).astype(BF16)
    Wc_pack = jnp.concatenate([Wcz, Wcr, Wch, Wlc_eo], axis=1).astype(BF16)
    b_pack = jnp.concatenate([bs0, bha + bsa, wa1, bz, br, bh, b_eo], axis=1)

    dec_params = (Ws0.astype(BF16), Wha.astype(BF16),
                  Wyv, Ws_pack, Wc_pack, b_pack)
    return enc_params, dec_params


if __name__ == "__main__":
    key = jax.random.PRNGKey(0)
    k_par, k_src, k_trg = jax.random.split(key, 3)

    B, Ls, Ly = 8, 6, 5
    params = build_params(k_par)

    src_lens = jnp.array([6, 5, 6, 4, 6, 3, 6, 2], dtype=jnp.int32)
    trg_lens = jnp.array([5, 4, 5, 3, 5, 2, 5, 1], dtype=jnp.int32)
    srcs_m = (jnp.arange(Ls)[:, None] < src_lens[None, :]).astype(F32)   # (Ls, B)
    trgs_m = (jnp.arange(Ly)[:, None] < trg_lens[None, :]).astype(F32)   # (Ly, B)

    srcs = jax.random.randint(k_src, (Ls, B), 1, SRC_VOCAB, dtype=jnp.int32)
    trgs = jax.random.randint(k_trg, (Ly, B), 1, TRG_VOCAB, dtype=jnp.int32)
    srcs = jnp.where(srcs_m > 0, srcs, PAD)
    trgs = jnp.where(trgs_m > 0, trgs, PAD)

    logit = jax.jit(nmt_forward)(srcs, trgs, srcs_m, trgs_m, params)
    jax.block_until_ready(logit)
    assert logit.shape == (Ly, B, OUT_SIZE)
    print("KERNEL_OK")
</pallas_src>

<mosaic_0001>
module attributes {stable_mosaic.version = 11 : i64} {
  func.func @nmt_kernel(%arg0: memref<48x1xi32, #tpu.memory_space<vmem>>, %arg1: memref<40x1xi32, #tpu.memory_space<vmem>>, %arg2: memref<6x8x1xf32, #tpu.memory_space<vmem>>, %arg3: memref<5x8x1xf32, #tpu.memory_space<vmem>>, %arg4: memref<40x1xf32, #tpu.memory_space<vmem>>, %arg5: memref<50x192xbf16, #tpu.memory_space<vmem>>, %arg6: memref<1x192xf32, #tpu.memory_space<vmem>>, %arg7: memref<32x96xbf16, #tpu.memory_space<vmem>>, %arg8: memref<32x96xbf16, #tpu.memory_space<vmem>>, %arg9: memref<32x32xbf16, #tpu.memory_space<vmem>>, %arg10: memref<64x32xbf16, #tpu.memory_space<vmem>>, %arg11: memref<60x128xbf16, #tpu.memory_space<vmem>>, %arg12: memref<32x160xbf16, #tpu.memory_space<vmem>>, %arg13: memref<64x128xbf16, #tpu.memory_space<vmem>>, %arg14: memref<1x224xf32, #tpu.memory_space<vmem>>, %arg15: memref<40x16xf32, #tpu.memory_space<vmem>>, %arg16: memref<6x8x64xf32, #tpu.memory_space<vmem>>, %arg17: memref<40x32xf32, #tpu.memory_space<vmem>>, %arg18: memref<40x32xf32, #tpu.memory_space<vmem>>) attributes {dimension_semantics = [], scalar_prefetch = 0 : i64, scratch_operands = 3 : i64, tpu.core_type = #tpu.core_type<tc>} {
    %c0 = arith.constant 0 : index
    %c0_0 = arith.constant 0 : index
    %c0_1 = arith.constant 0 : index
    %0 = vector.load %arg2[%c0, %c0_0, %c0_1] : memref<6x8x1xf32, #tpu.memory_space<vmem>>, vector<6x8x1xf32>
    %c0_2 = arith.constant 0 : index
    %c0_3 = arith.constant 0 : index
    %c0_4 = arith.constant 0 : index
    %1 = vector.load %arg3[%c0_2, %c0_3, %c0_4] : memref<5x8x1xf32, #tpu.memory_space<vmem>>, vector<5x8x1xf32>
    %c0_5 = arith.constant 0 : index
    %c0_6 = arith.constant 0 : index
    %2 = vector.load %arg0[%c0_5, %c0_6] : memref<48x1xi32, #tpu.memory_space<vmem>>, vector<48x1xi32>
    %3 = tpu.iota {dimensions = array<i32: 1>} : vector<48x50xi32>
    %4 = vector.broadcast %2 : vector<48x1xi32> to vector<48x50xi32>
    %5 = arith.cmpi eq, %4, %3 : vector<48x50xi32>
    %cst = arith.constant 1.000000e+00 : f32
    %cst_7 = arith.constant 0.000000e+00 : f32
    %6 = vector.broadcast %cst : f32 to vector<48x50xf32>
    %7 = vector.broadcast %cst_7 : f32 to vector<48x50xf32>
    %8 = arith.select %5, %6, %7 : vector<48x50xi1>, vector<48x50xf32>
    %9 = arith.truncf %8 : vector<48x50xf32> to vector<48x50xbf16>
    %c0_8 = arith.constant 0 : index
    %c0_9 = arith.constant 0 : index
    %10 = vector.load %arg5[%c0_8, %c0_9] : memref<50x192xbf16, #tpu.memory_space<vmem>>, vector<50x192xbf16>
    %cst_10 = arith.constant dense<0.000000e+00> : vector<48x192xf32>
    %11 = tpu.matmul %9, %10, %cst_10 {dimension_numbers = #tpu.dot_dimension_numbers<[1], [0], [0], [1], [0, 0, 1, 1], [], []>} : vector<48x50xbf16>, vector<50x192xbf16>, vector<48x192xf32> -> vector<48x192xf32>
    %c0_11 = arith.constant 0 : index
    %c0_12 = arith.constant 0 : index
    %12 = vector.load %arg6[%c0_11, %c0_12] : memref<1x192xf32, #tpu.memory_space<vmem>>, vector<1x192xf32>
    %13 = vector.broadcast %12 : vector<1x192xf32> to vector<48x192xf32>
    %14 = arith.addf %11, %13 : vector<48x192xf32>
    %15 = vector.shape_cast %14 : vector<48x192xf32> to vector<6x8x192xf32>
    %c0_13 = arith.constant 0 : index
    %c0_14 = arith.constant 0 : index
    %16 = vector.load %arg7[%c0_13, %c0_14] : memref<32x96xbf16, #tpu.memory_space<vmem>>, vector<32x96xbf16>
    %c0_15 = arith.constant 0 : index
    %c0_16 = arith.constant 0 : index
    %17 = vector.load %arg8[%c0_15, %c0_16] : memref<32x96xbf16, #tpu.memory_space<vmem>>, vector<32x96xbf16>
    %18 = vector.extract_strided_slice %16 {offsets = [0, 0], sizes = [32, 64], strides = [1, 1]} : vector<32x96xbf16> to vector<32x64xbf16>
    %19 = vector.extract_strided_slice %16 {offsets = [0, 64], sizes = [32, 32], strides = [1, 1]} : vector<32x96xbf16> to vector<32x32xbf16>
    %20 = vector.extract_strided_slice %17 {offsets = [0, 0], sizes = [32, 64], strides = [1, 1]} : vector<32x96xbf16> to vector<32x64xbf16>
    %21 = vector.extract_strided_slice %17 {offsets = [0, 64], sizes = [32, 32], strides = [1, 1]} : vector<32x96xbf16> to vector<32x32xbf16>
    %cst_17 = arith.constant 0.000000e+00 : f32
    %22 = vector.broadcast %cst_17 : f32 to vector<8x32xf32>
    %cst_18 = arith.constant 0.000000e+00 : f32
    %23 = vector.broadcast %cst_18 : f32 to vector<8x32xf32>
    %24 = vector.extract_strided_slice %15 {offsets = [0, 0, 0], sizes = [1, 8, 96], strides = [1, 1, 1]} : vector<6x8x192xf32> to vector<1x8x96xf32>
    %25 = vector.shape_cast %24 : vector<1x8x96xf32> to vector<8x96xf32>
    %26 = vector.extract_strided_slice %0 {offsets = [0, 0, 0], sizes = [1, 8, 1], strides = [1, 1, 1]} : vector<6x8x1xf32> to vector<1x8x1xf32>
    %27 = vector.shape_cast %26 : vector<1x8x1xf32> to vector<8x1xf32>
    %28 = arith.truncf %22 : vector<8x32xf32> to vector<8x32xbf16>
    %cst_19 = arith.constant dense<0.000000e+00> : vector<8x64xf32>
    %29 = tpu.matmul %28, %18, %cst_19 {dimension_numbers = #tpu.dot_dimension_numbers<[1], [0], [0], [1], [0, 0, 1, 1], [], []>} : vector<8x32xbf16>, vector<32x64xbf16>, vector<8x64xf32> -> vector<8x64xf32>
    %30 = vector.extract_strided_slice %25 {offsets = [0, 0], sizes = [8, 32], strides = [1, 1]} : vector<8x96xf32> to vector<8x32xf32>
    %31 = vector.extract_strided_slice %29 {offsets = [0, 0], sizes = [8, 32], strides = [1, 1]} : vector<8x64xf32> to vector<8x32xf32>
    %32 = arith.addf %30, %31 : vector<8x32xf32>
    %33 = arith.negf %32 : vector<8x32xf32>
    %34 = math.exp %33 : vector<8x32xf32>
    %cst_20 = arith.constant 1.000000e+00 : f32
    %35 = vector.broadcast %cst_20 : f32 to vector<8x32xf32>
    %36 = arith.addf %35, %34 : vector<8x32xf32>
    %37 = arith.divf %35, %36 : vector<8x32xf32>
    %38 = vector.extract_strided_slice %25 {offsets = [0, 32], sizes = [8, 32], strides = [1, 1]} : vector<8x96xf32> to vector<8x32xf32>
    %39 = vector.extract_strided_slice %29 {offsets = [0, 32], sizes = [8, 32], strides = [1, 1]} : vector<8x64xf32> to vector<8x32xf32>
    %40 = arith.addf %38, %39 : vector<8x32xf32>
    %41 = arith.negf %40 : vector<8x32xf32>
    %42 = math.exp %41 : vector<8x32xf32>
    %cst_21 = arith.constant 1.000000e+00 : f32
    %43 = vector.broadcast %cst_21 : f32 to vector<8x32xf32>
    %44 = arith.addf %43, %42 : vector<8x32xf32>
    %45 = arith.divf %43, %44 : vector<8x32xf32>
    %46 = vector.extract_strided_slice %25 {offsets = [0, 64], sizes = [8, 32], strides = [1, 1]} : vector<8x96xf32> to vector<8x32xf32>
    %47 = arith.mulf %45, %22 : vector<8x32xf32>
    %48 = arith.truncf %47 : vector<8x32xf32> to vector<8x32xbf16>
    %cst_22 = arith.constant dense<0.000000e+00> : vector<8x32xf32>
    %49 = tpu.matmul %48, %19, %cst_22 {dimension_numbers = #tpu.dot_dimension_numbers<[1], [0], [0], [1], [0, 0, 1, 1], [], []>} : vector<8x32xbf16>, vector<32x32xbf16>, vector<8x32xf32> -> vector<8x32xf32>
    %50 = arith.addf %46, %49 : vector<8x32xf32>
    %51 = math.tanh %50 : vector<8x32xf32>
    %cst_23 = arith.constant 1.000000e+00 : f32
    %52 = vector.broadcast %cst_23 : f32 to vector<8x32xf32>
    %53 = arith.subf %52, %37 : vector<8x32xf32>
    %54 = arith.mulf %53, %22 : vector<8x32xf32>
    %55 = arith.mulf %37, %51 : vector<8x32xf32>
    %56 = arith.addf %54, %55 : vector<8x32xf32>
    %57 = vector.broadcast %27 : vector<8x1xf32> to vector<8x32xf32>
    %58 = arith.mulf %57, %56 : vector<8x32xf32>
    %cst_24 = arith.constant 1.000000e+00 : f32
    %59 = vector.broadcast %cst_24 : f32 to vector<8x1xf32>
    %60 = arith.subf %59, %27 : vector<8x1xf32>
    %61 = vector.broadcast %60 : vector<8x1xf32> to vector<8x32xf32>
    %62 = arith.mulf %61, %22 : vector<8x32xf32>
    %63 = arith.addf %58, %62 : vector<8x32xf32>
    %64 = vector.extract_strided_slice %15 {offsets = [5, 0, 96], sizes = [1, 8, 96], strides = [1, 1, 1]} : vector<6x8x192xf32> to vector<1x8x96xf32>
    %65 = vector.shape_cast %64 : vector<1x8x96xf32> to vector<8x96xf32>
    %66 = vector.extract_strided_slice %0 {offsets = [5, 0, 0], sizes = [1, 8, 1], strides = [1, 1, 1]} : vector<6x8x1xf32> to vector<1x8x1xf32>
    %67 = vector.shape_cast %66 : vector<1x8x1xf32> to vector<8x1xf32>
    %68 = arith.truncf %23 : vector<8x32xf32> to vector<8x32xbf16>
    %cst_25 = arith.constant dense<0.000000e+00> : vector<8x64xf32>
    %69 = tpu.matmul %68, %20, %cst_25 {dimension_numbers = #tpu.dot_dimension_numbers<[1], [0], [0], [1], [0, 0, 1, 1], [], []>} : vector<8x32xbf16>, vector<32x64xbf16>, vector<8x64xf32> -> vector<8x64xf32>
    %70 = vector.extract_strided_slice %65 {offsets = [0, 0], sizes = [8, 32], strides = [1, 1]} : vector<8x96xf32> to vector<8x32xf32>
    %71 = vector.extract_strided_slice %69 {offsets = [0, 0], sizes = [8, 32], strides = [1, 1]} : vector<8x64xf32> to vector<8x32xf32>
    %72 = arith.addf %70, %71 : vector<8x32xf32>
    %73 = arith.negf %72 : vector<8x32xf32>
    %74 = math.exp %73 : vector<8x32xf32>
    %cst_26 = arith.constant 1.000000e+00 : f32
    %75 = vector.broadcast %cst_26 : f32 to vector<8x32xf32>
    %76 = arith.addf %75, %74 : vector<8x32xf32>
    %77 = arith.divf %75, %76 : vector<8x32xf32>
    %78 = vector.extract_strided_slice %65 {offsets = [0, 32], sizes = [8, 32], strides = [1, 1]} : vector<8x96xf32> to vector<8x32xf32>
    %79 = vector.extract_strided_slice %69 {offsets = [0, 32], sizes = [8, 32], strides = [1, 1]} : vector<8x64xf32> to vector<8x32xf32>
    %80 = arith.addf %78, %79 : vector<8x32xf32>
    %81 = arith.negf %80 : vector<8x32xf32>
    %82 = math.exp %81 : vector<8x32xf32>
    %cst_27 = arith.constant 1.000000e+00 : f32
    %83 = vector.broadcast %cst_27 : f32 to vector<8x32xf32>
    %84 = arith.addf %83, %82 : vector<8x32xf32>
    %85 = arith.divf %83, %84 : vector<8x32xf32>
    %86 = vector.extract_strided_slice %65 {offsets = [0, 64], sizes = [8, 32], strides = [1, 1]} : vector<8x96xf32> to vector<8x32xf32>
    %87 = arith.mulf %85, %23 : vector<8x32xf32>
    %88 = arith.truncf %87 : vector<8x32xf32> to vector<8x32xbf16>
    %cst_28 = arith.constant dense<0.000000e+00> : vector<8x32xf32>
    %89 = tpu.matmul %88, %21, %cst_28 {dimension_numbers = #tpu.dot_dimension_numbers<[1], [0], [0], [1], [0, 0, 1, 1], [], []>} : vector<8x32xbf16>, vector<32x32xbf16>, vector<8x32xf32> -> vector<8x32xf32>
    %90 = arith.addf %86, %89 : vector<8x32xf32>
    %91 = math.tanh %90 : vector<8x32xf32>
    %cst_29 = arith.constant 1.000000e+00 : f32
    %92 = vector.broadcast %cst_29 : f32 to vector<8x32xf32>
    %93 = arith.subf %92, %77 : vector<8x32xf32>
    %94 = arith.mulf %93, %23 : vector<8x32xf32>
    %95 = arith.mulf %77, %91 : vector<8x32xf32>
    %96 = arith.addf %94, %95 : vector<8x32xf32>
    %97 = vector.broadcast %67 : vector<8x1xf32> to vector<8x32xf32>
    %98 = arith.mulf %97, %96 : vector<8x32xf32>
    %cst_30 = arith.constant 1.000000e+00 : f32
    %99 = vector.broadcast %cst_30 : f32 to vector<8x1xf32>
    %100 = arith.subf %99, %67 : vector<8x1xf32>
    %101 = vector.broadcast %100 : vector<8x1xf32> to vector<8x32xf32>
    %102 = arith.mulf %101, %23 : vector<8x32xf32>
    %103 = arith.addf %98, %102 : vector<8x32xf32>
    %c0_31 = arith.constant 0 : index
    %c0_32 = arith.constant 0 : index
    %c0_33 = arith.constant 0 : index
    %104 = vector.load %arg16[%c0_31, %c0_32, %c0_33] : memref<6x8x64xf32, #tpu.memory_space<vmem>>, vector<1x8x32xf32>
    %105 = vector.shape_cast %104 : vector<1x8x32xf32> to vector<8x32xf32>
    %106 = vector.shape_cast %63 : vector<8x32xf32> to vector<1x8x32xf32>
    tpu.vector_store %arg16[%c0_31, %c0_32, %c0_33], %106 {strides = array<i32>} : memref<6x8x64xf32, #tpu.memory_space<vmem>>, vector<1x8x32xf32>,
    %c5 = arith.constant 5 : index
    %c0_34 = arith.constant 0 : index
    %c32 = arith.constant 32 : index
    %107 = vector.load %arg16[%c5, %c0_34, %c32] : memref<6x8x64xf32, #tpu.memory_space<vmem>>, vector<1x8x32xf32>
    %108 = vector.shape_cast %107 : vector<1x8x32xf32> to vector<8x32xf32>
    %109 = vector.shape_cast %103 : vector<8x32xf32> to vector<1x8x32xf32>
    tpu.vector_store %arg16[%c5, %c0_34, %c32], %109 {strides = array<i32>} : memref<6x8x64xf32, #tpu.memory_space<vmem>>, vector<1x8x32xf32>,
    %110 = vector.extract_strided_slice %15 {offsets = [1, 0, 0], sizes = [1, 8, 96], strides = [1, 1, 1]} : vector<6x8x192xf32> to vector<1x8x96xf32>
    %111 = vector.shape_cast %110 : vector<1x8x96xf32> to vector<8x96xf32>
    %112 = vector.extract_strided_slice %0 {offsets = [1, 0, 0], sizes = [1, 8, 1], strides = [1, 1, 1]} : vector<6x8x1xf32> to vector<1x8x1xf32>
    %113 = vector.shape_cast %112 : vector<1x8x1xf32> to vector<8x1xf32>
    %114 = arith.truncf %63 : vector<8x32xf32> to vector<8x32xbf16>
    %cst_35 = arith.constant dense<0.000000e+00> : vector<8x64xf32>
    %115 = tpu.matmul %114, %18, %cst_35 {dimension_numbers = #tpu.dot_dimension_numbers<[1], [0], [0], [1], [0, 0, 1, 1], [], []>} : vector<8x32xbf16>, vector<32x64xbf16>, vector<8x64xf32> -> vector<8x64xf32>
    %116 = vector.extract_strided_slice %111 {offsets = [0, 0], sizes = [8, 32], strides = [1, 1]} : vector<8x96xf32> to vector<8x32xf32>
    %117 = vector.extract_strided_slice %115 {offsets = [0, 0], sizes = [8, 32], strides = [1, 1]} : vector<8x64xf32> to vector<8x32xf32>
    %118 = arith.addf %116, %117 : vector<8x32xf32>
    %119 = arith.negf %118 : vector<8x32xf32>
    %120 = math.exp %119 : vector<8x32xf32>
    %cst_36 = arith.constant 1.000000e+00 : f32
    %121 = vector.broadcast %cst_36 : f32 to vector<8x32xf32>
    %122 = arith.addf %121, %120 : vector<8x32xf32>
    %123 = arith.divf %121, %122 : vector<8x32xf32>
    %124 = vector.extract_strided_slice %111 {offsets = [0, 32], sizes = [8, 32], strides = [1, 1]} : vector<8x96xf32> to vector<8x32xf32>
    %125 = vector.extract_strided_slice %115 {offsets = [0, 32], sizes = [8, 32], strides = [1, 1]} : vector<8x64xf32> to vector<8x32xf32>
    %126 = arith.addf %124, %125 : vector<8x32xf32>
    %127 = arith.negf %126 : vector<8x32xf32>
    %128 = math.exp %127 : vector<8x32xf32>
    %cst_37 = arith.constant 1.000000e+00 : f32
    %129 = vector.broadcast %cst_37 : f32 to vector<8x32xf32>
    %130 = arith.addf %129, %128 : vector<8x32xf32>
    %131 = arith.divf %129, %130 : vector<8x32xf32>
    %132 = vector.extract_strided_slice %111 {offsets = [0, 64], sizes = [8, 32], strides = [1, 1]} : vector<8x96xf32> to vector<8x32xf32>
    %133 = arith.mulf %131, %63 : vector<8x32xf32>
    %134 = arith.truncf %133 : vector<8x32xf32> to vector<8x32xbf16>
    %cst_38 = arith.constant dense<0.000000e+00> : vector<8x32xf32>
    %135 = tpu.matmul %134, %19, %cst_38 {dimension_numbers = #tpu.dot_dimension_numbers<[1], [0], [0], [1], [0, 0, 1, 1], [], []>} : vector<8x32xbf16>, vector<32x32xbf16>, vector<8x32xf32> -> vector<8x32xf32>
    %136 = arith.addf %132, %135 : vector<8x32xf32>
    %137 = math.tanh %136 : vector<8x32xf32>
    %cst_39 = arith.constant 1.000000e+00 : f32
    %138 = vector.broadcast %cst_39 : f32 to vector<8x32xf32>
    %139 = arith.subf %138, %123 : vector<8x32xf32>
    %140 = arith.mulf %139, %63 : vector<8x32xf32>
    %141 = arith.mulf %123, %137 : vector<8x32xf32>
    %142 = arith.addf %140, %141 : vector<8x32xf32>
    %143 = vector.broadcast %113 : vector<8x1xf32> to vector<8x32xf32>
    %144 = arith.mulf %143, %142 : vector<8x32xf32>
    %cst_40 = arith.constant 1.000000e+00 : f32
    %145 = vector.broadcast %cst_40 : f32 to vector<8x1xf32>
    %146 = arith.subf %145, %113 : vector<8x1xf32>
    %147 = vector.broadcast %146 : vector<8x1xf32> to vector<8x32xf32>
    %148 = arith.mulf %147, %63 : vector<8x32xf32>
    %149 = arith.addf %144, %148 : vector<8x32xf32>
    %150 = vector.extract_strided_slice %15 {offsets = [4, 0, 96], sizes = [1, 8, 96], strides = [1, 1, 1]} : vector<6x8x192xf32> to vector<1x8x96xf32>
    %151 = vector.shape_cast %150 : vector<1x8x96xf32> to vector<8x96xf32>
    %152 = vector.extract_strided_slice %0 {offsets = [4, 0, 0], sizes = [1, 8, 1], strides = [1, 1, 1]} : vector<6x8x1xf32> to vector<1x8x1xf32>
    %153 = vector.shape_cast %152 : vector<1x8x1xf32> to vector<8x1xf32>
    %154 = arith.truncf %103 : vector<8x32xf32> to vector<8x32xbf16>
    %cst_41 = arith.constant dense<0.000000e+00> : vector<8x64xf32>
    %155 = tpu.matmul %154, %20, %cst_41 {dimension_numbers = #tpu.dot_dimension_numbers<[1], [0], [0], [1], [0, 0, 1, 1], [], []>} : vector<8x32xbf16>, vector<32x64xbf16>, vector<8x64xf32> -> vector<8x64xf32>
    %156 = vector.extract_strided_slice %151 {offsets = [0, 0], sizes = [8, 32], strides = [1, 1]} : vector<8x96xf32> to vector<8x32xf32>
    %157 = vector.extract_strided_slice %155 {offsets = [0, 0], sizes = [8, 32], strides = [1, 1]} : vector<8x64xf32> to vector<8x32xf32>
    %158 = arith.addf %156, %157 : vector<8x32xf32>
    %159 = arith.negf %158 : vector<8x32xf32>
    %160 = math.exp %159 : vector<8x32xf32>
    %cst_42 = arith.constant 1.000000e+00 : f32
    %161 = vector.broadcast %cst_42 : f32 to vector<8x32xf32>
    %162 = arith.addf %161, %160 : vector<8x32xf32>
    %163 = arith.divf %161, %162 : vector<8x32xf32>
    %164 = vector.extract_strided_slice %151 {offsets = [0, 32], sizes = [8, 32], strides = [1, 1]} : vector<8x96xf32> to vector<8x32xf32>
    %165 = vector.extract_strided_slice %155 {offsets = [0, 32], sizes = [8, 32], strides = [1, 1]} : vector<8x64xf32> to vector<8x32xf32>
    %166 = arith.addf %164, %165 : vector<8x32xf32>
    %167 = arith.negf %166 : vector<8x32xf32>
    %168 = math.exp %167 : vector<8x32xf32>
    %cst_43 = arith.constant 1.000000e+00 : f32
    %169 = vector.broadcast %cst_43 : f32 to vector<8x32xf32>
    %170 = arith.addf %169, %168 : vector<8x32xf32>
    %171 = arith.divf %169, %170 : vector<8x32xf32>
    %172 = vector.extract_strided_slice %151 {offsets = [0, 64], sizes = [8, 32], strides = [1, 1]} : vector<8x96xf32> to vector<8x32xf32>
    %173 = arith.mulf %171, %103 : vector<8x32xf32>
    %174 = arith.truncf %173 : vector<8x32xf32> to vector<8x32xbf16>
    %cst_44 = arith.constant dense<0.000000e+00> : vector<8x32xf32>
    %175 = tpu.matmul %174, %21, %cst_44 {dimension_numbers = #tpu.dot_dimension_numbers<[1], [0], [0], [1], [0, 0, 1, 1], [], []>} : vector<8x32xbf16>, vector<32x32xbf16>, vector<8x32xf32> -> vector<8x32xf32>
    %176 = arith.addf %172, %175 : vector<8x32xf32>
    %177 = math.tanh %176 : vector<8x32xf32>
    %cst_45 = arith.constant 1.000000e+00 : f32
    %178 = vector.broadcast %cst_45 : f32 to vector<8x32xf32>
    %179 = arith.subf %178, %163 : vector<8x32xf32>
    %180 = arith.mulf %179, %103 : vector<8x32xf32>
    %181 = arith.mulf %163, %177 : vector<8x32xf32>
    %182 = arith.addf %180, %181 : vector<8x32xf32>
    %183 = vector.broadcast %153 : vector<8x1xf32> to vector<8x32xf32>
    %184 = arith.mulf %183, %182 : vector<8x32xf32>
    %cst_46 = arith.constant 1.000000e+00 : f32
    %185 = vector.broadcast %cst_46 : f32 to vector<8x1xf32>
    %186 = arith.subf %185, %153 : vector<8x1xf32>
    %187 = vector.broadcast %186 : vector<8x1xf32> to vector<8x32xf32>
    %188 = arith.mulf %187, %103 : vector<8x32xf32>
    %189 = arith.addf %184, %188 : vector<8x32xf32>
    %c1 = arith.constant 1 : index
    %c0_47 = arith.constant 0 : index
    %c0_48 = arith.constant 0 : index
    %190 = vector.load %arg16[%c1, %c0_47, %c0_48] : memref<6x8x64xf32, #tpu.memory_space<vmem>>, vector<1x8x32xf32>
    %191 = vector.shape_cast %190 : vector<1x8x32xf32> to vector<8x32xf32>
    %192 = vector.shape_cast %149 : vector<8x32xf32> to vector<1x8x32xf32>
    tpu.vector_store %arg16[%c1, %c0_47, %c0_48], %192 {strides = array<i32>} : memref<6x8x64xf32, #tpu.memory_space<vmem>>, vector<1x8x32xf32>,
    %c4 = arith.constant 4 : index
    %c0_49 = arith.constant 0 : index
    %c32_50 = arith.constant 32 : index
    %193 = vector.load %arg16[%c4, %c0_49, %c32_50] : memref<6x8x64xf32, #tpu.memory_space<vmem>>, vector<1x8x32xf32>
    %194 = vector.shape_cast %193 : vector<1x8x32xf32> to vector<8x32xf32>
    %195 = vector.shape_cast %189 : vector<8x32xf32> to vector<1x8x32xf32>
    tpu.vector_store %arg16[%c4, %c0_49, %c32_50], %195 {strides = array<i32>} : memref<6x8x64xf32, #tpu.memory_space<vmem>>, vector<1x8x32xf32>,
    %196 = vector.extract_strided_slice %15 {offsets = [2, 0, 0], sizes = [1, 8, 96], strides = [1, 1, 1]} : vector<6x8x192xf32> to vector<1x8x96xf32>
    %197 = vector.shape_cast %196 : vector<1x8x96xf32> to vector<8x96xf32>
    %198 = vector.extract_strided_slice %0 {offsets = [2, 0, 0], sizes = [1, 8, 1], strides = [1, 1, 1]} : vector<6x8x1xf32> to vector<1x8x1xf32>
    %199 = vector.shape_cast %198 : vector<1x8x1xf32> to vector<8x1xf32>
    %200 = arith.truncf %149 : vector<8x32xf32> to vector<8x32xbf16>
    %cst_51 = arith.constant dense<0.000000e+00> : vector<8x64xf32>
    %201 = tpu.matmul %200, %18, %cst_51 {dimension_numbers = #tpu.dot_dimension_numbers<[1], [0], [0], [1], [0, 0, 1, 1], [], []>} : vector<8x32xbf16>, vector<32x64xbf16>, vector<8x64xf32> -> vector<8x64xf32>
    %202 = vector.extract_strided_slice %197 {offsets = [0, 0], sizes = [8, 32], strides = [1, 1]} : vector<8x96xf32> to vector<8x32xf32>
    %203 = vector.extract_strided_slice %201 {offsets = [0, 0], sizes = [8, 32], strides = [1, 1]} : vector<8x64xf32> to vector<8x32xf32>
    %204 = arith.addf %202, %203 : vector<8x32xf32>
    %205 = arith.negf %204 : vector<8x32xf32>
    %206 = math.exp %205 : vector<8x32xf32>
    %cst_52 = arith.constant 1.000000e+00 : f32
    %207 = vector.broadcast %cst_52 : f32 to vector<8x32xf32>
    %208 = arith.addf %207, %206 : vector<8x32xf32>
    %209 = arith.divf %207, %208 : vector<8x32xf32>
    %210 = vector.extract_strided_slice %197 {offsets = [0, 32], sizes = [8, 32], strides = [1, 1]} : vector<8x96xf32> to vector<8x32xf32>
    %211 = vector.extract_strided_slice %201 {offsets = [0, 32], sizes = [8, 32], strides = [1, 1]} : vector<8x64xf32> to vector<8x32xf32>
    %212 = arith.addf %210, %211 : vector<8x32xf32>
    %213 = arith.negf %212 : vector<8x32xf32>
    %214 = math.exp %213 : vector<8x32xf32>
    %cst_53 = arith.constant 1.000000e+00 : f32
    %215 = vector.broadcast %cst_53 : f32 to vector<8x32xf32>
    %216 = arith.addf %215, %214 : vector<8x32xf32>
    %217 = arith.divf %215, %216 : vector<8x32xf32>
    %218 = vector.extract_strided_slice %197 {offsets = [0, 64], sizes = [8, 32], strides = [1, 1]} : vector<8x96xf32> to vector<8x32xf32>
    %219 = arith.mulf %217, %149 : vector<8x32xf32>
    %220 = arith.truncf %219 : vector<8x32xf32> to vector<8x32xbf16>
    %cst_54 = arith.constant dense<0.000000e+00> : vector<8x32xf32>
    %221 = tpu.matmul %220, %19, %cst_54 {dimension_numbers = #tpu.dot_dimension_numbers<[1], [0], [0], [1], [0, 0, 1, 1], [], []>} : vector<8x32xbf16>, vector<32x32xbf16>, vector<8x32xf32> -> vector<8x32xf32>
    %222 = arith.addf %218, %221 : vector<8x32xf32>
    %223 = math.tanh %222 : vector<8x32xf32>
    %cst_55 = arith.constant 1.000000e+00 : f32
    %224 = vector.broadcast %cst_55 : f32 to vector<8x32xf32>
    %225 = arith.subf %224, %209 : vector<8x32xf32>
    %226 = arith.mulf %225, %149 : vector<8x32xf32>
    %227 = arith.mulf %209, %223 : vector<8x32xf32>
    %228 = arith.addf %226, %227 : vector<8x32xf32>
    %229 = vector.broadcast %199 : vector<8x1xf32> to vector<8x32xf32>
    %230 = arith.mulf %229, %228 : vector<8x32xf32>
    %cst_56 = arith.constant 1.000000e+00 : f32
    %231 = vector.broadcast %cst_56 : f32 to vector<8x1xf32>
    %232 = arith.subf %231, %199 : vector<8x1xf32>
    %233 = vector.broadcast %232 : vector<8x1xf32> to vector<8x32xf32>
    %234 = arith.mulf %233, %149 : vector<8x32xf32>
    %235 = arith.addf %230, %234 : vector<8x32xf32>
    %236 = vector.extract_strided_slice %15 {offsets = [3, 0, 96], sizes = [1, 8, 96], strides = [1, 1, 1]} : vector<6x8x192xf32> to vector<1x8x96xf32>
    %237 = vector.shape_cast %236 : vector<1x8x96xf32> to vector<8x96xf32>
    %238 = vector.extract_strided_slice %0 {offsets = [3, 0, 0], sizes = [1, 8, 1], strides = [1, 1, 1]} : vector<6x8x1xf32> to vector<1x8x1xf32>
    %239 = vector.shape_cast %238 : vector<1x8x1xf32> to vector<8x1xf32>
    %240 = arith.truncf %189 : vector<8x32xf32> to vector<8x32xbf16>
    %cst_57 = arith.constant dense<0.000000e+00> : vector<8x64xf32>
    %241 = tpu.matmul %240, %20, %cst_57 {dimension_numbers = #tpu.dot_dimension_numbers<[1], [0], [0], [1], [0, 0, 1, 1], [], []>} : vector<8x32xbf16>, vector<32x64xbf16>, vector<8x64xf32> -> vector<8x64xf32>
    %242 = vector.extract_strided_slice %237 {offsets = [0, 0], sizes = [8, 32], strides = [1, 1]} : vector<8x96xf32> to vector<8x32xf32>
    %243 = vector.extract_strided_slice %241 {offsets = [0, 0], sizes = [8, 32], strides = [1, 1]} : vector<8x64xf32> to vector<8x32xf32>
    %244 = arith.addf %242, %243 : vector<8x32xf32>
    %245 = arith.negf %244 : vector<8x32xf32>
    %246 = math.exp %245 : vector<8x32xf32>
    %cst_58 = arith.constant 1.000000e+00 : f32
    %247 = vector.broadcast %cst_58 : f32 to vector<8x32xf32>
    %248 = arith.addf %247, %246 : vector<8x32xf32>
    %249 = arith.divf %247, %248 : vector<8x32xf32>
    %250 = vector.extract_strided_slice %237 {offsets = [0, 32], sizes = [8, 32], strides = [1, 1]} : vector<8x96xf32> to vector<8x32xf32>
    %251 = vector.extract_strided_slice %241 {offsets = [0, 32], sizes = [8, 32], strides = [1, 1]} : vector<8x64xf32> to vector<8x32xf32>
    %252 = arith.addf %250, %251 : vector<8x32xf32>
    %253 = arith.negf %252 : vector<8x32xf32>
    %254 = math.exp %253 : vector<8x32xf32>
    %cst_59 = arith.constant 1.000000e+00 : f32
    %255 = vector.broadcast %cst_59 : f32 to vector<8x32xf32>
    %256 = arith.addf %255, %254 : vector<8x32xf32>
    %257 = arith.divf %255, %256 : vector<8x32xf32>
    %258 = vector.extract_strided_slice %237 {offsets = [0, 64], sizes = [8, 32], strides = [1, 1]} : vector<8x96xf32> to vector<8x32xf32>
    %259 = arith.mulf %257, %189 : vector<8x32xf32>
    %260 = arith.truncf %259 : vector<8x32xf32> to vector<8x32xbf16>
    %cst_60 = arith.constant dense<0.000000e+00> : vector<8x32xf32>
    %261 = tpu.matmul %260, %21, %cst_60 {dimension_numbers = #tpu.dot_dimension_numbers<[1], [0], [0], [1], [0, 0, 1, 1], [], []>} : vector<8x32xbf16>, vector<32x32xbf16>, vector<8x32xf32> -> vector<8x32xf32>
    %262 = arith.addf %258, %261 : vector<8x32xf32>
    %263 = math.tanh %262 : vector<8x32xf32>
    %cst_61 = arith.constant 1.000000e+00 : f32
    %264 = vector.broadcast %cst_61 : f32 to vector<8x32xf32>
    %265 = arith.subf %264, %249 : vector<8x32xf32>
    %266 = arith.mulf %265, %189 : vector<8x32xf32>
    %267 = arith.mulf %249, %263 : vector<8x32xf32>
    %268 = arith.addf %266, %267 : vector<8x32xf32>
    %269 = vector.broadcast %239 : vector<8x1xf32> to vector<8x32xf32>
    %270 = arith.mulf %269, %268 : vector<8x32xf32>
    %cst_62 = arith.constant 1.000000e+00 : f32
    %271 = vector.broadcast %cst_62 : f32 to vector<8x1xf32>
    %272 = arith.subf %271, %239 : vector<8x1xf32>
    %273 = vector.broadcast %272 : vector<8x1xf32> to vector<8x32xf32>
    %274 = arith.mulf %273, %189 : vector<8x32xf32>
    %275 = arith.addf %270, %274 : vector<8x32xf32>
    %c2 = arith.constant 2 : index
    %c0_63 = arith.constant 0 : index
    %c0_64 = arith.constant 0 : index
    %276 = vector.load %arg16[%c2, %c0_63, %c0_64] : memref<6x8x64xf32, #tpu.memory_space<vmem>>, vector<1x8x32xf32>
    %277 = vector.shape_cast %276 : vector<1x8x32xf32> to vector<8x32xf32>
    %278 = vector.shape_cast %235 : vector<8x32xf32> to vector<1x8x32xf32>
    tpu.vector_store %arg16[%c2, %c0_63, %c0_64], %278 {strides = array<i32>} : memref<6x8x64xf32, #tpu.memory_space<vmem>>, vector<1x8x32xf32>,
    %c3 = arith.constant 3 : index
    %c0_65 = arith.constant 0 : index
    %c32_66 = arith.constant 32 : index
    %279 = vector.load %arg16[%c3, %c0_65, %c32_66] : memref<6x8x64xf32, #tpu.memory_space<vmem>>, vector<1x8x32xf32>
    %280 = vector.shape_cast %279 : vector<1x8x32xf32> to vector<8x32xf32>
    %281 = vector.shape_cast %275 : vector<8x32xf32> to vector<1x8x32xf32>
    tpu.vector_store %arg16[%c3, %c0_65, %c32_66], %281 {strides = array<i32>} : memref<6x8x64xf32, #tpu.memory_space<vmem>>, vector<1x8x32xf32>,
    %282 = vector.extract_strided_slice %15 {offsets = [3, 0, 0], sizes = [1, 8, 96], strides = [1, 1, 1]} : vector<6x8x192xf32> to vector<1x8x96xf32>
    %283 = vector.shape_cast %282 : vector<1x8x96xf32> to vector<8x96xf32>
    %284 = vector.extract_strided_slice %0 {offsets = [3, 0, 0], sizes = [1, 8, 1], strides = [1, 1, 1]} : vector<6x8x1xf32> to vector<1x8x1xf32>
    %285 = vector.shape_cast %284 : vector<1x8x1xf32> to vector<8x1xf32>
    %286 = arith.truncf %235 : vector<8x32xf32> to vector<8x32xbf16>
    %cst_67 = arith.constant dense<0.000000e+00> : vector<8x64xf32>
    %287 = tpu.matmul %286, %18, %cst_67 {dimension_numbers = #tpu.dot_dimension_numbers<[1], [0], [0], [1], [0, 0, 1, 1], [], []>} : vector<8x32xbf16>, vector<32x64xbf16>, vector<8x64xf32> -> vector<8x64xf32>
    %288 = vector.extract_strided_slice %283 {offsets = [0, 0], sizes = [8, 32], strides = [1, 1]} : vector<8x96xf32> to vector<8x32xf32>
    %289 = vector.extract_strided_slice %287 {offsets = [0, 0], sizes = [8, 32], strides = [1, 1]} : vector<8x64xf32> to vector<8x32xf32>
    %290 = arith.addf %288, %289 : vector<8x32xf32>
    %291 = arith.negf %290 : vector<8x32xf32>
    %292 = math.exp %291 : vector<8x32xf32>
    %cst_68 = arith.constant 1.000000e+00 : f32
    %293 = vector.broadcast %cst_68 : f32 to vector<8x32xf32>
    %294 = arith.addf %293, %292 : vector<8x32xf32>
    %295 = arith.divf %293, %294 : vector<8x32xf32>
    %296 = vector.extract_strided_slice %283 {offsets = [0, 32], sizes = [8, 32], strides = [1, 1]} : vector<8x96xf32> to vector<8x32xf32>
    %297 = vector.extract_strided_slice %287 {offsets = [0, 32], sizes = [8, 32], strides = [1, 1]} : vector<8x64xf32> to vector<8x32xf32>
    %298 = arith.addf %296, %297 : vector<8x32xf32>
    %299 = arith.negf %298 : vector<8x32xf32>
    %300 = math.exp %299 : vector<8x32xf32>
    %cst_69 = arith.constant 1.000000e+00 : f32
    %301 = vector.broadcast %cst_69 : f32 to vector<8x32xf32>
    %302 = arith.addf %301, %300 : vector<8x32xf32>
    %303 = arith.divf %301, %302 : vector<8x32xf32>
    %304 = vector.extract_strided_slice %283 {offsets = [0, 64], sizes = [8, 32], strides = [1, 1]} : vector<8x96xf32> to vector<8x32xf32>
    %305 = arith.mulf %303, %235 : vector<8x32xf32>
    %306 = arith.truncf %305 : vector<8x32xf32> to vector<8x32xbf16>
    %cst_70 = arith.constant dense<0.000000e+00> : vector<8x32xf32>
    %307 = tpu.matmul %306, %19, %cst_70 {dimension_numbers = #tpu.dot_dimension_numbers<[1], [0], [0], [1], [0, 0, 1, 1], [], []>} : vector<8x32xbf16>, vector<32x32xbf16>, vector<8x32xf32> -> vector<8x32xf32>
    %308 = arith.addf %304, %307 : vector<8x32xf32>
    %309 = math.tanh %308 : vector<8x32xf32>
    %cst_71 = arith.constant 1.000000e+00 : f32
    %310 = vector.broadcast %cst_71 : f32 to vector<8x32xf32>
    %311 = arith.subf %310, %295 : vector<8x32xf32>
    %312 = arith.mulf %311, %235 : vector<8x32xf32>
    %313 = arith.mulf %295, %309 : vector<8x32xf32>
    %314 = arith.addf %312, %313 : vector<8x32xf32>
    %315 = vector.broadcast %285 : vector<8x1xf32> to vector<8x32xf32>
    %316 = arith.mulf %315, %314 : vector<8x32xf32>
    %cst_72 = arith.constant 1.000000e+00 : f32
    %317 = vector.broadcast %cst_72 : f32 to vector<8x1xf32>
    %318 = arith.subf %317, %285 : vector<8x1xf32>
    %319 = vector.broadcast %318 : vector<8x1xf32> to vector<8x32xf32>
    %320 = arith.mulf %319, %235 : vector<8x32xf32>
    %321 = arith.addf %316, %320 : vector<8x32xf32>
    %322 = vector.extract_strided_slice %15 {offsets = [2, 0, 96], sizes = [1, 8, 96], strides = [1, 1, 1]} : vector<6x8x192xf32> to vector<1x8x96xf32>
    %323 = vector.shape_cast %322 : vector<1x8x96xf32> to vector<8x96xf32>
    %324 = vector.extract_strided_slice %0 {offsets = [2, 0, 0], sizes = [1, 8, 1], strides = [1, 1, 1]} : vector<6x8x1xf32> to vector<1x8x1xf32>
    %325 = vector.shape_cast %324 : vector<1x8x1xf32> to vector<8x1xf32>
    %326 = arith.truncf %275 : vector<8x32xf32> to vector<8x32xbf16>
    %cst_73 = arith.constant dense<0.000000e+00> : vector<8x64xf32>
    %327 = tpu.matmul %326, %20, %cst_73 {dimension_numbers = #tpu.dot_dimension_numbers<[1], [0], [0], [1], [0, 0, 1, 1], [], []>} : vector<8x32xbf16>, vector<32x64xbf16>, vector<8x64xf32> -> vector<8x64xf32>
    %328 = vector.extract_strided_slice %323 {offsets = [0, 0], sizes = [8, 32], strides = [1, 1]} : vector<8x96xf32> to vector<8x32xf32>
    %329 = vector.extract_strided_slice %327 {offsets = [0, 0], sizes = [8, 32], strides = [1, 1]} : vector<8x64xf32> to vector<8x32xf32>
    %330 = arith.addf %328, %329 : vector<8x32xf32>
    %331 = arith.negf %330 : vector<8x32xf32>
    %332 = math.exp %331 : vector<8x32xf32>
    %cst_74 = arith.constant 1.000000e+00 : f32
    %333 = vector.broadcast %cst_74 : f32 to vector<8x32xf32>
    %334 = arith.addf %333, %332 : vector<8x32xf32>
    %335 = arith.divf %333, %334 : vector<8x32xf32>
    %336 = vector.extract_strided_slice %323 {offsets = [0, 32], sizes = [8, 32], strides = [1, 1]} : vector<8x96xf32> to vector<8x32xf32>
    %337 = vector.extract_strided_slice %327 {offsets = [0, 32], sizes = [8, 32], strides = [1, 1]} : vector<8x64xf32> to vector<8x32xf32>
    %338 = arith.addf %336, %337 : vector<8x32xf32>
    %339 = arith.negf %338 : vector<8x32xf32>
    %340 = math.exp %339 : vector<8x32xf32>
    %cst_75 = arith.constant 1.000000e+00 : f32
    %341 = vector.broadcast %cst_75 : f32 to vector<8x32xf32>
    %342 = arith.addf %341, %340 : vector<8x32xf32>
    %343 = arith.divf %341, %342 : vector<8x32xf32>
    %344 = vector.extract_strided_slice %323 {offsets = [0, 64], sizes = [8, 32], strides = [1, 1]} : vector<8x96xf32> to vector<8x32xf32>
    %345 = arith.mulf %343, %275 : vector<8x32xf32>
    %346 = arith.truncf %345 : vector<8x32xf32> to vector<8x32xbf16>
    %cst_76 = arith.constant dense<0.000000e+00> : vector<8x32xf32>
    %347 = tpu.matmul %346, %21, %cst_76 {dimension_numbers = #tpu.dot_dimension_numbers<[1], [0], [0], [1], [0, 0, 1, 1], [], []>} : vector<8x32xbf16>, vector<32x32xbf16>, vector<8x32xf32> -> vector<8x32xf32>
    %348 = arith.addf %344, %347 : vector<8x32xf32>
    %349 = math.tanh %348 : vector<8x32xf32>
    %cst_77 = arith.constant 1.000000e+00 : f32
    %350 = vector.broadcast %cst_77 : f32 to vector<8x32xf32>
    %351 = arith.subf %350, %335 : vector<8x32xf32>
    %352 = arith.mulf %351, %275 : vector<8x32xf32>
    %353 = arith.mulf %335, %349 : vector<8x32xf32>
    %354 = arith.addf %352, %353 : vector<8x32xf32>
    %355 = vector.broadcast %325 : vector<8x1xf32> to vector<8x32xf32>
    %356 = arith.mulf %355, %354 : vector<8x32xf32>
    %cst_78 = arith.constant 1.000000e+00 : f32
    %357 = vector.broadcast %cst_78 : f32 to vector<8x1xf32>
    %358 = arith.subf %357, %325 : vector<8x1xf32>
    %359 = vector.broadcast %358 : vector<8x1xf32> to vector<8x32xf32>
    %360 = arith.mulf %359, %275 : vector<8x32xf32>
    %361 = arith.addf %356, %360 : vector<8x32xf32>
    %c3_79 = arith.constant 3 : index
    %c0_80 = arith.constant 0 : index
    %c0_81 = arith.constant 0 : index
    %362 = vector.load %arg16[%c3_79, %c0_80, %c0_81] : memref<6x8x64xf32, #tpu.memory_space<vmem>>, vector<1x8x32xf32>
    %363 = vector.shape_cast %362 : vector<1x8x32xf32> to vector<8x32xf32>
    %364 = vector.shape_cast %321 : vector<8x32xf32> to vector<1x8x32xf32>
    tpu.vector_store %arg16[%c3_79, %c0_80, %c0_81], %364 {strides = array<i32>} : memref<6x8x64xf32, #tpu.memory_space<vmem>>, vector<1x8x32xf32>,
    %c2_82 = arith.constant 2 : index
    %c0_83 = arith.constant 0 : index
    %c32_84 = arith.constant 32 : index
    %365 = vector.load %arg16[%c2_82, %c0_83, %c32_84] : memref<6x8x64xf32, #tpu.memory_space<vmem>>, vector<1x8x32xf32>
    %366 = vector.shape_cast %365 : vector<1x8x32xf32> to vector<8x32xf32>
    %367 = vector.shape_cast %361 : vector<8x32xf32> to vector<1x8x32xf32>
    tpu.vector_store %arg16[%c2_82, %c0_83, %c32_84], %367 {strides = array<i32>} : memref<6x8x64xf32, #tpu.memory_space<vmem>>, vector<1x8x32xf32>,
    %368 = vector.extract_strided_slice %15 {offsets = [4, 0, 0], sizes = [1, 8, 96], strides = [1, 1, 1]} : vector<6x8x192xf32> to vector<1x8x96xf32>
    %369 = vector.shape_cast %368 : vector<1x8x96xf32> to vector<8x96xf32>
    %370 = vector.extract_strided_slice %0 {offsets = [4, 0, 0], sizes = [1, 8, 1], strides = [1, 1, 1]} : vector<6x8x1xf32> to vector<1x8x1xf32>
    %371 = vector.shape_cast %370 : vector<1x8x1xf32> to vector<8x1xf32>
    %372 = arith.truncf %321 : vector<8x32xf32> to vector<8x32xbf16>
    %cst_85 = arith.constant dense<0.000000e+00> : vector<8x64xf32>
    %373 = tpu.matmul %372, %18, %cst_85 {dimension_numbers = #tpu.dot_dimension_numbers<[1], [0], [0], [1], [0, 0, 1, 1], [], []>} : vector<8x32xbf16>, vector<32x64xbf16>, vector<8x64xf32> -> vector<8x64xf32>
    %374 = vector.extract_strided_slice %369 {offsets = [0, 0], sizes = [8, 32], strides = [1, 1]} : vector<8x96xf32> to vector<8x32xf32>
    %375 = vector.extract_strided_slice %373 {offsets = [0, 0], sizes = [8, 32], strides = [1, 1]} : vector<8x64xf32> to vector<8x32xf32>
    %376 = arith.addf %374, %375 : vector<8x32xf32>
    %377 = arith.negf %376 : vector<8x32xf32>
    %378 = math.exp %377 : vector<8x32xf32>
    %cst_86 = arith.constant 1.000000e+00 : f32
    %379 = vector.broadcast %cst_86 : f32 to vector<8x32xf32>
    %380 = arith.addf %379, %378 : vector<8x32xf32>
    %381 = arith.divf %379, %380 : vector<8x32xf32>
    %382 = vector.extract_strided_slice %369 {offsets = [0, 32], sizes = [8, 32], strides = [1, 1]} : vector<8x96xf32> to vector<8x32xf32>
    %383 = vector.extract_strided_slice %373 {offsets = [0, 32], sizes = [8, 32], strides = [1, 1]} : vector<8x64xf32> to vector<8x32xf32>
    %384 = arith.addf %382, %383 : vector<8x32xf32>
    %385 = arith.negf %384 : vector<8x32xf32>
    %386 = math.exp %385 : vector<8x32xf32>
    %cst_87 = arith.constant 1.000000e+00 : f32
    %387 = vector.broadcast %cst_87 : f32 to vector<8x32xf32>
    %388 = arith.addf %387, %386 : vector<8x32xf32>
    %389 = arith.divf %387, %388 : vector<8x32xf32>
    %390 = vector.extract_strided_slice %369 {offsets = [0, 64], sizes = [8, 32], strides = [1, 1]} : vector<8x96xf32> to vector<8x32xf32>
    %391 = arith.mulf %389, %321 : vector<8x32xf32>
    %392 = arith.truncf %391 : vector<8x32xf32> to vector<8x32xbf16>
    %cst_88 = arith.constant dense<0.000000e+00> : vector<8x32xf32>
    %393 = tpu.matmul %392, %19, %cst_88 {dimension_numbers = #tpu.dot_dimension_numbers<[1], [0], [0], [1], [0, 0, 1, 1], [], []>} : vector<8x32xbf16>, vector<32x32xbf16>, vector<8x32xf32> -> vector<8x32xf32>
    %394 = arith.addf %390, %393 : vector<8x32xf32>
    %395 = math.tanh %394 : vector<8x32xf32>
    %cst_89 = arith.constant 1.000000e+00 : f32
    %396 = vector.broadcast %cst_89 : f32 to vector<8x32xf32>
    %397 = arith.subf %396, %381 : vector<8x32xf32>
    %398 = arith.mulf %397, %321 : vector<8x32xf32>
    %399 = arith.mulf %381, %395 : vector<8x32xf32>
    %400 = arith.addf %398, %399 : vector<8x32xf32>
    %401 = vector.broadcast %371 : vector<8x1xf32> to vector<8x32xf32>
    %402 = arith.mulf %401, %400 : vector<8x32xf32>
    %cst_90 = arith.constant 1.000000e+00 : f32
    %403 = vector.broadcast %cst_90 : f32 to vector<8x1xf32>
    %404 = arith.subf %403, %371 : vector<8x1xf32>
    %405 = vector.broadcast %404 : vector<8x1xf32> to vector<8x32xf32>
    %406 = arith.mulf %405, %321 : vector<8x32xf32>
    %407 = arith.addf %402, %406 : vector<8x32xf32>
    %408 = vector.extract_strided_slice %15 {offsets = [1, 0, 96], sizes = [1, 8, 96], strides = [1, 1, 1]} : vector<6x8x192xf32> to vector<1x8x96xf32>
    %409 = vector.shape_cast %408 : vector<1x8x96xf32> to vector<8x96xf32>
    %410 = vector.extract_strided_slice %0 {offsets = [1, 0, 0], sizes = [1, 8, 1], strides = [1, 1, 1]} : vector<6x8x1xf32> to vector<1x8x1xf32>
    %411 = vector.shape_cast %410 : vector<1x8x1xf32> to vector<8x1xf32>
    %412 = arith.truncf %361 : vector<8x32xf32> to vector<8x32xbf16>
    %cst_91 = arith.constant dense<0.000000e+00> : vector<8x64xf32>
    %413 = tpu.matmul %412, %20, %cst_91 {dimension_numbers = #tpu.dot_dimension_numbers<[1], [0], [0], [1], [0, 0, 1, 1], [], []>} : vector<8x32xbf16>, vector<32x64xbf16>, vector<8x64xf32> -> vector<8x64xf32>
    %414 = vector.extract_strided_slice %409 {offsets = [0, 0], sizes = [8, 32], strides = [1, 1]} : vector<8x96xf32> to vector<8x32xf32>
    %415 = vector.extract_strided_slice %413 {offsets = [0, 0], sizes = [8, 32], strides = [1, 1]} : vector<8x64xf32> to vector<8x32xf32>
    %416 = arith.addf %414, %415 : vector<8x32xf32>
    %417 = arith.negf %416 : vector<8x32xf32>
    %418 = math.exp %417 : vector<8x32xf32>
    %cst_92 = arith.constant 1.000000e+00 : f32
    %419 = vector.broadcast %cst_92 : f32 to vector<8x32xf32>
    %420 = arith.addf %419, %418 : vector<8x32xf32>
    %421 = arith.divf %419, %420 : vector<8x32xf32>
    %422 = vector.extract_strided_slice %409 {offsets = [0, 32], sizes = [8, 32], strides = [1, 1]} : vector<8x96xf32> to vector<8x32xf32>
    %423 = vector.extract_strided_slice %413 {offsets = [0, 32], sizes = [8, 32], strides = [1, 1]} : vector<8x64xf32> to vector<8x32xf32>
    %424 = arith.addf %422, %423 : vector<8x32xf32>
    %425 = arith.negf %424 : vector<8x32xf32>
    %426 = math.exp %425 : vector<8x32xf32>
    %cst_93 = arith.constant 1.000000e+00 : f32
    %427 = vector.broadcast %cst_93 : f32 to vector<8x32xf32>
    %428 = arith.addf %427, %426 : vector<8x32xf32>
    %429 = arith.divf %427, %428 : vector<8x32xf32>
    %430 = vector.extract_strided_slice %409 {offsets = [0, 64], sizes = [8, 32], strides = [1, 1]} : vector<8x96xf32> to vector<8x32xf32>
    %431 = arith.mulf %429, %361 : vector<8x32xf32>
    %432 = arith.truncf %431 : vector<8x32xf32> to vector<8x32xbf16>
    %cst_94 = arith.constant dense<0.000000e+00> : vector<8x32xf32>
    %433 = tpu.matmul %432, %21, %cst_94 {dimension_numbers = #tpu.dot_dimension_numbers<[1], [0], [0], [1], [0, 0, 1, 1], [], []>} : vector<8x32xbf16>, vector<32x32xbf16>, vector<8x32xf32> -> vector<8x32xf32>
    %434 = arith.addf %430, %433 : vector<8x32xf32>
    %435 = math.tanh %434 : vector<8x32xf32>
    %cst_95 = arith.constant 1.000000e+00 : f32
    %436 = vector.broadcast %cst_95 : f32 to vector<8x32xf32>
    %437 = arith.subf %436, %421 : vector<8x32xf32>
    %438 = arith.mulf %437, %361 : vector<8x32xf32>
    %439 = arith.mulf %421, %435 : vector<8x32xf32>
    %440 = arith.addf %438, %439 : vector<8x32xf32>
    %441 = vector.broadcast %411 : vector<8x1xf32> to vector<8x32xf32>
    %442 = arith.mulf %441, %440 : vector<8x32xf32>
    %cst_96 = arith.constant 1.000000e+00 : f32
    %443 = vector.broadcast %cst_96 : f32 to vector<8x1xf32>
    %444 = arith.subf %443, %411 : vector<8x1xf32>
    %445 = vector.broadcast %444 : vector<8x1xf32> to vector<8x32xf32>
    %446 = arith.mulf %445, %361 : vector<8x32xf32>
    %447 = arith.addf %442, %446 : vector<8x32xf32>
    %c4_97 = arith.constant 4 : index
    %c0_98 = arith.constant 0 : index
    %c0_99 = arith.constant 0 : index
    %448 = vector.load %arg16[%c4_97, %c0_98, %c0_99] : memref<6x8x64xf32, #tpu.memory_space<vmem>>, vector<1x8x32xf32>
    %449 = vector.shape_cast %448 : vector<1x8x32xf32> to vector<8x32xf32>
    %450 = vector.shape_cast %407 : vector<8x32xf32> to vector<1x8x32xf32>
    tpu.vector_store %arg16[%c4_97, %c0_98, %c0_99], %450 {strides = array<i32>} : memref<6x8x64xf32, #tpu.memory_space<vmem>>, vector<1x8x32xf32>,
    %c1_100 = arith.constant 1 : index
    %c0_101 = arith.constant 0 : index
    %c32_102 = arith.constant 32 : index
    %451 = vector.load %arg16[%c1_100, %c0_101, %c32_102] : memref<6x8x64xf32, #tpu.memory_space<vmem>>, vector<1x8x32xf32>
    %452 = vector.shape_cast %451 : vector<1x8x32xf32> to vector<8x32xf32>
    %453 = vector.shape_cast %447 : vector<8x32xf32> to vector<1x8x32xf32>
    tpu.vector_store %arg16[%c1_100, %c0_101, %c32_102], %453 {strides = array<i32>} : memref<6x8x64xf32, #tpu.memory_space<vmem>>, vector<1x8x32xf32>,
    %454 = vector.extract_strided_slice %15 {offsets = [5, 0, 0], sizes = [1, 8, 96], strides = [1, 1, 1]} : vector<6x8x192xf32> to vector<1x8x96xf32>
    %455 = vector.shape_cast %454 : vector<1x8x96xf32> to vector<8x96xf32>
    %456 = vector.extract_strided_slice %0 {offsets = [5, 0, 0], sizes = [1, 8, 1], strides = [1, 1, 1]} : vector<6x8x1xf32> to vector<1x8x1xf32>
    %457 = vector.shape_cast %456 : vector<1x8x1xf32> to vector<8x1xf32>
    %458 = arith.truncf %407 : vector<8x32xf32> to vector<8x32xbf16>
    %cst_103 = arith.constant dense<0.000000e+00> : vector<8x64xf32>
    %459 = tpu.matmul %458, %18, %cst_103 {dimension_numbers = #tpu.dot_dimension_numbers<[1], [0], [0], [1], [0, 0, 1, 1], [], []>} : vector<8x32xbf16>, vector<32x64xbf16>, vector<8x64xf32> -> vector<8x64xf32>
    %460 = vector.extract_strided_slice %455 {offsets = [0, 0], sizes = [8, 32], strides = [1, 1]} : vector<8x96xf32> to vector<8x32xf32>
    %461 = vector.extract_strided_slice %459 {offsets = [0, 0], sizes = [8, 32], strides = [1, 1]} : vector<8x64xf32> to vector<8x32xf32>
    %462 = arith.addf %460, %461 : vector<8x32xf32>
    %463 = arith.negf %462 : vector<8x32xf32>
    %464 = math.exp %463 : vector<8x32xf32>
    %cst_104 = arith.constant 1.000000e+00 : f32
    %465 = vector.broadcast %cst_104 : f32 to vector<8x32xf32>
    %466 = arith.addf %465, %464 : vector<8x32xf32>
    %467 = arith.divf %465, %466 : vector<8x32xf32>
    %468 = vector.extract_strided_slice %455 {offsets = [0, 32], sizes = [8, 32], strides = [1, 1]} : vector<8x96xf32> to vector<8x32xf32>
    %469 = vector.extract_strided_slice %459 {offsets = [0, 32], sizes = [8, 32], strides = [1, 1]} : vector<8x64xf32> to vector<8x32xf32>
    %470 = arith.addf %468, %469 : vector<8x32xf32>
    %471 = arith.negf %470 : vector<8x32xf32>
    %472 = math.exp %471 : vector<8x32xf32>
    %cst_105 = arith.constant 1.000000e+00 : f32
    %473 = vector.broadcast %cst_105 : f32 to vector<8x32xf32>
    %474 = arith.addf %473, %472 : vector<8x32xf32>
    %475 = arith.divf %473, %474 : vector<8x32xf32>
    %476 = vector.extract_strided_slice %455 {offsets = [0, 64], sizes = [8, 32], strides = [1, 1]} : vector<8x96xf32> to vector<8x32xf32>
    %477 = arith.mulf %475, %407 : vector<8x32xf32>
    %478 = arith.truncf %477 : vector<8x32xf32> to vector<8x32xbf16>
    %cst_106 = arith.constant dense<0.000000e+00> : vector<8x32xf32>
    %479 = tpu.matmul %478, %19, %cst_106 {dimension_numbers = #tpu.dot_dimension_numbers<[1], [0], [0], [1], [0, 0, 1, 1], [], []>} : vector<8x32xbf16>, vector<32x32xbf16>, vector<8x32xf32> -> vector<8x32xf32>
    %480 = arith.addf %476, %479 : vector<8x32xf32>
    %481 = math.tanh %480 : vector<8x32xf32>
    %cst_107 = arith.constant 1.000000e+00 : f32
    %482 = vector.broadcast %cst_107 : f32 to vector<8x32xf32>
    %483 = arith.subf %482, %467 : vector<8x32xf32>
    %484 = arith.mulf %483, %407 : vector<8x32xf32>
    %485 = arith.mulf %467, %481 : vector<8x32xf32>
    %486 = arith.addf %484, %485 : vector<8x32xf32>
    %487 = vector.broadcast %457 : vector<8x1xf32> to vector<8x32xf32>
    %488 = arith.mulf %487, %486 : vector<8x32xf32>
    %cst_108 = arith.constant 1.000000e+00 : f32
    %489 = vector.broadcast %cst_108 : f32 to vector<8x1xf32>
    %490 = arith.subf %489, %457 : vector<8x1xf32>
    %491 = vector.broadcast %490 : vector<8x1xf32> to vector<8x32xf32>
    %492 = arith.mulf %491, %407 : vector<8x32xf32>
    %493 = arith.addf %488, %492 : vector<8x32xf32>
    %494 = vector.extract_strided_slice %15 {offsets = [0, 0, 96], sizes = [1, 8, 96], strides = [1, 1, 1]} : vector<6x8x192xf32> to vector<1x8x96xf32>
    %495 = vector.shape_cast %494 : vector<1x8x96xf32> to vector<8x96xf32>
    %496 = vector.extract_strided_slice %0 {offsets = [0, 0, 0], sizes = [1, 8, 1], strides = [1, 1, 1]} : vector<6x8x1xf32> to vector<1x8x1xf32>
    %497 = vector.shape_cast %496 : vector<1x8x1xf32> to vector<8x1xf32>
    %498 = arith.truncf %447 : vector<8x32xf32> to vector<8x32xbf16>
    %cst_109 = arith.constant dense<0.000000e+00> : vector<8x64xf32>
    %499 = tpu.matmul %498, %20, %cst_109 {dimension_numbers = #tpu.dot_dimension_numbers<[1], [0], [0], [1], [0, 0, 1, 1], [], []>} : vector<8x32xbf16>, vector<32x64xbf16>, vector<8x64xf32> -> vector<8x64xf32>
    %500 = vector.extract_strided_slice %495 {offsets = [0, 0], sizes = [8, 32], strides = [1, 1]} : vector<8x96xf32> to vector<8x32xf32>
    %501 = vector.extract_strided_slice %499 {offsets = [0, 0], sizes = [8, 32], strides = [1, 1]} : vector<8x64xf32> to vector<8x32xf32>
    %502 = arith.addf %500, %501 : vector<8x32xf32>
    %503 = arith.negf %502 : vector<8x32xf32>
    %504 = math.exp %503 : vector<8x32xf32>
    %cst_110 = arith.constant 1.000000e+00 : f32
    %505 = vector.broadcast %cst_110 : f32 to vector<8x32xf32>
    %506 = arith.addf %505, %504 : vector<8x32xf32>
    %507 = arith.divf %505, %506 : vector<8x32xf32>
    %508 = vector.extract_strided_slice %495 {offsets = [0, 32], sizes = [8, 32], strides = [1, 1]} : vector<8x96xf32> to vector<8x32xf32>
    %509 = vector.extract_strided_slice %499 {offsets = [0, 32], sizes = [8, 32], strides = [1, 1]} : vector<8x64xf32> to vector<8x32xf32>
    %510 = arith.addf %508, %509 : vector<8x32xf32>
    %511 = arith.negf %510 : vector<8x32xf32>
    %512 = math.exp %511 : vector<8x32xf32>
    %cst_111 = arith.constant 1.000000e+00 : f32
    %513 = vector.broadcast %cst_111 : f32 to vector<8x32xf32>
    %514 = arith.addf %513, %512 : vector<8x32xf32>
    %515 = arith.divf %513, %514 : vector<8x32xf32>
    %516 = vector.extract_strided_slice %495 {offsets = [0, 64], sizes = [8, 32], strides = [1, 1]} : vector<8x96xf32> to vector<8x32xf32>
    %517 = arith.mulf %515, %447 : vector<8x32xf32>
    %518 = arith.truncf %517 : vector<8x32xf32> to vector<8x32xbf16>
    %cst_112 = arith.constant dense<0.000000e+00> : vector<8x32xf32>
    %519 = tpu.matmul %518, %21, %cst_112 {dimension_numbers = #tpu.dot_dimension_numbers<[1], [0], [0], [1], [0, 0, 1, 1], [], []>} : vector<8x32xbf16>, vector<32x32xbf16>, vector<8x32xf32> -> vector<8x32xf32>
    %520 = arith.addf %516, %519 : vector<8x32xf32>
    %521 = math.tanh %520 : vector<8x32xf32>
    %cst_113 = arith.constant 1.000000e+00 : f32
    %522 = vector.broadcast %cst_113 : f32 to vector<8x32xf32>
    %523 = arith.subf %522, %507 : vector<8x32xf32>
    %524 = arith.mulf %523, %447 : vector<8x32xf32>
    %525 = arith.mulf %507, %521 : vector<8x32xf32>
    %526 = arith.addf %524, %525 : vector<8x32xf32>
    %527 = vector.broadcast %497 : vector<8x1xf32> to vector<8x32xf32>
    %528 = arith.mulf %527, %526 : vector<8x32xf32>
    %cst_114 = arith.constant 1.000000e+00 : f32
    %529 = vector.broadcast %cst_114 : f32 to vector<8x1xf32>
    %530 = arith.subf %529, %497 : vector<8x1xf32>
    %531 = vector.broadcast %530 : vector<8x1xf32> to vector<8x32xf32>
    %532 = arith.mulf %531, %447 : vector<8x32xf32>
    %533 = arith.addf %528, %532 : vector<8x32xf32>
    %c5_115 = arith.constant 5 : index
    %c0_116 = arith.constant 0 : index
    %c0_117 = arith.constant 0 : index
    %534 = vector.load %arg16[%c5_115, %c0_116, %c0_117] : memref<6x8x64xf32, #tpu.memory_space<vmem>>, vector<1x8x32xf32>
    %535 = vector.shape_cast %534 : vector<1x8x32xf32> to vector<8x32xf32>
    %536 = vector.shape_cast %493 : vector<8x32xf32> to vector<1x8x32xf32>
    tpu.vector_store %arg16[%c5_115, %c0_116, %c0_117], %536 {strides = array<i32>} : memref<6x8x64xf32, #tpu.memory_space<vmem>>, vector<1x8x32xf32>,
    %c0_118 = arith.constant 0 : index
    %c0_119 = arith.constant 0 : index
    %c32_120 = arith.constant 32 : index
    %537 = vector.load %arg16[%c0_118, %c0_119, %c32_120] : memref<6x8x64xf32, #tpu.memory_space<vmem>>, vector<1x8x32xf32>
    %538 = vector.shape_cast %537 : vector<1x8x32xf32> to vector<8x32xf32>
    %539 = vector.shape_cast %533 : vector<8x32xf32> to vector<1x8x32xf32>
    tpu.vector_store %arg16[%c0_118, %c0_119, %c32_120], %539 {strides = array<i32>} : memref<6x8x64xf32, #tpu.memory_space<vmem>>, vector<1x8x32xf32>,
    %c0_121 = arith.constant 0 : index
    %c0_122 = arith.constant 0 : index
    %c0_123 = arith.constant 0 : index
    %540 = vector.load %arg16[%c0_121, %c0_122, %c0_123] : memref<6x8x64xf32, #tpu.memory_space<vmem>>, vector<6x8x64xf32>
    %c0_124 = arith.constant 0 : index
    %c0_125 = arith.constant 0 : index
    %541 = vector.load %arg14[%c0_124, %c0_125] : memref<1x224xf32, #tpu.memory_space<vmem>>, vector<1x224xf32>
    %542 = vector.extract_strided_slice %541 {offsets = [0, 0], sizes = [1, 32], strides = [1, 1]} : vector<1x224xf32> to vector<1x32xf32>
    %543 = vector.extract_strided_slice %541 {offsets = [0, 32], sizes = [1, 32], strides = [1, 1]} : vector<1x224xf32> to vector<1x32xf32>
    %544 = vector.extract_strided_slice %541 {offsets = [0, 64], sizes = [1, 32], strides = [1, 1]} : vector<1x224xf32> to vector<1x32xf32>
    %545 = vector.extract_strided_slice %541 {offsets = [0, 96], sizes = [1, 128], strides = [1, 1]} : vector<1x224xf32> to vector<1x128xf32>
    %c0_126 = arith.constant 0 : index
    %c0_127 = arith.constant 0 : index
    %546 = vector.load %arg12[%c0_126, %c0_127] : memref<32x160xbf16, #tpu.memory_space<vmem>>, vector<32x160xbf16>
    %547 = vector.extract_strided_slice %546 {offsets = [0, 0], sizes = [32, 96], strides = [1, 1]} : vector<32x160xbf16> to vector<32x96xbf16>
    %548 = vector.extract_strided_slice %546 {offsets = [0, 96], sizes = [32, 32], strides = [1, 1]} : vector<32x160xbf16> to vector<32x32xbf16>
    %549 = vector.extract_strided_slice %546 {offsets = [0, 128], sizes = [32, 32], strides = [1, 1]} : vector<32x160xbf16> to vector<32x32xbf16>
    %c0_128 = arith.constant 0 : index
    %c0_129 = arith.constant 0 : index
    %550 = vector.load %arg13[%c0_128, %c0_129] : memref<64x128xbf16, #tpu.memory_space<vmem>>, vector<64x128xbf16>
    %c0_130 = arith.constant 0 : index
    %c0_131 = arith.constant 0 : index
    %551 = vector.load %arg9[%c0_130, %c0_131] : memref<32x32xbf16, #tpu.memory_space<vmem>>, vector<32x32xbf16>
    %552 = arith.truncf %533 : vector<8x32xf32> to vector<8x32xbf16>
    %cst_132 = arith.constant dense<0.000000e+00> : vector<8x32xf32>
    %553 = tpu.matmul %552, %551, %cst_132 {dimension_numbers = #tpu.dot_dimension_numbers<[1], [0], [0], [1], [0, 0, 1, 1], [], []>} : vector<8x32xbf16>, vector<32x32xbf16>, vector<8x32xf32> -> vector<8x32xf32>
    %554 = vector.broadcast %542 : vector<1x32xf32> to vector<8x32xf32>
    %555 = arith.addf %553, %554 : vector<8x32xf32>
    %556 = math.tanh %555 : vector<8x32xf32>
    %557 = vector.shape_cast %540 : vector<6x8x64xf32> to vector<48x64xf32>
    %c0_133 = arith.constant 0 : index
    %c0_134 = arith.constant 0 : index
    %558 = vector.load %arg10[%c0_133, %c0_134] : memref<64x32xbf16, #tpu.memory_space<vmem>>, vector<64x32xbf16>
    %559 = arith.truncf %557 : vector<48x64xf32> to vector<48x64xbf16>
    %cst_135 = arith.constant dense<0.000000e+00> : vector<48x32xf32>
    %560 = tpu.matmul %559, %558, %cst_135 {dimension_numbers = #tpu.dot_dimension_numbers<[1], [0], [0], [1], [0, 0, 1, 1], [], []>} : vector<48x64xbf16>, vector<64x32xbf16>, vector<48x32xf32> -> vector<48x32xf32>
    %561 = vector.broadcast %543 : vector<1x32xf32> to vector<48x32xf32>
    %562 = arith.addf %560, %561 : vector<48x32xf32>
    %563 = vector.shape_cast %562 : vector<48x32xf32> to vector<6x8x32xf32>
    %c0_136 = arith.constant 0 : index
    %c0_137 = arith.constant 0 : index
    %564 = vector.load %arg1[%c0_136, %c0_137] : memref<40x1xi32, #tpu.memory_space<vmem>>, vector<40x1xi32>
    %565 = tpu.iota {dimensions = array<i32: 1>} : vector<40x60xi32>
    %566 = vector.broadcast %564 : vector<40x1xi32> to vector<40x60xi32>
    %567 = arith.cmpi eq, %566, %565 : vector<40x60xi32>
    %cst_138 = arith.constant 1.000000e+00 : f32
    %cst_139 = arith.constant 0.000000e+00 : f32
    %568 = vector.broadcast %cst_138 : f32 to vector<40x60xf32>
    %569 = vector.broadcast %cst_139 : f32 to vector<40x60xf32>
    %570 = arith.select %567, %568, %569 : vector<40x60xi1>, vector<40x60xf32>
    %571 = arith.truncf %570 : vector<40x60xf32> to vector<40x60xbf16>
    %c0_140 = arith.constant 0 : index
    %c0_141 = arith.constant 0 : index
    %572 = vector.load %arg11[%c0_140, %c0_141] : memref<60x128xbf16, #tpu.memory_space<vmem>>, vector<60x128xbf16>
    %cst_142 = arith.constant dense<0.000000e+00> : vector<40x128xf32>
    %573 = tpu.matmul %571, %572, %cst_142 {dimension_numbers = #tpu.dot_dimension_numbers<[1], [0], [0], [1], [0, 0, 1, 1], [], []>} : vector<40x60xbf16>, vector<60x128xbf16>, vector<40x128xf32> -> vector<40x128xf32>
    %574 = vector.broadcast %545 : vector<1x128xf32> to vector<40x128xf32>
    %575 = arith.addf %573, %574 : vector<40x128xf32>
    %576 = vector.shape_cast %575 : vector<40x128xf32> to vector<5x8x128xf32>
    %577 = vector.shape_cast %544 : vector<1x32xf32> to vector<1x1x32xf32>
    %578 = vector.shape_cast %577 : vector<1x1x32xf32> to vector<1x1x32xf32>
    %579 = vector.broadcast %578 : vector<1x1x32xf32> to vector<6x8x32xf32>
    %580 = vector.extract_strided_slice %576 {offsets = [0, 0, 0], sizes = [1, 8, 128], strides = [1, 1, 1]} : vector<5x8x128xf32> to vector<1x8x128xf32>
    %581 = vector.shape_cast %580 : vector<1x8x128xf32> to vector<8x128xf32>
    %582 = vector.extract_strided_slice %1 {offsets = [0, 0, 0], sizes = [1, 8, 1], strides = [1, 1, 1]} : vector<5x8x1xf32> to vector<1x8x1xf32>
    %583 = vector.shape_cast %582 : vector<1x8x1xf32> to vector<8x1xf32>
    %584 = arith.truncf %556 : vector<8x32xf32> to vector<8x32xbf16>
    %cst_143 = arith.constant dense<0.000000e+00> : vector<8x96xf32>
    %585 = tpu.matmul %584, %547, %cst_143 {dimension_numbers = #tpu.dot_dimension_numbers<[1], [0], [0], [1], [0, 0, 1, 1], [], []>} : vector<8x32xbf16>, vector<32x96xbf16>, vector<8x96xf32> -> vector<8x96xf32>
    %586 = vector.extract_strided_slice %585 {offsets = [0, 0], sizes = [8, 32], strides = [1, 1]} : vector<8x96xf32> to vector<8x32xf32>
    %587 = vector.extract_strided_slice %585 {offsets = [0, 32], sizes = [8, 64], strides = [1, 1]} : vector<8x96xf32> to vector<8x64xf32>
    %588 = vector.shape_cast %586 : vector<8x32xf32> to vector<1x8x32xf32>
    %589 = vector.broadcast %588 : vector<1x8x32xf32> to vector<6x8x32xf32>
    %590 = arith.addf %589, %563 : vector<6x8x32xf32>
    %591 = math.tanh %590 : vector<6x8x32xf32>
    %592 = arith.mulf %591, %579 : vector<6x8x32xf32>
    %cst_144 = arith.constant dense<0.000000e+00> : vector<6x8xf32>
    %593 = vector.multi_reduction <add>, %592, %cst_144 [2] : vector<6x8x32xf32> to vector<6x8xf32>
    %594 = vector.shape_cast %593 : vector<6x8xf32> to vector<6x8x1xf32>
    %cst_145 = arith.constant dense<0xFF800000> : vector<8x1xf32>
    %595 = vector.multi_reduction <maximumf>, %594, %cst_145 [0] : vector<6x8x1xf32> to vector<8x1xf32>
    %596 = vector.shape_cast %595 : vector<8x1xf32> to vector<1x8x1xf32>
    %597 = vector.broadcast %596 : vector<1x8x1xf32> to vector<6x8x1xf32>
    %598 = arith.subf %594, %597 : vector<6x8x1xf32>
    %599 = math.exp %598 : vector<6x8x1xf32>
    %600 = arith.mulf %599, %0 : vector<6x8x1xf32>
    %cst_146 = arith.constant dense<0.000000e+00> : vector<8x1xf32>
    %601 = vector.multi_reduction <add>, %600, %cst_146 [0] : vector<6x8x1xf32> to vector<8x1xf32>
    %602 = vector.shape_cast %601 : vector<8x1xf32> to vector<1x8x1xf32>
    %603 = tpu.reciprocal %602 {approx = true} : vector<1x8x1xf32> -> vector<1x8x1xf32>
    %604 = vector.broadcast %603 : vector<1x8x1xf32> to vector<6x8x1xf32>
    %605 = arith.mulf %600, %604 : vector<6x8x1xf32>
    %606 = vector.broadcast %605 : vector<6x8x1xf32> to vector<6x8x64xf32>
    %607 = arith.mulf %606, %540 : vector<6x8x64xf32>
    %cst_147 = arith.constant dense<0.000000e+00> : vector<8x64xf32>
    %608 = vector.multi_reduction <add>, %607, %cst_147 [0] : vector<6x8x64xf32> to vector<8x64xf32>
    %609 = arith.truncf %608 : vector<8x64xf32> to vector<8x64xbf16>
    %cst_148 = arith.constant dense<0.000000e+00> : vector<8x128xf32>
    %610 = tpu.matmul %609, %550, %cst_148 {dimension_numbers = #tpu.dot_dimension_numbers<[1], [0], [0], [1], [0, 0, 1, 1], [], []>} : vector<8x64xbf16>, vector<64x128xbf16>, vector<8x128xf32> -> vector<8x128xf32>
    %611 = vector.extract_strided_slice %581 {offsets = [0, 0], sizes = [8, 32], strides = [1, 1]} : vector<8x128xf32> to vector<8x32xf32>
    %612 = vector.extract_strided_slice %587 {offsets = [0, 0], sizes = [8, 32], strides = [1, 1]} : vector<8x64xf32> to vector<8x32xf32>
    %613 = arith.addf %611, %612 : vector<8x32xf32>
    %614 = vector.extract_strided_slice %610 {offsets = [0, 0], sizes = [8, 32], strides = [1, 1]} : vector<8x128xf32> to vector<8x32xf32>
    %615 = arith.addf %613, %614 : vector<8x32xf32>
    %616 = arith.negf %615 : vector<8x32xf32>
    %617 = math.exp %616 : vector<8x32xf32>
    %cst_149 = arith.constant 1.000000e+00 : f32
    %618 = vector.broadcast %cst_149 : f32 to vector<8x32xf32>
    %619 = arith.addf %618, %617 : vector<8x32xf32>
    %620 = arith.divf %618, %619 : vector<8x32xf32>
    %621 = vector.extract_strided_slice %581 {offsets = [0, 32], sizes = [8, 32], strides = [1, 1]} : vector<8x128xf32> to vector<8x32xf32>
    %622 = vector.extract_strided_slice %587 {offsets = [0, 32], sizes = [8, 32], strides = [1, 1]} : vector<8x64xf32> to vector<8x32xf32>
    %623 = arith.addf %621, %622 : vector<8x32xf32>
    %624 = vector.extract_strided_slice %610 {offsets = [0, 32], sizes = [8, 32], strides = [1, 1]} : vector<8x128xf32> to vector<8x32xf32>
    %625 = arith.addf %623, %624 : vector<8x32xf32>
    %626 = arith.negf %625 : vector<8x32xf32>
    %627 = math.exp %626 : vector<8x32xf32>
    %cst_150 = arith.constant 1.000000e+00 : f32
    %628 = vector.broadcast %cst_150 : f32 to vector<8x32xf32>
    %629 = arith.addf %628, %627 : vector<8x32xf32>
    %630 = arith.divf %628, %629 : vector<8x32xf32>
    %631 = vector.extract_strided_slice %581 {offsets = [0, 64], sizes = [8, 32], strides = [1, 1]} : vector<8x128xf32> to vector<8x32xf32>
    %632 = arith.mulf %630, %556 : vector<8x32xf32>
    %633 = arith.truncf %632 : vector<8x32xf32> to vector<8x32xbf16>
    %cst_151 = arith.constant dense<0.000000e+00> : vector<8x32xf32>
    %634 = tpu.matmul %633, %548, %cst_151 {dimension_numbers = #tpu.dot_dimension_numbers<[1], [0], [0], [1], [0, 0, 1, 1], [], []>} : vector<8x32xbf16>, vector<32x32xbf16>, vector<8x32xf32> -> vector<8x32xf32>
    %635 = arith.addf %631, %634 : vector<8x32xf32>
    %636 = vector.extract_strided_slice %610 {offsets = [0, 64], sizes = [8, 32], strides = [1, 1]} : vector<8x128xf32> to vector<8x32xf32>
    %637 = arith.addf %635, %636 : vector<8x32xf32>
    %638 = math.tanh %637 : vector<8x32xf32>
    %cst_152 = arith.constant 1.000000e+00 : f32
    %639 = vector.broadcast %cst_152 : f32 to vector<8x32xf32>
    %640 = arith.subf %639, %620 : vector<8x32xf32>
    %641 = arith.mulf %640, %556 : vector<8x32xf32>
    %642 = arith.mulf %620, %638 : vector<8x32xf32>
    %643 = arith.addf %641, %642 : vector<8x32xf32>
    %644 = vector.broadcast %583 : vector<8x1xf32> to vector<8x32xf32>
    %645 = arith.mulf %644, %643 : vector<8x32xf32>
    %cst_153 = arith.constant 1.000000e+00 : f32
    %646 = vector.broadcast %cst_153 : f32 to vector<8x1xf32>
    %647 = arith.subf %646, %583 : vector<8x1xf32>
    %648 = vector.broadcast %647 : vector<8x1xf32> to vector<8x32xf32>
    %649 = arith.mulf %648, %556 : vector<8x32xf32>
    %650 = arith.addf %645, %649 : vector<8x32xf32>
    %c0_154 = arith.constant 0 : index
    %c0_155 = arith.constant 0 : index
    %651 = vector.load %arg17[%c0_154, %c0_155] : memref<40x32xf32, #tpu.memory_space<vmem>>, vector<8x32xf32>
    tpu.vector_store %arg17[%c0_154, %c0_155], %650 {strides = array<i32>} : memref<40x32xf32, #tpu.memory_space<vmem>>, vector<8x32xf32>,
    %652 = vector.extract_strided_slice %610 {offsets = [0, 96], sizes = [8, 32], strides = [1, 1]} : vector<8x128xf32> to vector<8x32xf32>
    %c0_156 = arith.constant 0 : index
    %c0_157 = arith.constant 0 : index
    %653 = vector.load %arg18[%c0_156, %c0_157] : memref<40x32xf32, #tpu.memory_space<vmem>>, vector<8x32xf32>
    tpu.vector_store %arg18[%c0_156, %c0_157], %652 {strides = array<i32>} : memref<40x32xf32, #tpu.memory_space<vmem>>, vector<8x32xf32>,
    %654 = vector.extract_strided_slice %576 {offsets = [1, 0, 0], sizes = [1, 8, 128], strides = [1, 1, 1]} : vector<5x8x128xf32> to vector<1x8x128xf32>
    %655 = vector.shape_cast %654 : vector<1x8x128xf32> to vector<8x128xf32>
    %656 = vector.extract_strided_slice %1 {offsets = [1, 0, 0], sizes = [1, 8, 1], strides = [1, 1, 1]} : vector<5x8x1xf32> to vector<1x8x1xf32>
    %657 = vector.shape_cast %656 : vector<1x8x1xf32> to vector<8x1xf32>
    %658 = arith.truncf %650 : vector<8x32xf32> to vector<8x32xbf16>
    %cst_158 = arith.constant dense<0.000000e+00> : vector<8x96xf32>
    %659 = tpu.matmul %658, %547, %cst_158 {dimension_numbers = #tpu.dot_dimension_numbers<[1], [0], [0], [1], [0, 0, 1, 1], [], []>} : vector<8x32xbf16>, vector<32x96xbf16>, vector<8x96xf32> -> vector<8x96xf32>
    %660 = vector.extract_strided_slice %659 {offsets = [0, 0], sizes = [8, 32], strides = [1, 1]} : vector<8x96xf32> to vector<8x32xf32>
    %661 = vector.extract_strided_slice %659 {offsets = [0, 32], sizes = [8, 64], strides = [1, 1]} : vector<8x96xf32> to vector<8x64xf32>
    %662 = vector.shape_cast %660 : vector<8x32xf32> to vector<1x8x32xf32>
    %663 = vector.broadcast %662 : vector<1x8x32xf32> to vector<6x8x32xf32>
    %664 = arith.addf %663, %563 : vector<6x8x32xf32>
    %665 = math.tanh %664 : vector<6x8x32xf32>
    %666 = arith.mulf %665, %579 : vector<6x8x32xf32>
    %cst_159 = arith.constant dense<0.000000e+00> : vector<6x8xf32>
    %667 = vector.multi_reduction <add>, %666, %cst_159 [2] : vector<6x8x32xf32> to vector<6x8xf32>
    %668 = vector.shape_cast %667 : vector<6x8xf32> to vector<6x8x1xf32>
    %cst_160 = arith.constant dense<0xFF800000> : vector<8x1xf32>
    %669 = vector.multi_reduction <maximumf>, %668, %cst_160 [0] : vector<6x8x1xf32> to vector<8x1xf32>
    %670 = vector.shape_cast %669 : vector<8x1xf32> to vector<1x8x1xf32>
    %671 = vector.broadcast %670 : vector<1x8x1xf32> to vector<6x8x1xf32>
    %672 = arith.subf %668, %671 : vector<6x8x1xf32>
    %673 = math.exp %672 : vector<6x8x1xf32>
    %674 = arith.mulf %673, %0 : vector<6x8x1xf32>
    %cst_161 = arith.constant dense<0.000000e+00> : vector<8x1xf32>
    %675 = vector.multi_reduction <add>, %674, %cst_161 [0] : vector<6x8x1xf32> to vector<8x1xf32>
    %676 = vector.shape_cast %675 : vector<8x1xf32> to vector<1x8x1xf32>
    %677 = tpu.reciprocal %676 {approx = true} : vector<1x8x1xf32> -> vector<1x8x1xf32>
    %678 = vector.broadcast %677 : vector<1x8x1xf32> to vector<6x8x1xf32>
    %679 = arith.mulf %674, %678 : vector<6x8x1xf32>
    %680 = vector.broadcast %679 : vector<6x8x1xf32> to vector<6x8x64xf32>
    %681 = arith.mulf %680, %540 : vector<6x8x64xf32>
    %cst_162 = arith.constant dense<0.000000e+00> : vector<8x64xf32>
    %682 = vector.multi_reduction <add>, %681, %cst_162 [0] : vector<6x8x64xf32> to vector<8x64xf32>
    %683 = arith.truncf %682 : vector<8x64xf32> to vector<8x64xbf16>
    %cst_163 = arith.constant dense<0.000000e+00> : vector<8x128xf32>
    %684 = tpu.matmul %683, %550, %cst_163 {dimension_numbers = #tpu.dot_dimension_numbers<[1], [0], [0], [1], [0, 0, 1, 1], [], []>} : vector<8x64xbf16>, vector<64x128xbf16>, vector<8x128xf32> -> vector<8x128xf32>
    %685 = vector.extract_strided_slice %655 {offsets = [0, 0], sizes = [8, 32], strides = [1, 1]} : vector<8x128xf32> to vector<8x32xf32>
    %686 = vector.extract_strided_slice %661 {offsets = [0, 0], sizes = [8, 32], strides = [1, 1]} : vector<8x64xf32> to vector<8x32xf32>
    %687 = arith.addf %685, %686 : vector<8x32xf32>
    %688 = vector.extract_strided_slice %684 {offsets = [0, 0], sizes = [8, 32], strides = [1, 1]} : vector<8x128xf32> to vector<8x32xf32>
    %689 = arith.addf %687, %688 : vector<8x32xf32>
    %690 = arith.negf %689 : vector<8x32xf32>
    %691 = math.exp %690 : vector<8x32xf32>
    %cst_164 = arith.constant 1.000000e+00 : f32
    %692 = vector.broadcast %cst_164 : f32 to vector<8x32xf32>
    %693 = arith.addf %692, %691 : vector<8x32xf32>
    %694 = arith.divf %692, %693 : vector<8x32xf32>
    %695 = vector.extract_strided_slice %655 {offsets = [0, 32], sizes = [8, 32], strides = [1, 1]} : vector<8x128xf32> to vector<8x32xf32>
    %696 = vector.extract_strided_slice %661 {offsets = [0, 32], sizes = [8, 32], strides = [1, 1]} : vector<8x64xf32> to vector<8x32xf32>
    %697 = arith.addf %695, %696 : vector<8x32xf32>
    %698 = vector.extract_strided_slice %684 {offsets = [0, 32], sizes = [8, 32], strides = [1, 1]} : vector<8x128xf32> to vector<8x32xf32>
    %699 = arith.addf %697, %698 : vector<8x32xf32>
    %700 = arith.negf %699 : vector<8x32xf32>
    %701 = math.exp %700 : vector<8x32xf32>
    %cst_165 = arith.constant 1.000000e+00 : f32
    %702 = vector.broadcast %cst_165 : f32 to vector<8x32xf32>
    %703 = arith.addf %702, %701 : vector<8x32xf32>
    %704 = arith.divf %702, %703 : vector<8x32xf32>
    %705 = vector.extract_strided_slice %655 {offsets = [0, 64], sizes = [8, 32], strides = [1, 1]} : vector<8x128xf32> to vector<8x32xf32>
    %706 = arith.mulf %704, %650 : vector<8x32xf32>
    %707 = arith.truncf %706 : vector<8x32xf32> to vector<8x32xbf16>
    %cst_166 = arith.constant dense<0.000000e+00> : vector<8x32xf32>
    %708 = tpu.matmul %707, %548, %cst_166 {dimension_numbers = #tpu.dot_dimension_numbers<[1], [0], [0], [1], [0, 0, 1, 1], [], []>} : vector<8x32xbf16>, vector<32x32xbf16>, vector<8x32xf32> -> vector<8x32xf32>
    %709 = arith.addf %705, %708 : vector<8x32xf32>
    %710 = vector.extract_strided_slice %684 {offsets = [0, 64], sizes = [8, 32], strides = [1, 1]} : vector<8x128xf32> to vector<8x32xf32>
    %711 = arith.addf %709, %710 : vector<8x32xf32>
    %712 = math.tanh %711 : vector<8x32xf32>
    %cst_167 = arith.constant 1.000000e+00 : f32
    %713 = vector.broadcast %cst_167 : f32 to vector<8x32xf32>
    %714 = arith.subf %713, %694 : vector<8x32xf32>
    %715 = arith.mulf %714, %650 : vector<8x32xf32>
    %716 = arith.mulf %694, %712 : vector<8x32xf32>
    %717 = arith.addf %715, %716 : vector<8x32xf32>
    %718 = vector.broadcast %657 : vector<8x1xf32> to vector<8x32xf32>
    %719 = arith.mulf %718, %717 : vector<8x32xf32>
    %cst_168 = arith.constant 1.000000e+00 : f32
    %720 = vector.broadcast %cst_168 : f32 to vector<8x1xf32>
    %721 = arith.subf %720, %657 : vector<8x1xf32>
    %722 = vector.broadcast %721 : vector<8x1xf32> to vector<8x32xf32>
    %723 = arith.mulf %722, %650 : vector<8x32xf32>
    %724 = arith.addf %719, %723 : vector<8x32xf32>
    %c8 = arith.constant 8 : index
    %c0_169 = arith.constant 0 : index
    %725 = vector.load %arg17[%c8, %c0_169] : memref<40x32xf32, #tpu.memory_space<vmem>>, vector<8x32xf32>
    tpu.vector_store %arg17[%c8, %c0_169], %724 {strides = array<i32>} : memref<40x32xf32, #tpu.memory_space<vmem>>, vector<8x32xf32>,
    %726 = vector.extract_strided_slice %684 {offsets = [0, 96], sizes = [8, 32], strides = [1, 1]} : vector<8x128xf32> to vector<8x32xf32>
    %c8_170 = arith.constant 8 : index
    %c0_171 = arith.constant 0 : index
    %727 = vector.load %arg18[%c8_170, %c0_171] : memref<40x32xf32, #tpu.memory_space<vmem>>, vector<8x32xf32>
    tpu.vector_store %arg18[%c8_170, %c0_171], %726 {strides = array<i32>} : memref<40x32xf32, #tpu.memory_space<vmem>>, vector<8x32xf32>,
    %728 = vector.extract_strided_slice %576 {offsets = [2, 0, 0], sizes = [1, 8, 128], strides = [1, 1, 1]} : vector<5x8x128xf32> to vector<1x8x128xf32>
    %729 = vector.shape_cast %728 : vector<1x8x128xf32> to vector<8x128xf32>
    %730 = vector.extract_strided_slice %1 {offsets = [2, 0, 0], sizes = [1, 8, 1], strides = [1, 1, 1]} : vector<5x8x1xf32> to vector<1x8x1xf32>
    %731 = vector.shape_cast %730 : vector<1x8x1xf32> to vector<8x1xf32>
    %732 = arith.truncf %724 : vector<8x32xf32> to vector<8x32xbf16>
    %cst_172 = arith.constant dense<0.000000e+00> : vector<8x96xf32>
    %733 = tpu.matmul %732, %547, %cst_172 {dimension_numbers = #tpu.dot_dimension_numbers<[1], [0], [0], [1], [0, 0, 1, 1], [], []>} : vector<8x32xbf16>, vector<32x96xbf16>, vector<8x96xf32> -> vector<8x96xf32>
    %734 = vector.extract_strided_slice %733 {offsets = [0, 0], sizes = [8, 32], strides = [1, 1]} : vector<8x96xf32> to vector<8x32xf32>
    %735 = vector.extract_strided_slice %733 {offsets = [0, 32], sizes = [8, 64], strides = [1, 1]} : vector<8x96xf32> to vector<8x64xf32>
    %736 = vector.shape_cast %734 : vector<8x32xf32> to vector<1x8x32xf32>
    %737 = vector.broadcast %736 : vector<1x8x32xf32> to vector<6x8x32xf32>
    %738 = arith.addf %737, %563 : vector<6x8x32xf32>
    %739 = math.tanh %738 : vector<6x8x32xf32>
    %740 = arith.mulf %739, %579 : vector<6x8x32xf32>
    %cst_173 = arith.constant dense<0.000000e+00> : vector<6x8xf32>
    %741 = vector.multi_reduction <add>, %740, %cst_173 [2] : vector<6x8x32xf32> to vector<6x8xf32>
    %742 = vector.shape_cast %741 : vector<6x8xf32> to vector<6x8x1xf32>
    %cst_174 = arith.constant dense<0xFF800000> : vector<8x1xf32>
    %743 = vector.multi_reduction <maximumf>, %742, %cst_174 [0] : vector<6x8x1xf32> to vector<8x1xf32>
    %744 = vector.shape_cast %743 : vector<8x1xf32> to vector<1x8x1xf32>
    %745 = vector.broadcast %744 : vector<1x8x1xf32> to vector<6x8x1xf32>
    %746 = arith.subf %742, %745 : vector<6x8x1xf32>
    %747 = math.exp %746 : vector<6x8x1xf32>
    %748 = arith.mulf %747, %0 : vector<6x8x1xf32>
    %cst_175 = arith.constant dense<0.000000e+00> : vector<8x1xf32>
    %749 = vector.multi_reduction <add>, %748, %cst_175 [0] : vector<6x8x1xf32> to vector<8x1xf32>
    %750 = vector.shape_cast %749 : vector<8x1xf32> to vector<1x8x1xf32>
    %751 = tpu.reciprocal %750 {approx = true} : vector<1x8x1xf32> -> vector<1x8x1xf32>
    %752 = vector.broadcast %751 : vector<1x8x1xf32> to vector<6x8x1xf32>
    %753 = arith.mulf %748, %752 : vector<6x8x1xf32>
    %754 = vector.broadcast %753 : vector<6x8x1xf32> to vector<6x8x64xf32>
    %755 = arith.mulf %754, %540 : vector<6x8x64xf32>
    %cst_176 = arith.constant dense<0.000000e+00> : vector<8x64xf32>
    %756 = vector.multi_reduction <add>, %755, %cst_176 [0] : vector<6x8x64xf32> to vector<8x64xf32>
    %757 = arith.truncf %756 : vector<8x64xf32> to vector<8x64xbf16>
    %cst_177 = arith.constant dense<0.000000e+00> : vector<8x128xf32>
    %758 = tpu.matmul %757, %550, %cst_177 {dimension_numbers = #tpu.dot_dimension_numbers<[1], [0], [0], [1], [0, 0, 1, 1], [], []>} : vector<8x64xbf16>, vector<64x128xbf16>, vector<8x128xf32> -> vector<8x128xf32>
    %759 = vector.extract_strided_slice %729 {offsets = [0, 0], sizes = [8, 32], strides = [1, 1]} : vector<8x128xf32> to vector<8x32xf32>
    %760 = vector.extract_strided_slice %735 {offsets = [0, 0], sizes = [8, 32], strides = [1, 1]} : vector<8x64xf32> to vector<8x32xf32>
    %761 = arith.addf %759, %760 : vector<8x32xf32>
    %762 = vector.extract_strided_slice %758 {offsets = [0, 0], sizes = [8, 32], strides = [1, 1]} : vector<8x128xf32> to vector<8x32xf32>
    %763 = arith.addf %761, %762 : vector<8x32xf32>
    %764 = arith.negf %763 : vector<8x32xf32>
    %765 = math.exp %764 : vector<8x32xf32>
    %cst_178 = arith.constant 1.000000e+00 : f32
    %766 = vector.broadcast %cst_178 : f32 to vector<8x32xf32>
    %767 = arith.addf %766, %765 : vector<8x32xf32>
    %768 = arith.divf %766, %767 : vector<8x32xf32>
    %769 = vector.extract_strided_slice %729 {offsets = [0, 32], sizes = [8, 32], strides = [1, 1]} : vector<8x128xf32> to vector<8x32xf32>
    %770 = vector.extract_strided_slice %735 {offsets = [0, 32], sizes = [8, 32], strides = [1, 1]} : vector<8x64xf32> to vector<8x32xf32>
    %771 = arith.addf %769, %770 : vector<8x32xf32>
    %772 = vector.extract_strided_slice %758 {offsets = [0, 32], sizes = [8, 32], strides = [1, 1]} : vector<8x128xf32> to vector<8x32xf32>
    %773 = arith.addf %771, %772 : vector<8x32xf32>
    %774 = arith.negf %773 : vector<8x32xf32>
    %775 = math.exp %774 : vector<8x32xf32>
    %cst_179 = arith.constant 1.000000e+00 : f32
    %776 = vector.broadcast %cst_179 : f32 to vector<8x32xf32>
    %777 = arith.addf %776, %775 : vector<8x32xf32>
    %778 = arith.divf %776, %777 : vector<8x32xf32>
    %779 = vector.extract_strided_slice %729 {offsets = [0, 64], sizes = [8, 32], strides = [1, 1]} : vector<8x128xf32> to vector<8x32xf32>
    %780 = arith.mulf %778, %724 : vector<8x32xf32>
    %781 = arith.truncf %780 : vector<8x32xf32> to vector<8x32xbf16>
    %cst_180 = arith.constant dense<0.000000e+00> : vector<8x32xf32>
    %782 = tpu.matmul %781, %548, %cst_180 {dimension_numbers = #tpu.dot_dimension_numbers<[1], [0], [0], [1], [0, 0, 1, 1], [], []>} : vector<8x32xbf16>, vector<32x32xbf16>, vector<8x32xf32> -> vector<8x32xf32>
    %783 = arith.addf %779, %782 : vector<8x32xf32>
    %784 = vector.extract_strided_slice %758 {offsets = [0, 64], sizes = [8, 32], strides = [1, 1]} : vector<8x128xf32> to vector<8x32xf32>
    %785 = arith.addf %783, %784 : vector<8x32xf32>
    %786 = math.tanh %785 : vector<8x32xf32>
    %cst_181 = arith.constant 1.000000e+00 : f32
    %787 = vector.broadcast %cst_181 : f32 to vector<8x32xf32>
    %788 = arith.subf %787, %768 : vector<8x32xf32>
    %789 = arith.mulf %788, %724 : vector<8x32xf32>
    %790 = arith.mulf %768, %786 : vector<8x32xf32>
    %791 = arith.addf %789, %790 : vector<8x32xf32>
    %792 = vector.broadcast %731 : vector<8x1xf32> to vector<8x32xf32>
    %793 = arith.mulf %792, %791 : vector<8x32xf32>
    %cst_182 = arith.constant 1.000000e+00 : f32
    %794 = vector.broadcast %cst_182 : f32 to vector<8x1xf32>
    %795 = arith.subf %794, %731 : vector<8x1xf32>
    %796 = vector.broadcast %795 : vector<8x1xf32> to vector<8x32xf32>
    %797 = arith.mulf %796, %724 : vector<8x32xf32>
    %798 = arith.addf %793, %797 : vector<8x32xf32>
    %c16 = arith.constant 16 : index
    %c0_183 = arith.constant 0 : index
    %799 = vector.load %arg17[%c16, %c0_183] : memref<40x32xf32, #tpu.memory_space<vmem>>, vector<8x32xf32>
    tpu.vector_store %arg17[%c16, %c0_183], %798 {strides = array<i32>} : memref<40x32xf32, #tpu.memory_space<vmem>>, vector<8x32xf32>,
    %800 = vector.extract_strided_slice %758 {offsets = [0, 96], sizes = [8, 32], strides = [1, 1]} : vector<8x128xf32> to vector<8x32xf32>
    %c16_184 = arith.constant 16 : index
    %c0_185 = arith.constant 0 : index
    %801 = vector.load %arg18[%c16_184, %c0_185] : memref<40x32xf32, #tpu.memory_space<vmem>>, vector<8x32xf32>
    tpu.vector_store %arg18[%c16_184, %c0_185], %800 {strides = array<i32>} : memref<40x32xf32, #tpu.memory_space<vmem>>, vector<8x32xf32>,
    %802 = vector.extract_strided_slice %576 {offsets = [3, 0, 0], sizes = [1, 8, 128], strides = [1, 1, 1]} : vector<5x8x128xf32> to vector<1x8x128xf32>
    %803 = vector.shape_cast %802 : vector<1x8x128xf32> to vector<8x128xf32>
    %804 = vector.extract_strided_slice %1 {offsets = [3, 0, 0], sizes = [1, 8, 1], strides = [1, 1, 1]} : vector<5x8x1xf32> to vector<1x8x1xf32>
    %805 = vector.shape_cast %804 : vector<1x8x1xf32> to vector<8x1xf32>
    %806 = arith.truncf %798 : vector<8x32xf32> to vector<8x32xbf16>
    %cst_186 = arith.constant dense<0.000000e+00> : vector<8x96xf32>
    %807 = tpu.matmul %806, %547, %cst_186 {dimension_numbers = #tpu.dot_dimension_numbers<[1], [0], [0], [1], [0, 0, 1, 1], [], []>} : vector<8x32xbf16>, vector<32x96xbf16>, vector<8x96xf32> -> vector<8x96xf32>
    %808 = vector.extract_strided_slice %807 {offsets = [0, 0], sizes = [8, 32], strides = [1, 1]} : vector<8x96xf32> to vector<8x32xf32>
    %809 = vector.extract_strided_slice %807 {offsets = [0, 32], sizes = [8, 64], strides = [1, 1]} : vector<8x96xf32> to vector<8x64xf32>
    %810 = vector.shape_cast %808 : vector<8x32xf32> to vector<1x8x32xf32>
    %811 = vector.broadcast %810 : vector<1x8x32xf32> to vector<6x8x32xf32>
    %812 = arith.addf %811, %563 : vector<6x8x32xf32>
    %813 = math.tanh %812 : vector<6x8x32xf32>
    %814 = arith.mulf %813, %579 : vector<6x8x32xf32>
    %cst_187 = arith.constant dense<0.000000e+00> : vector<6x8xf32>
    %815 = vector.multi_reduction <add>, %814, %cst_187 [2] : vector<6x8x32xf32> to vector<6x8xf32>
    %816 = vector.shape_cast %815 : vector<6x8xf32> to vector<6x8x1xf32>
    %cst_188 = arith.constant dense<0xFF800000> : vector<8x1xf32>
    %817 = vector.multi_reduction <maximumf>, %816, %cst_188 [0] : vector<6x8x1xf32> to vector<8x1xf32>
    %818 = vector.shape_cast %817 : vector<8x1xf32> to vector<1x8x1xf32>
    %819 = vector.broadcast %818 : vector<1x8x1xf32> to vector<6x8x1xf32>
    %820 = arith.subf %816, %819 : vector<6x8x1xf32>
    %821 = math.exp %820 : vector<6x8x1xf32>
    %822 = arith.mulf %821, %0 : vector<6x8x1xf32>
    %cst_189 = arith.constant dense<0.000000e+00> : vector<8x1xf32>
    %823 = vector.multi_reduction <add>, %822, %cst_189 [0] : vector<6x8x1xf32> to vector<8x1xf32>
    %824 = vector.shape_cast %823 : vector<8x1xf32> to vector<1x8x1xf32>
    %825 = tpu.reciprocal %824 {approx = true} : vector<1x8x1xf32> -> vector<1x8x1xf32>
    %826 = vector.broadcast %825 : vector<1x8x1xf32> to vector<6x8x1xf32>
    %827 = arith.mulf %822, %826 : vector<6x8x1xf32>
    %828 = vector.broadcast %827 : vector<6x8x1xf32> to vector<6x8x64xf32>
    %829 = arith.mulf %828, %540 : vector<6x8x64xf32>
    %cst_190 = arith.constant dense<0.000000e+00> : vector<8x64xf32>
    %830 = vector.multi_reduction <add>, %829, %cst_190 [0] : vector<6x8x64xf32> to vector<8x64xf32>
    %831 = arith.truncf %830 : vector<8x64xf32> to vector<8x64xbf16>
    %cst_191 = arith.constant dense<0.000000e+00> : vector<8x128xf32>
    %832 = tpu.matmul %831, %550, %cst_191 {dimension_numbers = #tpu.dot_dimension_numbers<[1], [0], [0], [1], [0, 0, 1, 1], [], []>} : vector<8x64xbf16>, vector<64x128xbf16>, vector<8x128xf32> -> vector<8x128xf32>
    %833 = vector.extract_strided_slice %803 {offsets = [0, 0], sizes = [8, 32], strides = [1, 1]} : vector<8x128xf32> to vector<8x32xf32>
    %834 = vector.extract_strided_slice %809 {offsets = [0, 0], sizes = [8, 32], strides = [1, 1]} : vector<8x64xf32> to vector<8x32xf32>
    %835 = arith.addf %833, %834 : vector<8x32xf32>
    %836 = vector.extract_strided_slice %832 {offsets = [0, 0], sizes = [8, 32], strides = [1, 1]} : vector<8x128xf32> to vector<8x32xf32>
    %837 = arith.addf %835, %836 : vector<8x32xf32>
    %838 = arith.negf %837 : vector<8x32xf32>
    %839 = math.exp %838 : vector<8x32xf32>
    %cst_192 = arith.constant 1.000000e+00 : f32
    %840 = vector.broadcast %cst_192 : f32 to vector<8x32xf32>
    %841 = arith.addf %840, %839 : vector<8x32xf32>
    %842 = arith.divf %840, %841 : vector<8x32xf32>
    %843 = vector.extract_strided_slice %803 {offsets = [0, 32], sizes = [8, 32], strides = [1, 1]} : vector<8x128xf32> to vector<8x32xf32>
    %844 = vector.extract_strided_slice %809 {offsets = [0, 32], sizes = [8, 32], strides = [1, 1]} : vector<8x64xf32> to vector<8x32xf32>
    %845 = arith.addf %843, %844 : vector<8x32xf32>
    %846 = vector.extract_strided_slice %832 {offsets = [0, 32], sizes = [8, 32], strides = [1, 1]} : vector<8x128xf32> to vector<8x32xf32>
    %847 = arith.addf %845, %846 : vector<8x32xf32>
    %848 = arith.negf %847 : vector<8x32xf32>
    %849 = math.exp %848 : vector<8x32xf32>
    %cst_193 = arith.constant 1.000000e+00 : f32
    %850 = vector.broadcast %cst_193 : f32 to vector<8x32xf32>
    %851 = arith.addf %850, %849 : vector<8x32xf32>
    %852 = arith.divf %850, %851 : vector<8x32xf32>
    %853 = vector.extract_strided_slice %803 {offsets = [0, 64], sizes = [8, 32], strides = [1, 1]} : vector<8x128xf32> to vector<8x32xf32>
    %854 = arith.mulf %852, %798 : vector<8x32xf32>
    %855 = arith.truncf %854 : vector<8x32xf32> to vector<8x32xbf16>
    %cst_194 = arith.constant dense<0.000000e+00> : vector<8x32xf32>
    %856 = tpu.matmul %855, %548, %cst_194 {dimension_numbers = #tpu.dot_dimension_numbers<[1], [0], [0], [1], [0, 0, 1, 1], [], []>} : vector<8x32xbf16>, vector<32x32xbf16>, vector<8x32xf32> -> vector<8x32xf32>
    %857 = arith.addf %853, %856 : vector<8x32xf32>
    %858 = vector.extract_strided_slice %832 {offsets = [0, 64], sizes = [8, 32], strides = [1, 1]} : vector<8x128xf32> to vector<8x32xf32>
    %859 = arith.addf %857, %858 : vector<8x32xf32>
    %860 = math.tanh %859 : vector<8x32xf32>
    %cst_195 = arith.constant 1.000000e+00 : f32
    %861 = vector.broadcast %cst_195 : f32 to vector<8x32xf32>
    %862 = arith.subf %861, %842 : vector<8x32xf32>
    %863 = arith.mulf %862, %798 : vector<8x32xf32>
    %864 = arith.mulf %842, %860 : vector<8x32xf32>
    %865 = arith.addf %863, %864 : vector<8x32xf32>
    %866 = vector.broadcast %805 : vector<8x1xf32> to vector<8x32xf32>
    %867 = arith.mulf %866, %865 : vector<8x32xf32>
    %cst_196 = arith.constant 1.000000e+00 : f32
    %868 = vector.broadcast %cst_196 : f32 to vector<8x1xf32>
    %869 = arith.subf %868, %805 : vector<8x1xf32>
    %870 = vector.broadcast %869 : vector<8x1xf32> to vector<8x32xf32>
    %871 = arith.mulf %870, %798 : vector<8x32xf32>
    %872 = arith.addf %867, %871 : vector<8x32xf32>
    %c24 = arith.constant 24 : index
    %c0_197 = arith.constant 0 : index
    %873 = vector.load %arg17[%c24, %c0_197] : memref<40x32xf32, #tpu.memory_space<vmem>>, vector<8x32xf32>
    tpu.vector_store %arg17[%c24, %c0_197], %872 {strides = array<i32>} : memref<40x32xf32, #tpu.memory_space<vmem>>, vector<8x32xf32>,
    %874 = vector.extract_strided_slice %832 {offsets = [0, 96], sizes = [8, 32], strides = [1, 1]} : vector<8x128xf32> to vector<8x32xf32>
    %c24_198 = arith.constant 24 : index
    %c0_199 = arith.constant 0 : index
    %875 = vector.load %arg18[%c24_198, %c0_199] : memref<40x32xf32, #tpu.memory_space<vmem>>, vector<8x32xf32>
    tpu.vector_store %arg18[%c24_198, %c0_199], %874 {strides = array<i32>} : memref<40x32xf32, #tpu.memory_space<vmem>>, vector<8x32xf32>,
    %876 = vector.extract_strided_slice %576 {offsets = [4, 0, 0], sizes = [1, 8, 128], strides = [1, 1, 1]} : vector<5x8x128xf32> to vector<1x8x128xf32>
    %877 = vector.shape_cast %876 : vector<1x8x128xf32> to vector<8x128xf32>
    %878 = vector.extract_strided_slice %1 {offsets = [4, 0, 0], sizes = [1, 8, 1], strides = [1, 1, 1]} : vector<5x8x1xf32> to vector<1x8x1xf32>
    %879 = vector.shape_cast %878 : vector<1x8x1xf32> to vector<8x1xf32>
    %880 = arith.truncf %872 : vector<8x32xf32> to vector<8x32xbf16>
    %cst_200 = arith.constant dense<0.000000e+00> : vector<8x96xf32>
    %881 = tpu.matmul %880, %547, %cst_200 {dimension_numbers = #tpu.dot_dimension_numbers<[1], [0], [0], [1], [0, 0, 1, 1], [], []>} : vector<8x32xbf16>, vector<32x96xbf16>, vector<8x96xf32> -> vector<8x96xf32>
    %882 = vector.extract_strided_slice %881 {offsets = [0, 0], sizes = [8, 32], strides = [1, 1]} : vector<8x96xf32> to vector<8x32xf32>
    %883 = vector.extract_strided_slice %881 {offsets = [0, 32], sizes = [8, 64], strides = [1, 1]} : vector<8x96xf32> to vector<8x64xf32>
    %884 = vector.shape_cast %882 : vector<8x32xf32> to vector<1x8x32xf32>
    %885 = vector.broadcast %884 : vector<1x8x32xf32> to vector<6x8x32xf32>
    %886 = arith.addf %885, %563 : vector<6x8x32xf32>
    %887 = math.tanh %886 : vector<6x8x32xf32>
    %888 = arith.mulf %887, %579 : vector<6x8x32xf32>
    %cst_201 = arith.constant dense<0.000000e+00> : vector<6x8xf32>
    %889 = vector.multi_reduction <add>, %888, %cst_201 [2] : vector<6x8x32xf32> to vector<6x8xf32>
    %890 = vector.shape_cast %889 : vector<6x8xf32> to vector<6x8x1xf32>
    %cst_202 = arith.constant dense<0xFF800000> : vector<8x1xf32>
    %891 = vector.multi_reduction <maximumf>, %890, %cst_202 [0] : vector<6x8x1xf32> to vector<8x1xf32>
    %892 = vector.shape_cast %891 : vector<8x1xf32> to vector<1x8x1xf32>
    %893 = vector.broadcast %892 : vector<1x8x1xf32> to vector<6x8x1xf32>
    %894 = arith.subf %890, %893 : vector<6x8x1xf32>
    %895 = math.exp %894 : vector<6x8x1xf32>
    %896 = arith.mulf %895, %0 : vector<6x8x1xf32>
    %cst_203 = arith.constant dense<0.000000e+00> : vector<8x1xf32>
    %897 = vector.multi_reduction <add>, %896, %cst_203 [0] : vector<6x8x1xf32> to vector<8x1xf32>
    %898 = vector.shape_cast %897 : vector<8x1xf32> to vector<1x8x1xf32>
    %899 = tpu.reciprocal %898 {approx = true} : vector<1x8x1xf32> -> vector<1x8x1xf32>
    %900 = vector.broadcast %899 : vector<1x8x1xf32> to vector<6x8x1xf32>
    %901 = arith.mulf %896, %900 : vector<6x8x1xf32>
    %902 = vector.broadcast %901 : vector<6x8x1xf32> to vector<6x8x64xf32>
    %903 = arith.mulf %902, %540 : vector<6x8x64xf32>
    %cst_204 = arith.constant dense<0.000000e+00> : vector<8x64xf32>
    %904 = vector.multi_reduction <add>, %903, %cst_204 [0] : vector<6x8x64xf32> to vector<8x64xf32>
    %905 = arith.truncf %904 : vector<8x64xf32> to vector<8x64xbf16>
    %cst_205 = arith.constant dense<0.000000e+00> : vector<8x128xf32>
    %906 = tpu.matmul %905, %550, %cst_205 {dimension_numbers = #tpu.dot_dimension_numbers<[1], [0], [0], [1], [0, 0, 1, 1], [], []>} : vector<8x64xbf16>, vector<64x128xbf16>, vector<8x128xf32> -> vector<8x128xf32>
    %907 = vector.extract_strided_slice %877 {offsets = [0, 0], sizes = [8, 32], strides = [1, 1]} : vector<8x128xf32> to vector<8x32xf32>
    %908 = vector.extract_strided_slice %883 {offsets = [0, 0], sizes = [8, 32], strides = [1, 1]} : vector<8x64xf32> to vector<8x32xf32>
    %909 = arith.addf %907, %908 : vector<8x32xf32>
    %910 = vector.extract_strided_slice %906 {offsets = [0, 0], sizes = [8, 32], strides = [1, 1]} : vector<8x128xf32> to vector<8x32xf32>
    %911 = arith.addf %909, %910 : vector<8x32xf32>
    %912 = arith.negf %911 : vector<8x32xf32>
    %913 = math.exp %912 : vector<8x32xf32>
    %cst_206 = arith.constant 1.000000e+00 : f32
    %914 = vector.broadcast %cst_206 : f32 to vector<8x32xf32>
    %915 = arith.addf %914, %913 : vector<8x32xf32>
    %916 = arith.divf %914, %915 : vector<8x32xf32>
    %917 = vector.extract_strided_slice %877 {offsets = [0, 32], sizes = [8, 32], strides = [1, 1]} : vector<8x128xf32> to vector<8x32xf32>
    %918 = vector.extract_strided_slice %883 {offsets = [0, 32], sizes = [8, 32], strides = [1, 1]} : vector<8x64xf32> to vector<8x32xf32>
    %919 = arith.addf %917, %918 : vector<8x32xf32>
    %920 = vector.extract_strided_slice %906 {offsets = [0, 32], sizes = [8, 32], strides = [1, 1]} : vector<8x128xf32> to vector<8x32xf32>
    %921 = arith.addf %919, %920 : vector<8x32xf32>
    %922 = arith.negf %921 : vector<8x32xf32>
    %923 = math.exp %922 : vector<8x32xf32>
    %cst_207 = arith.constant 1.000000e+00 : f32
    %924 = vector.broadcast %cst_207 : f32 to vector<8x32xf32>
    %925 = arith.addf %924, %923 : vector<8x32xf32>
    %926 = arith.divf %924, %925 : vector<8x32xf32>
    %927 = vector.extract_strided_slice %877 {offsets = [0, 64], sizes = [8, 32], strides = [1, 1]} : vector<8x128xf32> to vector<8x32xf32>
    %928 = arith.mulf %926, %872 : vector<8x32xf32>
    %929 = arith.truncf %928 : vector<8x32xf32> to vector<8x32xbf16>
    %cst_208 = arith.constant dense<0.000000e+00> : vector<8x32xf32>
    %930 = tpu.matmul %929, %548, %cst_208 {dimension_numbers = #tpu.dot_dimension_numbers<[1], [0], [0], [1], [0, 0, 1, 1], [], []>} : vector<8x32xbf16>, vector<32x32xbf16>, vector<8x32xf32> -> vector<8x32xf32>
    %931 = arith.addf %927, %930 : vector<8x32xf32>
    %932 = vector.extract_strided_slice %906 {offsets = [0, 64], sizes = [8, 32], strides = [1, 1]} : vector<8x128xf32> to vector<8x32xf32>
    %933 = arith.addf %931, %932 : vector<8x32xf32>
    %934 = math.tanh %933 : vector<8x32xf32>
    %cst_209 = arith.constant 1.000000e+00 : f32
    %935 = vector.broadcast %cst_209 : f32 to vector<8x32xf32>
    %936 = arith.subf %935, %916 : vector<8x32xf32>
    %937 = arith.mulf %936, %872 : vector<8x32xf32>
    %938 = arith.mulf %916, %934 : vector<8x32xf32>
    %939 = arith.addf %937, %938 : vector<8x32xf32>
    %940 = vector.broadcast %879 : vector<8x1xf32> to vector<8x32xf32>
    %941 = arith.mulf %940, %939 : vector<8x32xf32>
    %cst_210 = arith.constant 1.000000e+00 : f32
    %942 = vector.broadcast %cst_210 : f32 to vector<8x1xf32>
    %943 = arith.subf %942, %879 : vector<8x1xf32>
    %944 = vector.broadcast %943 : vector<8x1xf32> to vector<8x32xf32>
    %945 = arith.mulf %944, %872 : vector<8x32xf32>
    %946 = arith.addf %941, %945 : vector<8x32xf32>
    %c32_211 = arith.constant 32 : index
    %c0_212 = arith.constant 0 : index
    %947 = vector.load %arg17[%c32_211, %c0_212] : memref<40x32xf32, #tpu.memory_space<vmem>>, vector<8x32xf32>
    tpu.vector_store %arg17[%c32_211, %c0_212], %946 {strides = array<i32>} : memref<40x32xf32, #tpu.memory_space<vmem>>, vector<8x32xf32>,
    %948 = vector.extract_strided_slice %906 {offsets = [0, 96], sizes = [8, 32], strides = [1, 1]} : vector<8x128xf32> to vector<8x32xf32>
    %c32_213 = arith.constant 32 : index
    %c0_214 = arith.constant 0 : index
    %949 = vector.load %arg18[%c32_213, %c0_214] : memref<40x32xf32, #tpu.memory_space<vmem>>, vector<8x32xf32>
    tpu.vector_store %arg18[%c32_213, %c0_214], %948 {strides = array<i32>} : memref<40x32xf32, #tpu.memory_space<vmem>>, vector<8x32xf32>,
    %c0_215 = arith.constant 0 : index
    %c0_216 = arith.constant 0 : index
    %950 = vector.load %arg17[%c0_215, %c0_216] : memref<40x32xf32, #tpu.memory_space<vmem>>, vector<40x32xf32>
    %951 = arith.truncf %950 : vector<40x32xf32> to vector<40x32xbf16>
    %cst_217 = arith.constant dense<0.000000e+00> : vector<40x32xf32>
    %952 = tpu.matmul %951, %549, %cst_217 {dimension_numbers = #tpu.dot_dimension_numbers<[1], [0], [0], [1], [0, 0, 1, 1], [], []>} : vector<40x32xbf16>, vector<32x32xbf16>, vector<40x32xf32> -> vector<40x32xf32>
    %953 = vector.extract_strided_slice %575 {offsets = [0, 96], sizes = [40, 32], strides = [1, 1]} : vector<40x128xf32> to vector<40x32xf32>
    %954 = arith.addf %952, %953 : vector<40x32xf32>
    %c0_218 = arith.constant 0 : index
    %c0_219 = arith.constant 0 : index
    %955 = vector.load %arg18[%c0_218, %c0_219] : memref<40x32xf32, #tpu.memory_space<vmem>>, vector<40x32xf32>
    %956 = arith.addf %954, %955 : vector<40x32xf32>
    %957 = vector.extract_strided_slice %956 {offsets = [0, 0], sizes = [40, 16], strides = [1, 1]} : vector<40x32xf32> to vector<40x16xf32>
    %958 = vector.extract_strided_slice %956 {offsets = [0, 16], sizes = [40, 16], strides = [1, 1]} : vector<40x32xf32> to vector<40x16xf32>
    %959 = arith.maximumf %957, %958 : vector<40x16xf32>
    %c0_220 = arith.constant 0 : index
    %c0_221 = arith.constant 0 : index
    %960 = vector.load %arg4[%c0_220, %c0_221] : memref<40x1xf32, #tpu.memory_space<vmem>>, vector<40x1xf32>
    %961 = vector.broadcast %960 : vector<40x1xf32> to vector<40x16xf32>
    %962 = arith.mulf %959, %961 : vector<40x16xf32>
    %c0_222 = arith.constant 0 : index
    %c0_223 = arith.constant 0 : index
    %963 = vector.load %arg15[%c0_222, %c0_223] : memref<40x16xf32, #tpu.memory_space<vmem>>, vector<40x16xf32>
    tpu.vector_store %arg15[%c0_222, %c0_223], %962 {strides = array<i32>} : memref<40x16xf32, #tpu.memory_space<vmem>>, vector<40x16xf32>,
    return
  }
}

</mosaic_0001>

<llo_original>
// kernel: nmt_forward.1
$region0: #{nmt_forward.1}
  #allocation0 [shape = 'u32[]', space=smem, size = 0x4, offset = 0x4, fixed_abs, tag = 'smem constant byte address 0x4 - core index']
  #allocation1 [shape = 'u32[72,128]{1,0:T(1,128)}', space=vmem, size = 0x9000, scoped, tag = 'internal scratch']
  #allocation2 [shape = 'f32[6,8,64]{2,1,0:T(8,128)}', space=vmem, size = 0x6000, scoped, tag = 'scratch operand']
  #allocation3 [shape = 'f32[40,32]{1,0:T(8,128)}', space=vmem, size = 0x5000, scoped, tag = 'scratch operand']
  #allocation4 [shape = 'f32[40,32]{1,0:T(8,128)}', space=vmem, size = 0x5000, scoped, tag = 'scratch operand']
  %s0 = inlined_call_operand.vmem [shape: s32[48,1], index: 0, kind: input, shape index: {}]
  %s1 = inlined_call_operand.vmem [shape: s32[40,1], index: 1, kind: input, shape index: {}]
  %s2 = inlined_call_operand.vmem [shape: f32[6,8,1], index: 2, kind: input, shape index: {}]
  %s3 = inlined_call_operand.vmem [shape: f32[5,8,1], index: 3, kind: input, shape index: {}]
  %s4 = inlined_call_operand.vmem [shape: f32[40,1], index: 4, kind: input, shape index: {}]
  %s5 = inlined_call_operand.vmem [shape: bf16[50,192], index: 5, kind: input, shape index: {}]
  %s6 = inlined_call_operand.vmem [shape: f32[1,192], index: 6, kind: input, shape index: {}]
  %s7 = inlined_call_operand.vmem [shape: bf16[32,96], index: 7, kind: input, shape index: {}]
  %s8 = inlined_call_operand.vmem [shape: bf16[32,96], index: 8, kind: input, shape index: {}]
  %s9 = inlined_call_operand.vmem [shape: bf16[32,32], index: 9, kind: input, shape index: {}]
  %s10 = inlined_call_operand.vmem [shape: bf16[64,32], index: 10, kind: input, shape index: {}]
  %s11 = inlined_call_operand.vmem [shape: bf16[60,128], index: 11, kind: input, shape index: {}]
  %s12 = inlined_call_operand.vmem [shape: bf16[32,160], index: 12, kind: input, shape index: {}]
  %s13 = inlined_call_operand.vmem [shape: bf16[64,128], index: 13, kind: input, shape index: {}]
  %s14 = inlined_call_operand.vmem [shape: f32[1,224], index: 14, kind: input, shape index: {}]
  %s15 = inlined_call_operand.hbm [shape: f32[40,16], index: 15, kind: output, shape index: {}]
  %s16 = sld [smem:[#allocation0]]
  $region70: #{nmt_forward.1} parent=0
    _
  %s18 = ssub.s32 1, %s16
  %s19 = scalar_select 0, %s18, %s16
  $region1: #{nmt_forward.1} parent=0
    #allocation5 [shape = 'u8[20480]{0}', space=vmem, size = 0x5000, scoped, tag = 'output window, operand 0, single buffered']
    #allocation6 [shape = 's32[1]{0}', space=sflag, size = 0x4, scoped, tag = 'scoped memory for nmt_forward.1']
    %20 = vsyncpa [#allocation6], 0
    // Predicated region
    $region2: #{nmt_forward.1} parent=1 // pred_check
      _
    $region3: #{nmt_forward.1} parent=1 // pred_check_branch
      %22 = sbr.rel (0) target = $region5
    $region4: #{nmt_forward.1} parent=1 // pred_region
      _
    $region5: #{nmt_forward.1} parent=1 // pred_fallthru
      _
    // Predicated region
    $region6: #{nmt_forward.1} parent=1 // pred_check
      _
    $region7: #{nmt_forward.1} parent=1 // pred_check_branch
      %24 = sbr.rel (0) target = $region9
    $region8: #{nmt_forward.1} parent=1 // pred_region
      _
    $region9: #{nmt_forward.1} parent=1 // pred_fallthru
      _
    // Predicated region
    $region10: #{nmt_forward.1} parent=1 // pred_check
      _
    $region11: #{nmt_forward.1} parent=1 // pred_check_branch
      %26 = sbr.rel (0) target = $region13
    $region12: #{nmt_forward.1} parent=1 // pred_region
      _
    $region13: #{nmt_forward.1} parent=1 // pred_fallthru
      _
    // Predicated region
    $region14: #{nmt_forward.1} parent=1 // pred_check
      _
    $region15: #{nmt_forward.1} parent=1 // pred_check_branch
      %28 = sbr.rel (0) target = $region17
    $region16: #{nmt_forward.1} parent=1 // pred_region
      _
    $region17: #{nmt_forward.1} parent=1 // pred_fallthru
      _
    // Predicated region
    $region18: #{nmt_forward.1} parent=1 // pred_check
      _
    $region19: #{nmt_forward.1} parent=1 // pred_check_branch
      %30 = sbr.rel (0) target = $region21
    $region20: #{nmt_forward.1} parent=1 // pred_region
      _
    $region21: #{nmt_forward.1} parent=1 // pred_fallthru
      _
    // Predicated region
    $region22: #{nmt_forward.1} parent=1 // pred_check
      _
    $region23: #{nmt_forward.1} parent=1 // pred_check_branch
      %32 = sbr.rel (0) target = $region25
    $region24: #{nmt_forward.1} parent=1 // pred_region
      _
    $region25: #{nmt_forward.1} parent=1 // pred_fallthru
      _
    // Predicated region
    $region26: #{nmt_forward.1} parent=1 // pred_check
      _
    $region27: #{nmt_forward.1} parent=1 // pred_check_branch
      %34 = sbr.rel (0) target = $region29
    $region28: #{nmt_forward.1} parent=1 // pred_region
      _
    $region29: #{nmt_forward.1} parent=1 // pred_fallthru
      _
    // Predicated region
    $region30: #{nmt_forward.1} parent=1 // pred_check
      _
    $region31: #{nmt_forward.1} parent=1 // pred_check_branch
      %36 = sbr.rel (0) target = $region33
    $region32: #{nmt_forward.1} parent=1 // pred_region
      _
    $region33: #{nmt_forward.1} parent=1 // pred_fallthru
      _
    // Predicated region
    $region34: #{nmt_forward.1} parent=1 // pred_check
      _
    $region35: #{nmt_forward.1} parent=1 // pred_check_branch
      %38 = sbr.rel (0) target = $region37
    $region36: #{nmt_forward.1} parent=1 // pred_region
      _
    $region37: #{nmt_forward.1} parent=1 // pred_fallthru
      _
    // Predicated region
    $region38: #{nmt_forward.1} parent=1 // pred_check
      _
    $region39: #{nmt_forward.1} parent=1 // pred_check_branch
      %40 = sbr.rel (0) target = $region41
    $region40: #{nmt_forward.1} parent=1 // pred_region
      _
    $region41: #{nmt_forward.1} parent=1 // pred_fallthru
      _
    // Predicated region
    $region42: #{nmt_forward.1} parent=1 // pred_check
      _
    $region43: #{nmt_forward.1} parent=1 // pred_check_branch
      %42 = sbr.rel (0) target = $region45
    $region44: #{nmt_forward.1} parent=1 // pred_region
      _
    $region45: #{nmt_forward.1} parent=1 // pred_fallthru
      _
    // Predicated region
    $region46: #{nmt_forward.1} parent=1 // pred_check
      _
    $region47: #{nmt_forward.1} parent=1 // pred_check_branch
      %44 = sbr.rel (0) target = $region49
    $region48: #{nmt_forward.1} parent=1 // pred_region
      _
    $region49: #{nmt_forward.1} parent=1 // pred_fallthru
      _
    // Predicated region
    $region50: #{nmt_forward.1} parent=1 // pred_check
      _
    $region51: #{nmt_forward.1} parent=1 // pred_check_branch
      %46 = sbr.rel (0) target = $region53
    $region52: #{nmt_forward.1} parent=1 // pred_region
      _
    $region53: #{nmt_forward.1} parent=1 // pred_fallthru
      _
    // Predicated region
    $region54: #{nmt_forward.1} parent=1 // pred_check
      _
    $region55: #{nmt_forward.1} parent=1 // pred_check_branch
      %48 = sbr.rel (0) target = $region57
    $region56: #{nmt_forward.1} parent=1 // pred_region
      _
    $region57: #{nmt_forward.1} parent=1 // pred_fallthru
      _
    // Predicated region
    $region58: #{nmt_forward.1} parent=1 // pred_check
      _
    $region59: #{nmt_forward.1} parent=1 // pred_check_branch
      %50 = sbr.rel (0) target = $region61
    $region60: #{nmt_forward.1} parent=1 // pred_region
      _
    $region61: #{nmt_forward.1} parent=1 // pred_fallthru
      _
    %v52 = vld [vmem:[%s2] sm:$0xff]
    %v53 = vld [vmem:[%s2 + $0x8] sm:$0xff]
    %v54 = vld [vmem:[%s2 + $0x10] sm:$0xff]
    %v55 = vld [vmem:[%s2 + $0x18] sm:$0xff]
    %v56 = vld [vmem:[%s2 + $0x20] sm:$0xff]
    %v57 = vld [vmem:[%s2 + $0x28] sm:$0xff]
    %v58 = vld [vmem:[%s3] sm:$0xff]
    %v59 = vld [vmem:[%s3 + $0x8] sm:$0xff]
    %v60 = vld [vmem:[%s3 + $0x10] sm:$0xff]
    %v61 = vld [vmem:[%s3 + $0x18] sm:$0xff]
    %v62 = vld [vmem:[%s3 + $0x20] sm:$0xff]
    %v63 = vld [vmem:[%s0] sm:$0xff]
    %v64 = vld [vmem:[%s0 + $0x8] sm:$0xff]
    %v65 = vld [vmem:[%s0 + $0x10] sm:$0xff]
    %v66 = vld [vmem:[%s0 + $0x18] sm:$0xff]
    %v67 = vld [vmem:[%s0 + $0x20] sm:$0xff]
    %v68 = vld [vmem:[%s0 + $0x28] sm:$0xff]
    %v69 = vlaneseq
    %v70 = vand.u32 %v69, 127
    %71 = vset.pattern.permute.xlu0 0
    %72 = vperm.xlu0 %71, %v63
    %v73 = vpop.permute.xlu0 %72
    %74 = vset.pattern.permute.xlu0 0
    %75 = vperm.xlu0 %74, %v64
    %v76 = vpop.permute.xlu0 %75
    %77 = vset.pattern.permute.xlu0 0
    %78 = vperm.xlu0 %77, %v65
    %v79 = vpop.permute.xlu0 %78
    %80 = vset.pattern.permute.xlu0 0
    %81 = vperm.xlu0 %80, %v66
    %v82 = vpop.permute.xlu0 %81
    %83 = vset.pattern.permute.xlu0 0
    %84 = vperm.xlu0 %83, %v67
    %v85 = vpop.permute.xlu0 %84
    %86 = vset.pattern.permute.xlu0 0
    %87 = vperm.xlu0 %86, %v68
    %v88 = vpop.permute.xlu0 %87
    %vm89 = vcmp.eq.s32.totalorder %v73, %v70
    %vm90 = vcmp.eq.s32.totalorder %v76, %v70
    %vm91 = vcmp.eq.s32.totalorder %v79, %v70
    %vm92 = vcmp.eq.s32.totalorder %v82, %v70
    %vm93 = vcmp.eq.s32.totalorder %v85, %v70
    %vm94 = vcmp.eq.s32.totalorder %v88, %v70
    %v95 = vsel %vm89, 1.0, 0.0
    %v96 = vsel %vm90, 1.0, 0.0
    %v97 = vsel %vm91, 1.0, 0.0
    %v98 = vsel %vm92, 1.0, 0.0
    %v99 = vsel %vm93, 1.0, 0.0
    %v100 = vsel %vm94, 1.0, 0.0
    %v101 = vpack.c.bf16 %v96, %v95
    %v102 = vpack.c.bf16 %v98, %v97
    %v103 = vpack.c.bf16 %v100, %v99
    %v104 = vld [vmem:[%s5] sm:$0xff]
    %v105 = vld [vmem:[%s5 + $0x8] sm:$0xff]
    %v106 = vld [vmem:[%s5 + $0x10] sm:$0xff]
    %v107 = vld [vmem:[%s5 + $0x18] sm:$0xff]
    %v108 = vld [vmem:[%s5 + $0x20] sm:$0xff]
    %v109 = vld [vmem:[%s5 + $0x28] sm:$0xff]
    %v110 = vld [vmem:[%s5 + $0x30] sm:$0x11]
    %v111 = vld [vmem:[%s6] sm:$0x3]
    %v113 = vperm.slane %v111, 0
    %v114 = vperm.slane %v111, 1
    %v124 = vunpack.c.l.b16 %v104
    %v125 = vunpack.c.h.b16 %v104
    %v126 = vunpack.c.l.b16 %v105
    %v127 = vunpack.c.h.b16 %v105
    %v128 = vunpack.c.l.b16 %v106
    %v129 = vunpack.c.h.b16 %v106
    %v130 = vunpack.c.l.b16 %v107
    %v131 = vunpack.c.h.b16 %v107
    %v132 = vunpack.c.l.b16 %v108
    %v133 = vunpack.c.h.b16 %v108
    %v134 = vunpack.c.l.b16 %v109
    %v135 = vunpack.c.h.b16 %v109
    %v136 = vunpack.c.l.b16 %v110
    %v137 = vunpack.c.h.b16 %v110
    %v138 = vpack.c.b16 %v126, %v124
    %v139 = vpack.c.b16 %v127, %v125
    %v140 = vpack.c.b16 %v130, %v128
    %v141 = vpack.c.b16 %v131, %v129
    %v142 = vpack.c.b16 %v134, %v132
    %v143 = vpack.c.b16 %v135, %v133
    %v144 = vpack.c.b16 %v136, %v136
    %v145 = vpack.c.b16 %v137, %v137
    %vm152 = vcmask 408576
    %v154 = vsel %vm152, %v101, 0
    %v157 = vsel %vm152, %v102, 0
    %v160 = vsel %vm152, %v103, 0
    %vm162 = vcmask 1040384
    %v164 = vsel %vm162, %v144, 0
    %v167 = vsel %vm162, %v145, 0
    %169 = vmatpush.bf16.msra.mxu0 0
    %170 = vmatpush.bf16.msra.mxu0 0
    %171 = vmatpush.bf16.msra.mxu0 0
    %172 = vmatpush.bf16.msra.mxu0 0
    %173 = vmatpush.bf16.msra.mxu0 %v164
    %174 = vmatpush.bf16.msra.mxu0 %v142
    %175 = vmatpush.bf16.msra.mxu0 %v140
    %176 = vmatpush.bf16.msra.mxu0 %v138
    %177 = vmatmul.bf16.gmra.mxu0 %v154
    %v178 = vpop.f32.mrf.mxu0
    %v179 = vadd.f32 %v113, %v178
    %v180 = vpop.f32.mrf.mxu0
    %v181 = vadd.f32 %v113, %v180
    %182 = vmatmul.bf16.gmra.mxu0 %v157
    %v183 = vpop.f32.mrf.mxu0
    %v184 = vadd.f32 %v113, %v183
    %v185 = vpop.f32.mrf.mxu0
    %v186 = vadd.f32 %v113, %v185
    %187 = vmatmul.bf16.gmra.mxu0 %v160
    %v188 = vpop.f32.mrf.mxu0
    %v189 = vadd.f32 %v113, %v188
    %v190 = vpop.f32.mrf.mxu0
    %v191 = vadd.f32 %v113, %v190
    %192 = vdwg.mxu0
    %193 = vmatpush.bf16.msra.mxu0 0
    %194 = vmatpush.bf16.msra.mxu0 0
    %195 = vmatpush.bf16.msra.mxu0 0
    %196 = vmatpush.bf16.msra.mxu0 0
    %197 = vmatpush.bf16.msra.mxu0 %v167
    %198 = vmatpush.bf16.msra.mxu0 %v143
    %199 = vmatpush.bf16.msra.mxu0 %v141
    %200 = vmatpush.bf16.msra.mxu0 %v139
    %201 = vmatmul.bf16.gmra.mxu0 %v154
    %v202 = vpop.f32.mrf.mxu0
    %v203 = vadd.f32 %v114, %v202
    %v204 = vpop.f32.mrf.mxu0
    %v205 = vadd.f32 %v114, %v204
    %206 = vmatmul.bf16.gmra.mxu0 %v157
    %v207 = vpop.f32.mrf.mxu0
    %v208 = vadd.f32 %v114, %v207
    %v209 = vpop.f32.mrf.mxu0
    %v210 = vadd.f32 %v114, %v209
    %211 = vmatmul.bf16.gmra.mxu0 %v160
    %v212 = vpop.f32.mrf.mxu0
    %v213 = vadd.f32 %v114, %v212
    %v214 = vpop.f32.mrf.mxu0
    %v215 = vadd.f32 %v114, %v214
    %216 = vdwg.mxu0
    %v217 = vld [vmem:[%s7] sm:$0xf]
    %v218 = vld [vmem:[%s7 + $0x4] sm:$0xf]
    %v219 = vld [vmem:[%s7 + $0x8] sm:$0xf]
    %v220 = vld [vmem:[%s7 + $0xc] sm:$0xf]
    %v221 = vld [vmem:[%s8] sm:$0xf]
    %v222 = vld [vmem:[%s8 + $0x4] sm:$0xf]
    %v223 = vld [vmem:[%s8 + $0x8] sm:$0xf]
    %v224 = vld [vmem:[%s8 + $0xc] sm:$0xf]
    %v229 = vunpack.c.l.b16 %v217
    %v230 = vunpack.c.l.b16 %v218
    %v231 = vunpack.c.l.b16 %v219
    %v232 = vunpack.c.l.b16 %v220
    %v233 = vpack.c.b16 %v230, %v229
    %v234 = vpack.c.b16 %v232, %v231
    %vm237 = vcmask 261120
    %v239 = vsel %vm237, 0, 0
    %241 = vmatpush.bf16.msra.mxu0 0
    %242 = vmatpush.bf16.msra.mxu0 0
    %243 = vmatpush.bf16.msra.mxu0 0
    %244 = vmatpush.bf16.msra.mxu0 0
    %245 = vmatpush.bf16.msra.mxu0 0
    %246 = vmatpush.bf16.msra.mxu0 0
    %247 = vmatpush.bf16.msra.mxu0 %v234
    %248 = vmatpush.bf16.msra.mxu0 %v233
    %249 = vmatmul.bf16.gmra.mxu0 %v239
    %v250 = vpop.f32.mrf.mxu0
    %v251 = vadd.f32 0.0, %v250
    %v252 = vpop.f32.mrf.mxu0
    %253 = vdwg.mxu0
    %v254 = vadd.f32 %v179, %v251
    %v255 = vxor.u32 %v254, 2147483648
    %v256 = vmul.f32 %v255, 1.442695
    %v257 = vpow.pop %v256
    %v258 = vadd.f32 %v257, 1.0
    %v259 = vrcp.pop %v258
    %v260 = vmul.f32 %v258, %v259
    %v261 = vsub.f32 1.0, %v260
    %v262 = vmul.f32 %v259, %v261
    %v263 = vadd.f32 %v259, %v262
    %vm264 = vweird.f32 %v258
    %vm265 = vweird.f32 %v259
    %vm266 = vmor %vm264, %vm265
    %v267 = vsel %vm266, %v259, %v263
    %v268 = vand.u32 2147483647, %v258
    %vm269 = vcmp.eq.f32.partialorder %v268, 8.507059e+37
    %v270 = vand.u32 %v258, 2147483648
    %v271 = vor.u32 1.1754944e-38, %v270
    %v272 = vsel %vm269, %v271, %v267
    %v273 = vmul.f32 1.0, %v272
    %v274 = vmul.f32 %v273, 0.0
    %v275 = vpack.c.bf16 %v274, %v274
    %277 = vrot.lane.b32.xlu0 %v275, 96
    %v278 = vpop.permute.xlu0 %277
    %279 = vrot.lane.b32.xlu0 %v233, 64
    %v280 = vpop.permute.xlu0 %279
    %281 = vrot.lane.b32.xlu0 %v234, 64
    %v282 = vpop.permute.xlu0 %281
    %v286 = vsel %vm237, %v278, 0
    %288 = vmatpush.bf16.msra.mxu0 0
    %289 = vmatpush.bf16.msra.mxu0 0
    %290 = vmatpush.bf16.msra.mxu0 0
    %291 = vmatpush.bf16.msra.mxu0 0
    %292 = vmatpush.bf16.msra.mxu0 0
    %293 = vmatpush.bf16.msra.mxu0 0
    %294 = vmatpush.bf16.msra.mxu0 %v282
    %295 = vmatpush.bf16.msra.mxu0 %v280
    %296 = vmatmul.bf16.gmra.mxu0 %v286
    %v297 = vpop.f32.mrf.mxu0
    %v298 = vadd.f32 0.0, %v297
    %v299 = vpop.f32.mrf.mxu0
    %300 = vdwg.mxu0
    %302 = vrot.lane.b32.xlu0 %v298, 64
    %v303 = vpop.permute.xlu0 %302
    %v305 = vadd.f32 %v179, %v303
    %v306 = vtanh.pop %v305
    %v307 = vsub.f32 1.0, %v273
    %v308 = vmul.f32 %v307, 0.0
    %310 = vrot.lane.b32.xlu0 %v306, 64
    %v311 = vpop.permute.xlu0 %310
    %v313 = vmul.f32 %v273, %v311
    %v314 = vadd.f32 %v308, %v313
    %316 = vset.pattern.permute.xlu0 0
    %317 = vperm.xlu0 %316, %v52
    %v318 = vpop.permute.xlu0 %317
    %v320 = vmul.f32 %v318, %v314
    %v321 = vsub.f32 1.0, %v52
    %323 = vset.pattern.permute.xlu0 0
    %324 = vperm.xlu0 %323, %v321
    %v325 = vpop.permute.xlu0 %324
    %v327 = vmul.f32 %v325, 0.0
    %v328 = vadd.f32 %v320, %v327
    %v333 = vunpack.c.l.b16 %v221
    %v334 = vunpack.c.l.b16 %v222
    %v335 = vunpack.c.l.b16 %v223
    %v336 = vunpack.c.l.b16 %v224
    %v337 = vpack.c.b16 %v334, %v333
    %v338 = vpack.c.b16 %v336, %v335
    %341 = vmatpush.bf16.msra.mxu0 0
    %342 = vmatpush.bf16.msra.mxu0 0
    %343 = vmatpush.bf16.msra.mxu0 0
    %344 = vmatpush.bf16.msra.mxu0 0
    %345 = vmatpush.bf16.msra.mxu0 0
    %346 = vmatpush.bf16.msra.mxu0 0
    %347 = vmatpush.bf16.msra.mxu0 %v338
    %348 = vmatpush.bf16.msra.mxu0 %v337
    %349 = vmatmul.bf16.gmra.mxu0 %v239
    %v350 = vpop.f32.mrf.mxu0
    %v351 = vadd.f32 0.0, %v350
    %v352 = vpop.f32.mrf.mxu0
    %353 = vdwg.mxu0
    %355 = vrot.lane.b32.xlu0 %v351, 96
    %v356 = vpop.permute.xlu0 %355
    %v358 = vadd.f32 %v191, %v356
    %v359 = vxor.u32 %v358, 2147483648
    %v360 = vmul.f32 %v359, 1.442695
    %v361 = vpow.pop %v360
    %v362 = vadd.f32 %v361, 1.0
    %v363 = vrcp.pop %v362
    %v364 = vmul.f32 %v362, %v363
    %v365 = vsub.f32 1.0, %v364
    %v366 = vmul.f32 %v363, %v365
    %v367 = vadd.f32 %v363, %v366
    %vm368 = vweird.f32 %v362
    %vm369 = vweird.f32 %v363
    %vm370 = vmor %vm368, %vm369
    %v371 = vsel %vm370, %v363, %v367
    %v372 = vand.u32 2147483647, %v362
    %vm373 = vcmp.eq.f32.partialorder %v372, 8.507059e+37
    %v374 = vand.u32 %v362, 2147483648
    %v375 = vor.u32 1.1754944e-38, %v374
    %v376 = vsel %vm373, %v375, %v371
    %v377 = vmul.f32 1.0, %v376
    %v378 = vadd.f32 %v215, %v356
    %v379 = vxor.u32 %v378, 2147483648
    %v380 = vmul.f32 %v379, 1.442695
    %v381 = vpow.pop %v380
    %v382 = vadd.f32 %v381, 1.0
    %v383 = vrcp.pop %v382
    %v384 = vmul.f32 %v382, %v383
    %v385 = vsub.f32 1.0, %v384
    %v386 = vmul.f32 %v383, %v385
    %v387 = vadd.f32 %v383, %v386
    %vm388 = vweird.f32 %v382
    %vm389 = vweird.f32 %v383
    %vm390 = vmor %vm388, %vm389
    %v391 = vsel %vm390, %v383, %v387
    %v392 = vand.u32 2147483647, %v382
    %vm393 = vcmp.eq.f32.partialorder %v392, 8.507059e+37
    %v394 = vand.u32 %v382, 2147483648
    %v395 = vor.u32 1.1754944e-38, %v394
    %v396 = vsel %vm393, %v395, %v391
    %v397 = vmul.f32 1.0, %v396
    %v398 = vmul.f32 %v397, 0.0
    %v399 = vpack.c.bf16 %v398, %v398
    %400 = vrot.lane.b32.xlu0 %v337, 64
    %v401 = vpop.permute.xlu0 %400
    %402 = vrot.lane.b32.xlu0 %v338, 64
    %v403 = vpop.permute.xlu0 %402
    %v407 = vsel %vm237, %v399, 0
    %409 = vmatpush.bf16.msra.mxu0 0
    %410 = vmatpush.bf16.msra.mxu0 0
    %411 = vmatpush.bf16.msra.mxu0 0
    %412 = vmatpush.bf16.msra.mxu0 0
    %413 = vmatpush.bf16.msra.mxu0 0
    %414 = vmatpush.bf16.msra.mxu0 0
    %415 = vmatpush.bf16.msra.mxu0 %v403
    %416 = vmatpush.bf16.msra.mxu0 %v401
    %417 = vmatmul.bf16.gmra.mxu0 %v407
    %v418 = vpop.f32.mrf.mxu0
    %v419 = vadd.f32 0.0, %v418
    %v420 = vpop.f32.mrf.mxu0
    %421 = vdwg.mxu0
    %423 = vrot.lane.b32.xlu0 %v419, 32
    %v424 = vpop.permute.xlu0 %423
    %v426 = vadd.f32 %v215, %v424
    %v427 = vtanh.pop %v426
    %v428 = vsub.f32 1.0, %v377
    %v429 = vmul.f32 %v428, 0.0
    %431 = vrot.lane.b32.xlu0 %v427, 64
    %v432 = vpop.permute.xlu0 %431
    %v434 = vmul.f32 %v377, %v432
    %v435 = vadd.f32 %v429, %v434
    %437 = vset.pattern.permute.xlu0 0
    %438 = vperm.xlu0 %437, %v57
    %v439 = vpop.permute.xlu0 %438
    %v441 = vmul.f32 %v439, %v435
    %v442 = vsub.f32 1.0, %v57
    %444 = vset.pattern.permute.xlu0 0
    %445 = vperm.xlu0 %444, %v442
    %v446 = vpop.permute.xlu0 %445
    %v448 = vmul.f32 %v446, 0.0
    %v449 = vadd.f32 %v441, %v448
    %450 = vst.msk [vmem:[#allocation2] sm:$0xff] %vm237, %v328
    %452 = vrot.lane.b32.xlu0 %v449, 64
    %v453 = vpop.permute.xlu0 %452
    %s455 = scalar_lea.vmem [#allocation2], 40
    %vm456 = vcmask 523520
    %457 = vst.msk [vmem:[%s455] sm:$0xff] %vm456, %v453
    %v458 = vpack.c.bf16 %v328, %v328
    %v460 = vsel %vm237, %v458, 0
    %462 = vmatpush.bf16.msra.mxu0 0
    %463 = vmatpush.bf16.msra.mxu0 0
    %464 = vmatpush.bf16.msra.mxu0 0
    %465 = vmatpush.bf16.msra.mxu0 0
    %466 = vmatpush.bf16.msra.mxu0 0
    %467 = vmatpush.bf16.msra.mxu0 0
    %468 = vmatpush.bf16.msra.mxu0 %v234
    %469 = vmatpush.bf16.msra.mxu0 %v233
    %470 = vmatmul.bf16.gmra.mxu0 %v460
    %v471 = vpop.f32.mrf.mxu0
    %v472 = vadd.f32 0.0, %v471
    %v473 = vpop.f32.mrf.mxu0
    %474 = vdwg.mxu0
    %v475 = vadd.f32 %v181, %v472
    %v476 = vxor.u32 %v475, 2147483648
    %v477 = vmul.f32 %v476, 1.442695
    %v478 = vpow.pop %v477
    %v479 = vadd.f32 %v478, 1.0
    %v480 = vrcp.pop %v479
    %v481 = vmul.f32 %v479, %v480
    %v482 = vsub.f32 1.0, %v481
    %v483 = vmul.f32 %v480, %v482
    %v484 = vadd.f32 %v480, %v483
    %vm485 = vweird.f32 %v479
    %vm486 = vweird.f32 %v480
    %vm487 = vmor %vm485, %vm486
    %v488 = vsel %vm487, %v480, %v484
    %v489 = vand.u32 2147483647, %v479
    %vm490 = vcmp.eq.f32.partialorder %v489, 8.507059e+37
    %v491 = vand.u32 %v479, 2147483648
    %v492 = vor.u32 1.1754944e-38, %v491
    %v493 = vsel %vm490, %v492, %v488
    %v494 = vmul.f32 1.0, %v493
    %496 = vrot.lane.b32.xlu0 %v328, 32
    %v497 = vpop.permute.xlu0 %496
    %v499 = vmul.f32 %v494, %v497
    %v500 = vpack.c.bf16 %v499, %v499
    %502 = vrot.lane.b32.xlu0 %v500, 96
    %v503 = vpop.permute.xlu0 %502
    %v505 = vsel %vm237, %v503, 0
    %507 = vmatpush.bf16.msra.mxu0 0
    %508 = vmatpush.bf16.msra.mxu0 0
    %509 = vmatpush.bf16.msra.mxu0 0
    %510 = vmatpush.bf16.msra.mxu0 0
    %511 = vmatpush.bf16.msra.mxu0 0
    %512 = vmatpush.bf16.msra.mxu0 0
    %513 = vmatpush.bf16.msra.mxu0 %v282
    %514 = vmatpush.bf16.msra.mxu0 %v280
    %515 = vmatmul.bf16.gmra.mxu0 %v505
    %v516 = vpop.f32.mrf.mxu0
    %v517 = vadd.f32 0.0, %v516
    %v518 = vpop.f32.mrf.mxu0
    %519 = vdwg.mxu0
    %521 = vrot.lane.b32.xlu0 %v517, 64
    %v522 = vpop.permute.xlu0 %521
    %v524 = vadd.f32 %v181, %v522
    %v525 = vtanh.pop %v524
    %v526 = vsub.f32 1.0, %v494
    %v527 = vmul.f32 %v526, %v328
    %529 = vrot.lane.b32.xlu0 %v525, 64
    %v530 = vpop.permute.xlu0 %529
    %v532 = vmul.f32 %v494, %v530
    %v533 = vadd.f32 %v527, %v532
    %535 = vset.pattern.permute.xlu0 0
    %536 = vperm.xlu0 %535, %v53
    %v537 = vpop.permute.xlu0 %536
    %v539 = vmul.f32 %v537, %v533
    %v540 = vsub.f32 1.0, %v53
    %542 = vset.pattern.permute.xlu0 0
    %543 = vperm.xlu0 %542, %v540
    %v544 = vpop.permute.xlu0 %543
    %v546 = vmul.f32 %v544, %v328
    %v547 = vadd.f32 %v539, %v546
    %v548 = vpack.c.bf16 %v449, %v449
    %550 = vrot.lane.b32.xlu0 %v548, 32
    %v551 = vpop.permute.xlu0 %550
    %v553 = vsel %vm237, %v551, 0
    %555 = vmatpush.bf16.msra.mxu0 0
    %556 = vmatpush.bf16.msra.mxu0 0
    %557 = vmatpush.bf16.msra.mxu0 0
    %558 = vmatpush.bf16.msra.mxu0 0
    %559 = vmatpush.bf16.msra.mxu0 0
    %560 = vmatpush.bf16.msra.mxu0 0
    %561 = vmatpush.bf16.msra.mxu0 %v338
    %562 = vmatpush.bf16.msra.mxu0 %v337
    %563 = vmatmul.bf16.gmra.mxu0 %v553
    %v564 = vpop.f32.mrf.mxu0
    %v565 = vadd.f32 0.0, %v564
    %v566 = vpop.f32.mrf.mxu0
    %567 = vdwg.mxu0
    %569 = vrot.lane.b32.xlu0 %v565, 96
    %v570 = vpop.permute.xlu0 %569
    %v572 = vadd.f32 %v189, %v570
    %v573 = vxor.u32 %v572, 2147483648
    %v574 = vmul.f32 %v573, 1.442695
    %v575 = vpow.pop %v574
    %v576 = vadd.f32 %v575, 1.0
    %v577 = vrcp.pop %v576
    %v578 = vmul.f32 %v576, %v577
    %v579 = vsub.f32 1.0, %v578
    %v580 = vmul.f32 %v577, %v579
    %v581 = vadd.f32 %v577, %v580
    %vm582 = vweird.f32 %v576
    %vm583 = vweird.f32 %v577
    %vm584 = vmor %vm582, %vm583
    %v585 = vsel %vm584, %v577, %v581
    %v586 = vand.u32 2147483647, %v576
    %vm587 = vcmp.eq.f32.partialorder %v586, 8.507059e+37
    %v588 = vand.u32 %v576, 2147483648
    %v589 = vor.u32 1.1754944e-38, %v588
    %v590 = vsel %vm587, %v589, %v585
    %v591 = vmul.f32 1.0, %v590
    %v592 = vadd.f32 %v213, %v570
    %v593 = vxor.u32 %v592, 2147483648
    %v594 = vmul.f32 %v593, 1.442695
    %v595 = vpow.pop %v594
    %v596 = vadd.f32 %v595, 1.0
    %v597 = vrcp.pop %v596
    %v598 = vmul.f32 %v596, %v597
    %v599 = vsub.f32 1.0, %v598
    %v600 = vmul.f32 %v597, %v599
    %v601 = vadd.f32 %v597, %v600
    %vm602 = vweird.f32 %v596
    %vm603 = vweird.f32 %v597
    %vm604 = vmor %vm602, %vm603
    %v605 = vsel %vm604, %v597, %v601
    %v606 = vand.u32 2147483647, %v596
    %vm607 = vcmp.eq.f32.partialorder %v606, 8.507059e+37
    %v608 = vand.u32 %v596, 2147483648
    %v609 = vor.u32 1.1754944e-38, %v608
    %v610 = vsel %vm607, %v609, %v605
    %v611 = vmul.f32 1.0, %v610
    %612 = vrot.lane.b32.xlu0 %v449, 32
    %v613 = vpop.permute.xlu0 %612
    %v615 = vmul.f32 %v611, %v613
    %v616 = vpack.c.bf16 %v615, %v615
    %v618 = vsel %vm237, %v616, 0
    %620 = vmatpush.bf16.msra.mxu0 0
    %621 = vmatpush.bf16.msra.mxu0 0
    %622 = vmatpush.bf16.msra.mxu0 0
    %623 = vmatpush.bf16.msra.mxu0 0
    %624 = vmatpush.bf16.msra.mxu0 0
    %625 = vmatpush.bf16.msra.mxu0 0
    %626 = vmatpush.bf16.msra.mxu0 %v403
    %627 = vmatpush.bf16.msra.mxu0 %v401
    %628 = vmatmul.bf16.gmra.mxu0 %v618
    %v629 = vpop.f32.mrf.mxu0
    %v630 = vadd.f32 0.0, %v629
    %v631 = vpop.f32.mrf.mxu0
    %632 = vdwg.mxu0
    %634 = vrot.lane.b32.xlu0 %v630, 32
    %v635 = vpop.permute.xlu0 %634
    %v637 = vadd.f32 %v213, %v635
    %v638 = vtanh.pop %v637
    %v639 = vsub.f32 1.0, %v591
    %v640 = vmul.f32 %v639, %v449
    %642 = vrot.lane.b32.xlu0 %v638, 64
    %v643 = vpop.permute.xlu0 %642
    %v645 = vmul.f32 %v591, %v643
    %v646 = vadd.f32 %v640, %v645
    %648 = vset.pattern.permute.xlu0 0
    %649 = vperm.xlu0 %648, %v56
    %v650 = vpop.permute.xlu0 %649
    %v652 = vmul.f32 %v650, %v646
    %v653 = vsub.f32 1.0, %v56
    %655 = vset.pattern.permute.xlu0 0
    %656 = vperm.xlu0 %655, %v653
    %v657 = vpop.permute.xlu0 %656
    %v659 = vmul.f32 %v657, %v449
    %v660 = vadd.f32 %v652, %v659
    %s661 = scalar_lea.vmem [#allocation2], 8
    %662 = vst.msk [vmem:[%s661] sm:$0xff] %vm237, %v547
    %664 = vrot.lane.b32.xlu0 %v660, 64
    %v665 = vpop.permute.xlu0 %664
    %s667 = scalar_lea.vmem [#allocation2], 32
    %668 = vst.msk [vmem:[%s667] sm:$0xff] %vm456, %v665
    %v669 = vpack.c.bf16 %v547, %v547
    %v671 = vsel %vm237, %v669, 0
    %673 = vmatpush.bf16.msra.mxu0 0
    %674 = vmatpush.bf16.msra.mxu0 0
    %675 = vmatpush.bf16.msra.mxu0 0
    %676 = vmatpush.bf16.msra.mxu0 0
    %677 = vmatpush.bf16.msra.mxu0 0
    %678 = vmatpush.bf16.msra.mxu0 0
    %679 = vmatpush.bf16.msra.mxu0 %v234
    %680 = vmatpush.bf16.msra.mxu0 %v233
    %681 = vmatmul.bf16.gmra.mxu0 %v671
    %v682 = vpop.f32.mrf.mxu0
    %v683 = vadd.f32 0.0, %v682
    %v684 = vpop.f32.mrf.mxu0
    %685 = vdwg.mxu0
    %v686 = vadd.f32 %v184, %v683
    %v687 = vxor.u32 %v686, 2147483648
    %v688 = vmul.f32 %v687, 1.442695
    %v689 = vpow.pop %v688
    %v690 = vadd.f32 %v689, 1.0
    %v691 = vrcp.pop %v690
    %v692 = vmul.f32 %v690, %v691
    %v693 = vsub.f32 1.0, %v692
    %v694 = vmul.f32 %v691, %v693
    %v695 = vadd.f32 %v691, %v694
    %vm696 = vweird.f32 %v690
    %vm697 = vweird.f32 %v691
    %vm698 = vmor %vm696, %vm697
    %v699 = vsel %vm698, %v691, %v695
    %v700 = vand.u32 2147483647, %v690
    %vm701 = vcmp.eq.f32.partialorder %v700, 8.507059e+37
    %v702 = vand.u32 %v690, 2147483648
    %v703 = vor.u32 1.1754944e-38, %v702
    %v704 = vsel %vm701, %v703, %v699
    %v705 = vmul.f32 1.0, %v704
    %707 = vrot.lane.b32.xlu0 %v547, 32
    %v708 = vpop.permute.xlu0 %707
    %v710 = vmul.f32 %v705, %v708
    %v711 = vpack.c.bf16 %v710, %v710
    %713 = vrot.lane.b32.xlu0 %v711, 96
    %v714 = vpop.permute.xlu0 %713
    %v716 = vsel %vm237, %v714, 0
    %718 = vmatpush.bf16.msra.mxu0 0
    %719 = vmatpush.bf16.msra.mxu0 0
    %720 = vmatpush.bf16.msra.mxu0 0
    %721 = vmatpush.bf16.msra.mxu0 0
    %722 = vmatpush.bf16.msra.mxu0 0
    %723 = vmatpush.bf16.msra.mxu0 0
    %724 = vmatpush.bf16.msra.mxu0 %v282
    %725 = vmatpush.bf16.msra.mxu0 %v280
    %726 = vmatmul.bf16.gmra.mxu0 %v716
    %v727 = vpop.f32.mrf.mxu0
    %v728 = vadd.f32 0.0, %v727
    %v729 = vpop.f32.mrf.mxu0
    %730 = vdwg.mxu0
    %732 = vrot.lane.b32.xlu0 %v728, 64
    %v733 = vpop.permute.xlu0 %732
    %v735 = vadd.f32 %v184, %v733
    %v736 = vtanh.pop %v735
    %v737 = vsub.f32 1.0, %v705
    %v738 = vmul.f32 %v737, %v547
    %740 = vrot.lane.b32.xlu0 %v736, 64
    %v741 = vpop.permute.xlu0 %740
    %v743 = vmul.f32 %v705, %v741
    %v744 = vadd.f32 %v738, %v743
    %746 = vset.pattern.permute.xlu0 0
    %747 = vperm.xlu0 %746, %v54
    %v748 = vpop.permute.xlu0 %747
    %v750 = vmul.f32 %v748, %v744
    %v751 = vsub.f32 1.0, %v54
    %753 = vset.pattern.permute.xlu0 0
    %754 = vperm.xlu0 %753, %v751
    %v755 = vpop.permute.xlu0 %754
    %v757 = vmul.f32 %v755, %v547
    %v758 = vadd.f32 %v750, %v757
    %v759 = vpack.c.bf16 %v660, %v660
    %761 = vrot.lane.b32.xlu0 %v759, 32
    %v762 = vpop.permute.xlu0 %761
    %v764 = vsel %vm237, %v762, 0
    %766 = vmatpush.bf16.msra.mxu0 0
    %767 = vmatpush.bf16.msra.mxu0 0
    %768 = vmatpush.bf16.msra.mxu0 0
    %769 = vmatpush.bf16.msra.mxu0 0
    %770 = vmatpush.bf16.msra.mxu0 0
    %771 = vmatpush.bf16.msra.mxu0 0
    %772 = vmatpush.bf16.msra.mxu0 %v338
    %773 = vmatpush.bf16.msra.mxu0 %v337
    %774 = vmatmul.bf16.gmra.mxu0 %v764
    %v775 = vpop.f32.mrf.mxu0
    %v776 = vadd.f32 0.0, %v775
    %v777 = vpop.f32.mrf.mxu0
    %778 = vdwg.mxu0
    %780 = vrot.lane.b32.xlu0 %v776, 96
    %v781 = vpop.permute.xlu0 %780
    %v783 = vadd.f32 %v186, %v781
    %v784 = vxor.u32 %v783, 2147483648
    %v785 = vmul.f32 %v784, 1.442695
    %v786 = vpow.pop %v785
    %v787 = vadd.f32 %v786, 1.0
    %v788 = vrcp.pop %v787
    %v789 = vmul.f32 %v787, %v788
    %v790 = vsub.f32 1.0, %v789
    %v791 = vmul.f32 %v788, %v790
    %v792 = vadd.f32 %v788, %v791
    %vm793 = vweird.f32 %v787
    %vm794 = vweird.f32 %v788
    %vm795 = vmor %vm793, %vm794
    %v796 = vsel %vm795, %v788, %v792
    %v797 = vand.u32 2147483647, %v787
    %vm798 = vcmp.eq.f32.partialorder %v797, 8.507059e+37
    %v799 = vand.u32 %v787, 2147483648
    %v800 = vor.u32 1.1754944e-38, %v799
    %v801 = vsel %vm798, %v800, %v796
    %v802 = vmul.f32 1.0, %v801
    %v803 = vadd.f32 %v210, %v781
    %v804 = vxor.u32 %v803, 2147483648
    %v805 = vmul.f32 %v804, 1.442695
    %v806 = vpow.pop %v805
    %v807 = vadd.f32 %v806, 1.0
    %v808 = vrcp.pop %v807
    %v809 = vmul.f32 %v807, %v808
    %v810 = vsub.f32 1.0, %v809
    %v811 = vmul.f32 %v808, %v810
    %v812 = vadd.f32 %v808, %v811
    %vm813 = vweird.f32 %v807
    %vm814 = vweird.f32 %v808
    %vm815 = vmor %vm813, %vm814
    %v816 = vsel %vm815, %v808, %v812
    %v817 = vand.u32 2147483647, %v807
    %vm818 = vcmp.eq.f32.partialorder %v817, 8.507059e+37
    %v819 = vand.u32 %v807, 2147483648
    %v820 = vor.u32 1.1754944e-38, %v819
    %v821 = vsel %vm818, %v820, %v816
    %v822 = vmul.f32 1.0, %v821
    %823 = vrot.lane.b32.xlu0 %v660, 32
    %v824 = vpop.permute.xlu0 %823
    %v826 = vmul.f32 %v822, %v824
    %v827 = vpack.c.bf16 %v826, %v826
    %v829 = vsel %vm237, %v827, 0
    %831 = vmatpush.bf16.msra.mxu0 0
    %832 = vmatpush.bf16.msra.mxu0 0
    %833 = vmatpush.bf16.msra.mxu0 0
    %834 = vmatpush.bf16.msra.mxu0 0
    %835 = vmatpush.bf16.msra.mxu0 0
    %836 = vmatpush.bf16.msra.mxu0 0
    %837 = vmatpush.bf16.msra.mxu0 %v403
    %838 = vmatpush.bf16.msra.mxu0 %v401
    %839 = vmatmul.bf16.gmra.mxu0 %v829
    %v840 = vpop.f32.mrf.mxu0
    %v841 = vadd.f32 0.0, %v840
    %v842 = vpop.f32.mrf.mxu0
    %843 = vdwg.mxu0
    %845 = vrot.lane.b32.xlu0 %v841, 32
    %v846 = vpop.permute.xlu0 %845
    %v848 = vadd.f32 %v210, %v846
    %v849 = vtanh.pop %v848
    %v850 = vsub.f32 1.0, %v802
    %v851 = vmul.f32 %v850, %v660
    %853 = vrot.lane.b32.xlu0 %v849, 64
    %v854 = vpop.permute.xlu0 %853
    %v856 = vmul.f32 %v802, %v854
    %v857 = vadd.f32 %v851, %v856
    %859 = vset.pattern.permute.xlu0 0
    %860 = vperm.xlu0 %859, %v55
    %v861 = vpop.permute.xlu0 %860
    %v863 = vmul.f32 %v861, %v857
    %v864 = vsub.f32 1.0, %v55
    %866 = vset.pattern.permute.xlu0 0
    %867 = vperm.xlu0 %866, %v864
    %v868 = vpop.permute.xlu0 %867
    %v870 = vmul.f32 %v868, %v660
    %v871 = vadd.f32 %v863, %v870
    %s872 = scalar_lea.vmem [#allocation2], 16
    %873 = vst.msk [vmem:[%s872] sm:$0xff] %vm237, %v758
    %875 = vrot.lane.b32.xlu0 %v871, 64
    %v876 = vpop.permute.xlu0 %875
    %s878 = scalar_lea.vmem [#allocation2], 24
    %879 = vst.msk [vmem:[%s878] sm:$0xff] %vm456, %v876
    %v880 = vpack.c.bf16 %v758, %v758
    %v882 = vsel %vm237, %v880, 0
    %884 = vmatpush.bf16.msra.mxu0 0
    %885 = vmatpush.bf16.msra.mxu0 0
    %886 = vmatpush.bf16.msra.mxu0 0
    %887 = vmatpush.bf16.msra.mxu0 0
    %888 = vmatpush.bf16.msra.mxu0 0
    %889 = vmatpush.bf16.msra.mxu0 0
    %890 = vmatpush.bf16.msra.mxu0 %v234
    %891 = vmatpush.bf16.msra.mxu0 %v233
    %892 = vmatmul.bf16.gmra.mxu0 %v882
    %v893 = vpop.f32.mrf.mxu0
    %v894 = vadd.f32 0.0, %v893
    %v895 = vpop.f32.mrf.mxu0
    %896 = vdwg.mxu0
    %v897 = vadd.f32 %v186, %v894
    %v898 = vxor.u32 %v897, 2147483648
    %v899 = vmul.f32 %v898, 1.442695
    %v900 = vpow.pop %v899
    %v901 = vadd.f32 %v900, 1.0
    %v902 = vrcp.pop %v901
    %v903 = vmul.f32 %v901, %v902
    %v904 = vsub.f32 1.0, %v903
    %v905 = vmul.f32 %v902, %v904
    %v906 = vadd.f32 %v902, %v905
    %vm907 = vweird.f32 %v901
    %vm908 = vweird.f32 %v902
    %vm909 = vmor %vm907, %vm908
    %v910 = vsel %vm909, %v902, %v906
    %v911 = vand.u32 2147483647, %v901
    %vm912 = vcmp.eq.f32.partialorder %v911, 8.507059e+37
    %v913 = vand.u32 %v901, 2147483648
    %v914 = vor.u32 1.1754944e-38, %v913
    %v915 = vsel %vm912, %v914, %v910
    %v916 = vmul.f32 1.0, %v915
    %918 = vrot.lane.b32.xlu0 %v758, 32
    %v919 = vpop.permute.xlu0 %918
    %v921 = vmul.f32 %v916, %v919
    %v922 = vpack.c.bf16 %v921, %v921
    %924 = vrot.lane.b32.xlu0 %v922, 96
    %v925 = vpop.permute.xlu0 %924
    %v927 = vsel %vm237, %v925, 0
    %929 = vmatpush.bf16.msra.mxu0 0
    %930 = vmatpush.bf16.msra.mxu0 0
    %931 = vmatpush.bf16.msra.mxu0 0
    %932 = vmatpush.bf16.msra.mxu0 0
    %933 = vmatpush.bf16.msra.mxu0 0
    %934 = vmatpush.bf16.msra.mxu0 0
    %935 = vmatpush.bf16.msra.mxu0 %v282
    %936 = vmatpush.bf16.msra.mxu0 %v280
    %937 = vmatmul.bf16.gmra.mxu0 %v927
    %v938 = vpop.f32.mrf.mxu0
    %v939 = vadd.f32 0.0, %v938
    %v940 = vpop.f32.mrf.mxu0
    %941 = vdwg.mxu0
    %943 = vrot.lane.b32.xlu0 %v939, 64
    %v944 = vpop.permute.xlu0 %943
    %v946 = vadd.f32 %v186, %v944
    %v947 = vtanh.pop %v946
    %v948 = vsub.f32 1.0, %v916
    %v949 = vmul.f32 %v948, %v758
    %951 = vrot.lane.b32.xlu0 %v947, 64
    %v952 = vpop.permute.xlu0 %951
    %v954 = vmul.f32 %v916, %v952
    %v955 = vadd.f32 %v949, %v954
    %v956 = vmul.f32 %v861, %v955
    %v957 = vmul.f32 %v868, %v758
    %v958 = vadd.f32 %v956, %v957
    %v959 = vpack.c.bf16 %v871, %v871
    %961 = vrot.lane.b32.xlu0 %v959, 32
    %v962 = vpop.permute.xlu0 %961
    %v964 = vsel %vm237, %v962, 0
    %966 = vmatpush.bf16.msra.mxu0 0
    %967 = vmatpush.bf16.msra.mxu0 0
    %968 = vmatpush.bf16.msra.mxu0 0
    %969 = vmatpush.bf16.msra.mxu0 0
    %970 = vmatpush.bf16.msra.mxu0 0
    %971 = vmatpush.bf16.msra.mxu0 0
    %972 = vmatpush.bf16.msra.mxu0 %v338
    %973 = vmatpush.bf16.msra.mxu0 %v337
    %974 = vmatmul.bf16.gmra.mxu0 %v964
    %v975 = vpop.f32.mrf.mxu0
    %v976 = vadd.f32 0.0, %v975
    %v977 = vpop.f32.mrf.mxu0
    %978 = vdwg.mxu0
    %980 = vrot.lane.b32.xlu0 %v976, 96
    %v981 = vpop.permute.xlu0 %980
    %v983 = vadd.f32 %v184, %v981
    %v984 = vxor.u32 %v983, 2147483648
    %v985 = vmul.f32 %v984, 1.442695
    %v986 = vpow.pop %v985
    %v987 = vadd.f32 %v986, 1.0
    %v988 = vrcp.pop %v987
    %v989 = vmul.f32 %v987, %v988
    %v990 = vsub.f32 1.0, %v989
    %v991 = vmul.f32 %v988, %v990
    %v992 = vadd.f32 %v988, %v991
    %vm993 = vweird.f32 %v987
    %vm994 = vweird.f32 %v988
    %vm995 = vmor %vm993, %vm994
    %v996 = vsel %vm995, %v988, %v992
    %v997 = vand.u32 2147483647, %v987
    %vm998 = vcmp.eq.f32.partialorder %v997, 8.507059e+37
    %v999 = vand.u32 %v987, 2147483648
    %v1000 = vor.u32 1.1754944e-38, %v999
    %v1001 = vsel %vm998, %v1000, %v996
    %v1002 = vmul.f32 1.0, %v1001
    %v1003 = vadd.f32 %v208, %v981
    %v1004 = vxor.u32 %v1003, 2147483648
    %v1005 = vmul.f32 %v1004, 1.442695
    %v1006 = vpow.pop %v1005
    %v1007 = vadd.f32 %v1006, 1.0
    %v1008 = vrcp.pop %v1007
    %v1009 = vmul.f32 %v1007, %v1008
    %v1010 = vsub.f32 1.0, %v1009
    %v1011 = vmul.f32 %v1008, %v1010
    %v1012 = vadd.f32 %v1008, %v1011
    %vm1013 = vweird.f32 %v1007
    %vm1014 = vweird.f32 %v1008
    %vm1015 = vmor %vm1013, %vm1014
    %v1016 = vsel %vm1015, %v1008, %v1012
    %v1017 = vand.u32 2147483647, %v1007
    %vm1018 = vcmp.eq.f32.partialorder %v1017, 8.507059e+37
    %v1019 = vand.u32 %v1007, 2147483648
    %v1020 = vor.u32 1.1754944e-38, %v1019
    %v1021 = vsel %vm1018, %v1020, %v1016
    %v1022 = vmul.f32 1.0, %v1021
    %1023 = vrot.lane.b32.xlu0 %v871, 32
    %v1024 = vpop.permute.xlu0 %1023
    %v1026 = vmul.f32 %v1022, %v1024
    %v1027 = vpack.c.bf16 %v1026, %v1026
    %v1029 = vsel %vm237, %v1027, 0
    %1031 = vmatpush.bf16.msra.mxu0 0
    %1032 = vmatpush.bf16.msra.mxu0 0
    %1033 = vmatpush.bf16.msra.mxu0 0
    %1034 = vmatpush.bf16.msra.mxu0 0
    %1035 = vmatpush.bf16.msra.mxu0 0
    %1036 = vmatpush.bf16.msra.mxu0 0
    %1037 = vmatpush.bf16.msra.mxu0 %v403
    %1038 = vmatpush.bf16.msra.mxu0 %v401
    %1039 = vmatmul.bf16.gmra.mxu0 %v1029
    %v1040 = vpop.f32.mrf.mxu0
    %v1041 = vadd.f32 0.0, %v1040
    %v1042 = vpop.f32.mrf.mxu0
    %1043 = vdwg.mxu0
    %1045 = vrot.lane.b32.xlu0 %v1041, 32
    %v1046 = vpop.permute.xlu0 %1045
    %v1048 = vadd.f32 %v208, %v1046
    %v1049 = vtanh.pop %v1048
    %v1050 = vsub.f32 1.0, %v1002
    %v1051 = vmul.f32 %v1050, %v871
    %1053 = vrot.lane.b32.xlu0 %v1049, 64
    %v1054 = vpop.permute.xlu0 %1053
    %v1056 = vmul.f32 %v1002, %v1054
    %v1057 = vadd.f32 %v1051, %v1056
    %v1058 = vmul.f32 %v748, %v1057
    %v1059 = vmul.f32 %v755, %v871
    %v1060 = vadd.f32 %v1058, %v1059
    %1061 = vst.msk [vmem:[%s878] sm:$0xff] %vm237, %v958
    %1063 = vrot.lane.b32.xlu0 %v1060, 64
    %v1064 = vpop.permute.xlu0 %1063
    %1066 = vst.msk [vmem:[%s872] sm:$0xff] %vm456, %v1064
    %v1067 = vpack.c.bf16 %v958, %v958
    %v1069 = vsel %vm237, %v1067, 0
    %1071 = vmatpush.bf16.msra.mxu0 0
    %1072 = vmatpush.bf16.msra.mxu0 0
    %1073 = vmatpush.bf16.msra.mxu0 0
    %1074 = vmatpush.bf16.msra.mxu0 0
    %1075 = vmatpush.bf16.msra.mxu0 0
    %1076 = vmatpush.bf16.msra.mxu0 0
    %1077 = vmatpush.bf16.msra.mxu0 %v234
    %1078 = vmatpush.bf16.msra.mxu0 %v233
    %1079 = vmatmul.bf16.gmra.mxu0 %v1069
    %v1080 = vpop.f32.mrf.mxu0
    %v1081 = vadd.f32 0.0, %v1080
    %v1082 = vpop.f32.mrf.mxu0
    %1083 = vdwg.mxu0
    %v1084 = vadd.f32 %v189, %v1081
    %v1085 = vxor.u32 %v1084, 2147483648
    %v1086 = vmul.f32 %v1085, 1.442695
    %v1087 = vpow.pop %v1086
    %v1088 = vadd.f32 %v1087, 1.0
    %v1089 = vrcp.pop %v1088
    %v1090 = vmul.f32 %v1088, %v1089
    %v1091 = vsub.f32 1.0, %v1090
    %v1092 = vmul.f32 %v1089, %v1091
    %v1093 = vadd.f32 %v1089, %v1092
    %vm1094 = vweird.f32 %v1088
    %vm1095 = vweird.f32 %v1089
    %vm1096 = vmor %vm1094, %vm1095
    %v1097 = vsel %vm1096, %v1089, %v1093
    %v1098 = vand.u32 2147483647, %v1088
    %vm1099 = vcmp.eq.f32.partialorder %v1098, 8.507059e+37
    %v1100 = vand.u32 %v1088, 2147483648
    %v1101 = vor.u32 1.1754944e-38, %v1100
    %v1102 = vsel %vm1099, %v1101, %v1097
    %v1103 = vmul.f32 1.0, %v1102
    %1105 = vrot.lane.b32.xlu0 %v958, 32
    %v1106 = vpop.permute.xlu0 %1105
    %v1108 = vmul.f32 %v1103, %v1106
    %v1109 = vpack.c.bf16 %v1108, %v1108
    %1111 = vrot.lane.b32.xlu0 %v1109, 96
    %v1112 = vpop.permute.xlu0 %1111
    %v1114 = vsel %vm237, %v1112, 0
    %1116 = vmatpush.bf16.msra.mxu0 0
    %1117 = vmatpush.bf16.msra.mxu0 0
    %1118 = vmatpush.bf16.msra.mxu0 0
    %1119 = vmatpush.bf16.msra.mxu0 0
    %1120 = vmatpush.bf16.msra.mxu0 0
    %1121 = vmatpush.bf16.msra.mxu0 0
    %1122 = vmatpush.bf16.msra.mxu0 %v282
    %1123 = vmatpush.bf16.msra.mxu0 %v280
    %1124 = vmatmul.bf16.gmra.mxu0 %v1114
    %v1125 = vpop.f32.mrf.mxu0
    %v1126 = vadd.f32 0.0, %v1125
    %v1127 = vpop.f32.mrf.mxu0
    %1128 = vdwg.mxu0
    %1130 = vrot.lane.b32.xlu0 %v1126, 64
    %v1131 = vpop.permute.xlu0 %1130
    %v1133 = vadd.f32 %v189, %v1131
    %v1134 = vtanh.pop %v1133
    %v1135 = vsub.f32 1.0, %v1103
    %v1136 = vmul.f32 %v1135, %v958
    %1138 = vrot.lane.b32.xlu0 %v1134, 64
    %v1139 = vpop.permute.xlu0 %1138
    %v1141 = vmul.f32 %v1103, %v1139
    %v1142 = vadd.f32 %v1136, %v1141
    %v1143 = vmul.f32 %v650, %v1142
    %v1144 = vmul.f32 %v657, %v958
    %v1145 = vadd.f32 %v1143, %v1144
    %v1146 = vpack.c.bf16 %v1060, %v1060
    %1148 = vrot.lane.b32.xlu0 %v1146, 32
    %v1149 = vpop.permute.xlu0 %1148
    %v1151 = vsel %vm237, %v1149, 0
    %1153 = vmatpush.bf16.msra.mxu0 0
    %1154 = vmatpush.bf16.msra.mxu0 0
    %1155 = vmatpush.bf16.msra.mxu0 0
    %1156 = vmatpush.bf16.msra.mxu0 0
    %1157 = vmatpush.bf16.msra.mxu0 0
    %1158 = vmatpush.bf16.msra.mxu0 0
    %1159 = vmatpush.bf16.msra.mxu0 %v338
    %1160 = vmatpush.bf16.msra.mxu0 %v337
    %1161 = vmatmul.bf16.gmra.mxu0 %v1151
    %v1162 = vpop.f32.mrf.mxu0
    %v1163 = vadd.f32 0.0, %v1162
    %v1164 = vpop.f32.mrf.mxu0
    %1165 = vdwg.mxu0
    %1167 = vrot.lane.b32.xlu0 %v1163, 96
    %v1168 = vpop.permute.xlu0 %1167
    %v1170 = vadd.f32 %v181, %v1168
    %v1171 = vxor.u32 %v1170, 2147483648
    %v1172 = vmul.f32 %v1171, 1.442695
    %v1173 = vpow.pop %v1172
    %v1174 = vadd.f32 %v1173, 1.0
    %v1175 = vrcp.pop %v1174
    %v1176 = vmul.f32 %v1174, %v1175
    %v1177 = vsub.f32 1.0, %v1176
    %v1178 = vmul.f32 %v1175, %v1177
    %v1179 = vadd.f32 %v1175, %v1178
    %vm1180 = vweird.f32 %v1174
    %vm1181 = vweird.f32 %v1175
    %vm1182 = vmor %vm1180, %vm1181
    %v1183 = vsel %vm1182, %v1175, %v1179
    %v1184 = vand.u32 2147483647, %v1174
    %vm1185 = vcmp.eq.f32.partialorder %v1184, 8.507059e+37
    %v1186 = vand.u32 %v1174, 2147483648
    %v1187 = vor.u32 1.1754944e-38, %v1186
    %v1188 = vsel %vm1185, %v1187, %v1183
    %v1189 = vmul.f32 1.0, %v1188
    %v1190 = vadd.f32 %v205, %v1168
    %v1191 = vxor.u32 %v1190, 2147483648
    %v1192 = vmul.f32 %v1191, 1.442695
    %v1193 = vpow.pop %v1192
    %v1194 = vadd.f32 %v1193, 1.0
    %v1195 = vrcp.pop %v1194
    %v1196 = vmul.f32 %v1194, %v1195
    %v1197 = vsub.f32 1.0, %v1196
    %v1198 = vmul.f32 %v1195, %v1197
    %v1199 = vadd.f32 %v1195, %v1198
    %vm1200 = vweird.f32 %v1194
    %vm1201 = vweird.f32 %v1195
    %vm1202 = vmor %vm1200, %vm1201
    %v1203 = vsel %vm1202, %v1195, %v1199
    %v1204 = vand.u32 2147483647, %v1194
    %vm1205 = vcmp.eq.f32.partialorder %v1204, 8.507059e+37
    %v1206 = vand.u32 %v1194, 2147483648
    %v1207 = vor.u32 1.1754944e-38, %v1206
    %v1208 = vsel %vm1205, %v1207, %v1203
    %v1209 = vmul.f32 1.0, %v1208
    %1210 = vrot.lane.b32.xlu0 %v1060, 32
    %v1211 = vpop.permute.xlu0 %1210
    %v1213 = vmul.f32 %v1209, %v1211
    %v1214 = vpack.c.bf16 %v1213, %v1213
    %v1216 = vsel %vm237, %v1214, 0
    %1218 = vmatpush.bf16.msra.mxu0 0
    %1219 = vmatpush.bf16.msra.mxu0 0
    %1220 = vmatpush.bf16.msra.mxu0 0
    %1221 = vmatpush.bf16.msra.mxu0 0
    %1222 = vmatpush.bf16.msra.mxu0 0
    %1223 = vmatpush.bf16.msra.mxu0 0
    %1224 = vmatpush.bf16.msra.mxu0 %v403
    %1225 = vmatpush.bf16.msra.mxu0 %v401
    %1226 = vmatmul.bf16.gmra.mxu0 %v1216
    %v1227 = vpop.f32.mrf.mxu0
    %v1228 = vadd.f32 0.0, %v1227
    %v1229 = vpop.f32.mrf.mxu0
    %1230 = vdwg.mxu0
    %1232 = vrot.lane.b32.xlu0 %v1228, 32
    %v1233 = vpop.permute.xlu0 %1232
    %v1235 = vadd.f32 %v205, %v1233
    %v1236 = vtanh.pop %v1235
    %v1237 = vsub.f32 1.0, %v1189
    %v1238 = vmul.f32 %v1237, %v1060
    %1240 = vrot.lane.b32.xlu0 %v1236, 64
    %v1241 = vpop.permute.xlu0 %1240
    %v1243 = vmul.f32 %v1189, %v1241
    %v1244 = vadd.f32 %v1238, %v1243
    %v1245 = vmul.f32 %v537, %v1244
    %v1246 = vmul.f32 %v544, %v1060
    %v1247 = vadd.f32 %v1245, %v1246
    %1248 = vst.msk [vmem:[%s667] sm:$0xff] %vm237, %v1145
    %1250 = vrot.lane.b32.xlu0 %v1247, 64
    %v1251 = vpop.permute.xlu0 %1250
    %1253 = vst.msk [vmem:[%s661] sm:$0xff] %vm456, %v1251
    %v1254 = vpack.c.bf16 %v1145, %v1145
    %v1256 = vsel %vm237, %v1254, 0
    %1258 = vmatpush.bf16.msra.mxu0 0
    %1259 = vmatpush.bf16.msra.mxu0 0
    %1260 = vmatpush.bf16.msra.mxu0 0
    %1261 = vmatpush.bf16.msra.mxu0 0
    %1262 = vmatpush.bf16.msra.mxu0 0
    %1263 = vmatpush.bf16.msra.mxu0 0
    %1264 = vmatpush.bf16.msra.mxu0 %v234
    %1265 = vmatpush.bf16.msra.mxu0 %v233
    %1266 = vmatmul.bf16.gmra.mxu0 %v1256
    %v1267 = vpop.f32.mrf.mxu0
    %v1268 = vadd.f32 0.0, %v1267
    %v1269 = vpop.f32.mrf.mxu0
    %1270 = vdwg.mxu0
    %v1271 = vadd.f32 %v191, %v1268
    %v1272 = vxor.u32 %v1271, 2147483648
    %v1273 = vmul.f32 %v1272, 1.442695
    %v1274 = vpow.pop %v1273
    %v1275 = vadd.f32 %v1274, 1.0
    %v1276 = vrcp.pop %v1275
    %v1277 = vmul.f32 %v1275, %v1276
    %v1278 = vsub.f32 1.0, %v1277
    %v1279 = vmul.f32 %v1276, %v1278
    %v1280 = vadd.f32 %v1276, %v1279
    %vm1281 = vweird.f32 %v1275
    %vm1282 = vweird.f32 %v1276
    %vm1283 = vmor %vm1281, %vm1282
    %v1284 = vsel %vm1283, %v1276, %v1280
    %v1285 = vand.u32 2147483647, %v1275
    %vm1286 = vcmp.eq.f32.partialorder %v1285, 8.507059e+37
    %v1287 = vand.u32 %v1275, 2147483648
    %v1288 = vor.u32 1.1754944e-38, %v1287
    %v1289 = vsel %vm1286, %v1288, %v1284
    %v1290 = vmul.f32 1.0, %v1289
    %1292 = vrot.lane.b32.xlu0 %v1145, 32
    %v1293 = vpop.permute.xlu0 %1292
    %v1295 = vmul.f32 %v1290, %v1293
    %v1296 = vpack.c.bf16 %v1295, %v1295
    %1298 = vrot.lane.b32.xlu0 %v1296, 96
    %v1299 = vpop.permute.xlu0 %1298
    %v1301 = vsel %vm237, %v1299, 0
    %1303 = vmatpush.bf16.msra.mxu0 0
    %1304 = vmatpush.bf16.msra.mxu0 0
    %1305 = vmatpush.bf16.msra.mxu0 0
    %1306 = vmatpush.bf16.msra.mxu0 0
    %1307 = vmatpush.bf16.msra.mxu0 0
    %1308 = vmatpush.bf16.msra.mxu0 0
    %1309 = vmatpush.bf16.msra.mxu0 %v282
    %1310 = vmatpush.bf16.msra.mxu0 %v280
    %1311 = vmatmul.bf16.gmra.mxu0 %v1301
    %v1312 = vpop.f32.mrf.mxu0
    %v1313 = vadd.f32 0.0, %v1312
    %v1314 = vpop.f32.mrf.mxu0
    %1315 = vdwg.mxu0
    %1317 = vrot.lane.b32.xlu0 %v1313, 64
    %v1318 = vpop.permute.xlu0 %1317
    %v1320 = vadd.f32 %v191, %v1318
    %v1321 = vtanh.pop %v1320
    %v1322 = vsub.f32 1.0, %v1290
    %v1323 = vmul.f32 %v1322, %v1145
    %1325 = vrot.lane.b32.xlu0 %v1321, 64
    %v1326 = vpop.permute.xlu0 %1325
    %v1328 = vmul.f32 %v1290, %v1326
    %v1329 = vadd.f32 %v1323, %v1328
    %v1330 = vmul.f32 %v439, %v1329
    %v1331 = vmul.f32 %v446, %v1145
    %v1332 = vadd.f32 %v1330, %v1331
    %v1333 = vpack.c.bf16 %v1247, %v1247
    %1335 = vrot.lane.b32.xlu0 %v1333, 32
    %v1336 = vpop.permute.xlu0 %1335
    %v1338 = vsel %vm237, %v1336, 0
    %1340 = vmatpush.bf16.msra.mxu0 0
    %1341 = vmatpush.bf16.msra.mxu0 0
    %1342 = vmatpush.bf16.msra.mxu0 0
    %1343 = vmatpush.bf16.msra.mxu0 0
    %1344 = vmatpush.bf16.msra.mxu0 0
    %1345 = vmatpush.bf16.msra.mxu0 0
    %1346 = vmatpush.bf16.msra.mxu0 %v338
    %1347 = vmatpush.bf16.msra.mxu0 %v337
    %1348 = vmatmul.bf16.gmra.mxu0 %v1338
    %v1349 = vpop.f32.mrf.mxu0
    %v1350 = vadd.f32 0.0, %v1349
    %v1351 = vpop.f32.mrf.mxu0
    %1352 = vdwg.mxu0
    %1354 = vrot.lane.b32.xlu0 %v1350, 96
    %v1355 = vpop.permute.xlu0 %1354
    %v1357 = vadd.f32 %v179, %v1355
    %v1358 = vxor.u32 %v1357, 2147483648
    %v1359 = vmul.f32 %v1358, 1.442695
    %v1360 = vpow.pop %v1359
    %v1361 = vadd.f32 %v1360, 1.0
    %v1362 = vrcp.pop %v1361
    %v1363 = vmul.f32 %v1361, %v1362
    %v1364 = vsub.f32 1.0, %v1363
    %v1365 = vmul.f32 %v1362, %v1364
    %v1366 = vadd.f32 %v1362, %v1365
    %vm1367 = vweird.f32 %v1361
    %vm1368 = vweird.f32 %v1362
    %vm1369 = vmor %vm1367, %vm1368
    %v1370 = vsel %vm1369, %v1362, %v1366
    %v1371 = vand.u32 2147483647, %v1361
    %vm1372 = vcmp.eq.f32.partialorder %v1371, 8.507059e+37
    %v1373 = vand.u32 %v1361, 2147483648
    %v1374 = vor.u32 1.1754944e-38, %v1373
    %v1375 = vsel %vm1372, %v1374, %v1370
    %v1376 = vmul.f32 1.0, %v1375
    %v1377 = vadd.f32 %v203, %v1355
    %v1378 = vxor.u32 %v1377, 2147483648
    %v1379 = vmul.f32 %v1378, 1.442695
    %v1380 = vpow.pop %v1379
    %v1381 = vadd.f32 %v1380, 1.0
    %v1382 = vrcp.pop %v1381
    %v1383 = vmul.f32 %v1381, %v1382
    %v1384 = vsub.f32 1.0, %v1383
    %v1385 = vmul.f32 %v1382, %v1384
    %v1386 = vadd.f32 %v1382, %v1385
    %vm1387 = vweird.f32 %v1381
    %vm1388 = vweird.f32 %v1382
    %vm1389 = vmor %vm1387, %vm1388
    %v1390 = vsel %vm1389, %v1382, %v1386
    %v1391 = vand.u32 2147483647, %v1381
    %vm1392 = vcmp.eq.f32.partialorder %v1391, 8.507059e+37
    %v1393 = vand.u32 %v1381, 2147483648
    %v1394 = vor.u32 1.1754944e-38, %v1393
    %v1395 = vsel %vm1392, %v1394, %v1390
    %v1396 = vmul.f32 1.0, %v1395
    %1397 = vrot.lane.b32.xlu0 %v1247, 32
    %v1398 = vpop.permute.xlu0 %1397
    %v1400 = vmul.f32 %v1396, %v1398
    %v1401 = vpack.c.bf16 %v1400, %v1400
    %v1403 = vsel %vm237, %v1401, 0
    %1405 = vmatpush.bf16.msra.mxu0 0
    %1406 = vmatpush.bf16.msra.mxu0 0
    %1407 = vmatpush.bf16.msra.mxu0 0
    %1408 = vmatpush.bf16.msra.mxu0 0
    %1409 = vmatpush.bf16.msra.mxu0 0
    %1410 = vmatpush.bf16.msra.mxu0 0
    %1411 = vmatpush.bf16.msra.mxu0 %v403
    %1412 = vmatpush.bf16.msra.mxu0 %v401
    %1413 = vmatmul.bf16.gmra.mxu0 %v1403
    %v1414 = vpop.f32.mrf.mxu0
    %v1415 = vadd.f32 0.0, %v1414
    %v1416 = vpop.f32.mrf.mxu0
    %1417 = vdwg.mxu0
    %1419 = vrot.lane.b32.xlu0 %v1415, 32
    %v1420 = vpop.permute.xlu0 %1419
    %v1422 = vadd.f32 %v203, %v1420
    %v1423 = vtanh.pop %v1422
    %v1424 = vsub.f32 1.0, %v1376
    %v1425 = vmul.f32 %v1424, %v1247
    %1427 = vrot.lane.b32.xlu0 %v1423, 64
    %v1428 = vpop.permute.xlu0 %1427
    %v1430 = vmul.f32 %v1376, %v1428
    %v1431 = vadd.f32 %v1425, %v1430
    %v1432 = vmul.f32 %v318, %v1431
    %v1433 = vmul.f32 %v325, %v1247
    %v1434 = vadd.f32 %v1432, %v1433
    %1435 = vst.msk [vmem:[%s455] sm:$0xff] %vm237, %v1332
    %1437 = vrot.lane.b32.xlu0 %v1434, 64
    %v1438 = vpop.permute.xlu0 %1437
    %1440 = vst.msk [vmem:[#allocation2] sm:$0xff] %vm456, %v1438
    %v1441 = vld [vmem:[#allocation2] sm:$0xff]
    %v1442 = vld [vmem:[#allocation2 + $0x8] sm:$0xff]
    %v1443 = vld [vmem:[#allocation2 + $0x10] sm:$0xff]
    %v1444 = vld [vmem:[#allocation2 + $0x18] sm:$0xff]
    %v1445 = vld [vmem:[#allocation2 + $0x20] sm:$0xff]
    %v1446 = vld [vmem:[#allocation2 + $0x28] sm:$0xff]
    %v1447 = vld [vmem:[%s14] sm:$0x3]
    %v1448 = vld [vmem:[%s12] sm:$0xff]
    %v1449 = vld [vmem:[%s12 + $0x8] sm:$0xff]
    %v1450 = vld [vmem:[%s12 + $0x10] sm:$0xff]
    %v1451 = vld [vmem:[%s12 + $0x18] sm:$0xff]
    %v1452 = vld [vmem:[%s13] sm:$0xf]
    %v1453 = vld [vmem:[%s13 + $0x4] sm:$0xf]
    %v1454 = vld [vmem:[%s13 + $0x8] sm:$0xf]
    %v1455 = vld [vmem:[%s13 + $0xc] sm:$0xf]
    %v1456 = vld [vmem:[%s13 + $0x10] sm:$0xf]
    %v1457 = vld [vmem:[%s13 + $0x14] sm:$0xf]
    %v1458 = vld [vmem:[%s13 + $0x18] sm:$0xf]
    %v1459 = vld [vmem:[%s13 + $0x1c] sm:$0xf]
    %v1460 = vld [vmem:[%s9] sm:$0xf]
    %v1461 = vld [vmem:[%s9 + $0x4] sm:$0xf]
    %v1462 = vld [vmem:[%s9 + $0x8] sm:$0xf]
    %v1463 = vld [vmem:[%s9 + $0xc] sm:$0xf]
    %v1464 = vpack.c.bf16 %v1434, %v1434
    %v1466 = vperm.slane %v1447, 0
    %1469 = vrot.lane.b32.xlu0 %v1464, 32
    %v1470 = vpop.permute.xlu0 %1469
    %v1475 = vunpack.c.l.b16 %v1460
    %v1476 = vunpack.c.l.b16 %v1461
    %v1477 = vunpack.c.l.b16 %v1462
    %v1478 = vunpack.c.l.b16 %v1463
    %v1479 = vpack.c.b16 %v1476, %v1475
    %v1480 = vpack.c.b16 %v1478, %v1477
    %v1484 = vsel %vm237, %v1470, 0
    %1486 = vmatpush.bf16.msra.mxu0 0
    %1487 = vmatpush.bf16.msra.mxu0 0
    %1488 = vmatpush.bf16.msra.mxu0 0
    %1489 = vmatpush.bf16.msra.mxu0 0
    %1490 = vmatpush.bf16.msra.mxu0 0
    %1491 = vmatpush.bf16.msra.mxu0 0
    %1492 = vmatpush.bf16.msra.mxu0 %v1480
    %1493 = vmatpush.bf16.msra.mxu0 %v1479
    %1494 = vmatmul.bf16.gmra.mxu0 %v1484
    %v1495 = vpop.f32.mrf.mxu0
    %v1496 = vadd.f32 %v1466, %v1495
    %v1497 = vpop.f32.mrf.mxu0
    %1498 = vdwg.mxu0
    %v1499 = vtanh.pop %v1496
    %v1500 = vld [vmem:[%s10] sm:$0xf]
    %v1501 = vld [vmem:[%s10 + $0x4] sm:$0xf]
    %v1502 = vld [vmem:[%s10 + $0x8] sm:$0xf]
    %v1503 = vld [vmem:[%s10 + $0xc] sm:$0xf]
    %v1504 = vld [vmem:[%s10 + $0x10] sm:$0xf]
    %v1505 = vld [vmem:[%s10 + $0x14] sm:$0xf]
    %v1506 = vld [vmem:[%s10 + $0x18] sm:$0xf]
    %v1507 = vld [vmem:[%s10 + $0x1c] sm:$0xf]
    %v1508 = vpack.c.bf16 %v1442, %v1441
    %v1509 = vpack.c.bf16 %v1444, %v1443
    %v1510 = vpack.c.bf16 %v1446, %v1445
    %v1519 = vunpack.c.l.b16 %v1500
    %v1520 = vunpack.c.l.b16 %v1501
    %v1521 = vunpack.c.l.b16 %v1502
    %v1522 = vunpack.c.l.b16 %v1503
    %v1523 = vunpack.c.l.b16 %v1504
    %v1524 = vunpack.c.l.b16 %v1505
    %v1525 = vunpack.c.l.b16 %v1506
    %v1526 = vunpack.c.l.b16 %v1507
    %v1527 = vpack.c.b16 %v1520, %v1519
    %v1528 = vpack.c.b16 %v1522, %v1521
    %v1529 = vpack.c.b16 %v1524, %v1523
    %v1530 = vpack.c.b16 %v1526, %v1525
    %1535 = vrot.lane.b32.xlu0 %v1466, 96
    %v1536 = vpop.permute.xlu0 %1535
    %vm1538 = vcmask 523264
    %v1540 = vsel %vm1538, %v1508, 0
    %v1543 = vsel %vm1538, %v1509, 0
    %v1546 = vsel %vm1538, %v1510, 0
    %1548 = vmatpush.bf16.msra.mxu0 0
    %1549 = vmatpush.bf16.msra.mxu0 0
    %1550 = vmatpush.bf16.msra.mxu0 0
    %1551 = vmatpush.bf16.msra.mxu0 0
    %1552 = vmatpush.bf16.msra.mxu0 %v1530
    %1553 = vmatpush.bf16.msra.mxu0 %v1529
    %1554 = vmatpush.bf16.msra.mxu0 %v1528
    %1555 = vmatpush.bf16.msra.mxu0 %v1527
    %1556 = vmatmul.bf16.gmra.mxu0 %v1540
    %v1557 = vpop.f32.mrf.mxu0
    %v1558 = vadd.f32 %v1536, %v1557
    %v1559 = vpop.f32.mrf.mxu0
    %v1560 = vadd.f32 %v1536, %v1559
    %1561 = vmatmul.bf16.gmra.mxu0 %v1543
    %v1562 = vpop.f32.mrf.mxu0
    %v1563 = vadd.f32 %v1536, %v1562
    %v1564 = vpop.f32.mrf.mxu0
    %v1565 = vadd.f32 %v1536, %v1564
    %1566 = vmatmul.bf16.gmra.mxu0 %v1546
    %v1567 = vpop.f32.mrf.mxu0
    %v1568 = vadd.f32 %v1536, %v1567
    %v1569 = vpop.f32.mrf.mxu0
    %v1570 = vadd.f32 %v1536, %v1569
    %1571 = vdwg.mxu0
    %v1572 = vld [vmem:[%s1] sm:$0xff]
    %v1573 = vld [vmem:[%s1 + $0x8] sm:$0xff]
    %v1574 = vld [vmem:[%s1 + $0x10] sm:$0xff]
    %v1575 = vld [vmem:[%s1 + $0x18] sm:$0xff]
    %v1576 = vld [vmem:[%s1 + $0x20] sm:$0xff]
    %1577 = vset.pattern.permute.xlu0 0
    %1578 = vperm.xlu0 %1577, %v1572
    %v1579 = vpop.permute.xlu0 %1578
    %1580 = vset.pattern.permute.xlu0 0
    %1581 = vperm.xlu0 %1580, %v1573
    %v1582 = vpop.permute.xlu0 %1581
    %1583 = vset.pattern.permute.xlu0 0
    %1584 = vperm.xlu0 %1583, %v1574
    %v1585 = vpop.permute.xlu0 %1584
    %1586 = vset.pattern.permute.xlu0 0
    %1587 = vperm.xlu0 %1586, %v1575
    %v1588 = vpop.permute.xlu0 %1587
    %1589 = vset.pattern.permute.xlu0 0
    %1590 = vperm.xlu0 %1589, %v1576
    %v1591 = vpop.permute.xlu0 %1590
    %vm1592 = vcmp.eq.s32.totalorder %v1579, %v70
    %vm1593 = vcmp.eq.s32.totalorder %v1582, %v70
    %vm1594 = vcmp.eq.s32.totalorder %v1585, %v70
    %vm1595 = vcmp.eq.s32.totalorder %v1588, %v70
    %vm1596 = vcmp.eq.s32.totalorder %v1591, %v70
    %v1597 = vsel %vm1592, 1.0, 0.0
    %v1598 = vsel %vm1593, 1.0, 0.0
    %v1599 = vsel %vm1594, 1.0, 0.0
    %v1600 = vsel %vm1595, 1.0, 0.0
    %v1601 = vsel %vm1596, 1.0, 0.0
    %v1602 = vpack.c.bf16 %v1598, %v1597
    %v1603 = vpack.c.bf16 %v1600, %v1599
    %v1604 = vpack.c.bf16 %v1601, %v1601
    %v1605 = vld [vmem:[%s11] sm:$0xf]
    %v1606 = vld [vmem:[%s11 + $0x4] sm:$0xf]
    %v1607 = vld [vmem:[%s11 + $0x8] sm:$0xf]
    %v1608 = vld [vmem:[%s11 + $0xc] sm:$0xf]
    %v1609 = vld [vmem:[%s11 + $0x10] sm:$0xf]
    %v1610 = vld [vmem:[%s11 + $0x14] sm:$0xf]
    %v1611 = vld [vmem:[%s11 + $0x18] sm:$0xf]
    %v1612 = vld [vmem:[%s11 + $0x1c] sm:$0x3]
    %v1613 = vperm.slane %v1447, 1
    %v1622 = vunpack.c.l.b16 %v1605
    %v1623 = vunpack.c.l.b16 %v1606
    %v1624 = vunpack.c.l.b16 %v1607
    %v1625 = vunpack.c.l.b16 %v1608
    %v1626 = vunpack.c.l.b16 %v1609
    %v1627 = vunpack.c.l.b16 %v1610
    %v1628 = vunpack.c.l.b16 %v1611
    %v1629 = vunpack.c.l.b16 %v1612
    %v1630 = vpack.c.b16 %v1623, %v1622
    %v1631 = vpack.c.b16 %v1625, %v1624
    %v1632 = vpack.c.b16 %v1627, %v1626
    %v1633 = vpack.c.b16 %v1629, %v1628
    %1637 = vrot.lane.b32.xlu0 %v1466, 32
    %v1638 = vpop.permute.xlu0 %1637
    %1639 = vrot.lane.b32.xlu0 %v1613, 32
    %v1640 = vpop.permute.xlu0 %1639
    %v1641 = vsel %vm237, %v1638, %v1640
    %vm1643 = vcmask 490496
    %v1645 = vsel %vm1643, %v1602, 0
    %v1648 = vsel %vm1643, %v1603, 0
    %v1651 = vsel %vm1643, %v1604, 0
    %vm1653 = vcmask 1045504
    %v1655 = vsel %vm1653, %v1633, 0
    %1657 = vmatpush.bf16.msra.mxu0 0
    %1658 = vmatpush.bf16.msra.mxu0 0
    %1659 = vmatpush.bf16.msra.mxu0 0
    %1660 = vmatpush.bf16.msra.mxu0 0
    %1661 = vmatpush.bf16.msra.mxu0 %v1655
    %1662 = vmatpush.bf16.msra.mxu0 %v1632
    %1663 = vmatpush.bf16.msra.mxu0 %v1631
    %1664 = vmatpush.bf16.msra.mxu0 %v1630
    %1665 = vmatmul.bf16.gmra.mxu0 %v1645
    %v1666 = vpop.f32.mrf.mxu0
    %v1667 = vadd.f32 %v1641, %v1666
    %v1668 = vpop.f32.mrf.mxu0
    %v1669 = vadd.f32 %v1641, %v1668
    %1670 = vmatmul.bf16.gmra.mxu0 %v1648
    %v1671 = vpop.f32.mrf.mxu0
    %v1672 = vadd.f32 %v1641, %v1671
    %v1673 = vpop.f32.mrf.mxu0
    %v1674 = vadd.f32 %v1641, %v1673
    %1675 = vmatmul.bf16.gmra.mxu0 %v1651
    %v1676 = vpop.f32.mrf.mxu0
    %v1677 = vadd.f32 %v1641, %v1676
    %v1678 = vpop.f32.mrf.mxu0
    %1679 = vdwg.mxu0
    %v1680 = vpack.c.bf16 %v1499, %v1499
    %v1685 = vunpack.c.l.b16 %v1448
    %v1686 = vunpack.c.l.b16 %v1449
    %v1687 = vunpack.c.l.b16 %v1450
    %v1688 = vunpack.c.l.b16 %v1451
    %v1689 = vpack.c.b16 %v1686, %v1685
    %v1690 = vpack.c.b16 %v1688, %v1687
    %v1694 = vsel %vm237, %v1680, 0
    %1696 = vmatpush.bf16.msra.mxu0 0
    %1697 = vmatpush.bf16.msra.mxu0 0
    %1698 = vmatpush.bf16.msra.mxu0 0
    %1699 = vmatpush.bf16.msra.mxu0 0
    %1700 = vmatpush.bf16.msra.mxu0 0
    %1701 = vmatpush.bf16.msra.mxu0 0
    %1702 = vmatpush.bf16.msra.mxu0 %v1690
    %1703 = vmatpush.bf16.msra.mxu0 %v1689
    %1704 = vmatmul.bf16.gmra.mxu0 %v1694
    %v1705 = vpop.f32.mrf.mxu0
    %v1706 = vadd.f32 0.0, %v1705
    %v1707 = vpop.f32.mrf.mxu0
    %1708 = vdwg.mxu0
    %v1709 = vadd.f32 %v1706, %v1558
    %v1710 = vadd.f32 %v1706, %v1560
    %v1711 = vadd.f32 %v1706, %v1563
    %v1712 = vadd.f32 %v1706, %v1565
    %v1713 = vadd.f32 %v1706, %v1568
    %v1714 = vadd.f32 %v1706, %v1570
    %v1715 = vtanh.pop %v1709
    %v1716 = vtanh.pop %v1710
    %v1717 = vtanh.pop %v1711
    %v1718 = vtanh.pop %v1712
    %v1719 = vtanh.pop %v1713
    %v1720 = vtanh.pop %v1714
    %1721 = vrot.lane.b32.xlu0 %v1466, 64
    %v1722 = vpop.permute.xlu0 %1721
    %v1724 = vmul.f32 %v1715, %v1722
    %v1725 = vmul.f32 %v1716, %v1722
    %v1726 = vmul.f32 %v1717, %v1722
    %v1727 = vmul.f32 %v1718, %v1722
    %v1728 = vmul.f32 %v1719, %v1722
    %v1729 = vmul.f32 %v1720, %v1722
    %v1730 = vsel %vm237, %v1724, 0.0
    %1731 = vadd.xlane.f32.xlu0 %v1730
    %v1732 = vpop.xlane.xlu0 %1731
    %v1733 = vsel %vm237, %v1725, 0.0
    %1734 = vadd.xlane.f32.xlu0 %v1733
    %v1735 = vpop.xlane.xlu0 %1734
    %v1736 = vsel %vm237, %v1726, 0.0
    %1737 = vadd.xlane.f32.xlu0 %v1736
    %v1738 = vpop.xlane.xlu0 %1737
    %v1739 = vsel %vm237, %v1727, 0.0
    %1740 = vadd.xlane.f32.xlu0 %v1739
    %v1741 = vpop.xlane.xlu0 %1740
    %v1742 = vsel %vm237, %v1728, 0.0
    %1743 = vadd.xlane.f32.xlu0 %v1742
    %v1744 = vpop.xlane.xlu0 %1743
    %v1745 = vsel %vm237, %v1729, 0.0
    %1746 = vadd.xlane.f32.xlu0 %v1745
    %v1747 = vpop.xlane.xlu0 %1746
    %v1748 = vmax.f32 %v1732, %v1744
    %v1749 = vmax.f32 %v1735, %v1747
    %v1750 = vmax.f32 %v1748, %v1749
    %v1751 = vmax.f32 %v1738, %v1741
    %v1752 = vmax.f32 %v1750, %v1751
    %v1753 = vsub.f32 %v1732, %v1752
    %v1754 = vsub.f32 %v1735, %v1752
    %v1755 = vsub.f32 %v1738, %v1752
    %v1756 = vsub.f32 %v1741, %v1752
    %v1757 = vsub.f32 %v1744, %v1752
    %v1758 = vsub.f32 %v1747, %v1752
    %v1759 = vmul.f32 %v1753, 1.442695
    %v1760 = vpow.pop %v1759
    %v1761 = vmul.f32 %v1754, 1.442695
    %v1762 = vpow.pop %v1761
    %v1763 = vmul.f32 %v1755, 1.442695
    %v1764 = vpow.pop %v1763
    %v1765 = vmul.f32 %v1756, 1.442695
    %v1766 = vpow.pop %v1765
    %v1767 = vmul.f32 %v1757, 1.442695
    %v1768 = vpow.pop %v1767
    %v1769 = vmul.f32 %v1758, 1.442695
    %v1770 = vpow.pop %v1769
    %v1771 = vmul.f32 %v1760, %v52
    %v1772 = vmul.f32 %v1762, %v53
    %v1773 = vmul.f32 %v1764, %v54
    %v1774 = vmul.f32 %v1766, %v55
    %v1775 = vmul.f32 %v1768, %v56
    %v1776 = vmul.f32 %v1770, %v57
    %vm1777 = vcmask 7168
    %v1778 = vsel %vm1777, %v1771, 0.0
    %v1779 = vsel %vm1777, %v1772, 0.0
    %v1780 = vadd.f32 %v1778, %v1779
    %v1781 = vsel %vm1777, %v1773, 0.0
    %v1782 = vadd.f32 %v1780, %v1781
    %v1783 = vsel %vm1777, %v1774, 0.0
    %v1784 = vadd.f32 %v1782, %v1783
    %v1785 = vsel %vm1777, %v1775, 0.0
    %v1786 = vadd.f32 %v1784, %v1785
    %v1787 = vsel %vm1777, %v1776, 0.0
    %v1788 = vadd.f32 %v1786, %v1787
    %v1789 = vrcp.pop %v1788
    %v1790 = vmul.f32 %v1771, %v1789
    %v1791 = vmul.f32 %v1772, %v1789
    %v1792 = vmul.f32 %v1773, %v1789
    %v1793 = vmul.f32 %v1774, %v1789
    %v1794 = vmul.f32 %v1775, %v1789
    %v1795 = vmul.f32 %v1776, %v1789
    %1797 = vset.pattern.permute.xlu0 0
    %1798 = vperm.xlu0 %1797, %v1790
    %v1799 = vpop.permute.xlu0 %1798
    %1802 = vset.pattern.permute.xlu0 0
    %1803 = vperm.xlu0 %1802, %v1791
    %v1804 = vpop.permute.xlu0 %1803
    %1807 = vset.pattern.permute.xlu0 0
    %1808 = vperm.xlu0 %1807, %v1792
    %v1809 = vpop.permute.xlu0 %1808
    %1812 = vset.pattern.permute.xlu0 0
    %1813 = vperm.xlu0 %1812, %v1793
    %v1814 = vpop.permute.xlu0 %1813
    %1817 = vset.pattern.permute.xlu0 0
    %1818 = vperm.xlu0 %1817, %v1794
    %v1819 = vpop.permute.xlu0 %1818
    %1822 = vset.pattern.permute.xlu0 0
    %1823 = vperm.xlu0 %1822, %v1795
    %v1824 = vpop.permute.xlu0 %1823
    %v1826 = vmul.f32 %v1799, %v1441
    %v1827 = vmul.f32 %v1804, %v1442
    %v1828 = vmul.f32 %v1809, %v1443
    %v1829 = vmul.f32 %v1814, %v1444
    %v1830 = vmul.f32 %v1819, %v1445
    %v1831 = vmul.f32 %v1824, %v1446
    %v1832 = vsel %vm1538, %v1826, 0.0
    %v1833 = vsel %vm1538, %v1827, 0.0
    %v1834 = vadd.f32 %v1832, %v1833
    %v1835 = vsel %vm1538, %v1828, 0.0
    %v1836 = vadd.f32 %v1834, %v1835
    %v1837 = vsel %vm1538, %v1829, 0.0
    %v1838 = vadd.f32 %v1836, %v1837
    %v1839 = vsel %vm1538, %v1830, 0.0
    %v1840 = vadd.f32 %v1838, %v1839
    %v1841 = vsel %vm1538, %v1831, 0.0
    %v1842 = vadd.f32 %v1840, %v1841
    %v1843 = vpack.c.bf16 %v1842, %v1842
    %v1852 = vunpack.c.l.b16 %v1452
    %v1853 = vunpack.c.l.b16 %v1453
    %v1854 = vunpack.c.l.b16 %v1454
    %v1855 = vunpack.c.l.b16 %v1455
    %v1856 = vunpack.c.l.b16 %v1456
    %v1857 = vunpack.c.l.b16 %v1457
    %v1858 = vunpack.c.l.b16 %v1458
    %v1859 = vunpack.c.l.b16 %v1459
    %v1860 = vpack.c.b16 %v1853, %v1852
    %v1861 = vpack.c.b16 %v1855, %v1854
    %v1862 = vpack.c.b16 %v1857, %v1856
    %v1863 = vpack.c.b16 %v1859, %v1858
    %v1869 = vsel %vm1538, %v1843, 0
    %1871 = vmatpush.bf16.msra.mxu0 0
    %1872 = vmatpush.bf16.msra.mxu0 0
    %1873 = vmatpush.bf16.msra.mxu0 0
    %1874 = vmatpush.bf16.msra.mxu0 0
    %1875 = vmatpush.bf16.msra.mxu0 %v1863
    %1876 = vmatpush.bf16.msra.mxu0 %v1862
    %1877 = vmatpush.bf16.msra.mxu0 %v1861
    %1878 = vmatpush.bf16.msra.mxu0 %v1860
    %1879 = vmatmul.bf16.gmra.mxu0 %v1869
    %v1880 = vpop.f32.mrf.mxu0
    %v1881 = vadd.f32 0.0, %v1880
    %v1882 = vpop.f32.mrf.mxu0
    %1883 = vdwg.mxu0
    %1885 = vrot.lane.b32.xlu0 %v1706, 96
    %v1886 = vpop.permute.xlu0 %1885
    %v1888 = vadd.f32 %v1667, %v1886
    %v1889 = vadd.f32 %v1888, %v1881
    %v1890 = vxor.u32 %v1889, 2147483648
    %v1891 = vmul.f32 %v1890, 1.442695
    %v1892 = vpow.pop %v1891
    %v1893 = vadd.f32 %v1892, 1.0
    %v1894 = vrcp.pop %v1893
    %v1895 = vmul.f32 %v1893, %v1894
    %v1896 = vsub.f32 1.0, %v1895
    %v1897 = vmul.f32 %v1894, %v1896
    %v1898 = vadd.f32 %v1894, %v1897
    %vm1899 = vweird.f32 %v1893
    %vm1900 = vweird.f32 %v1894
    %vm1901 = vmor %vm1899, %vm1900
    %v1902 = vsel %vm1901, %v1894, %v1898
    %v1903 = vand.u32 2147483647, %v1893
    %vm1904 = vcmp.eq.f32.partialorder %v1903, 8.507059e+37
    %v1905 = vand.u32 %v1893, 2147483648
    %v1906 = vor.u32 1.1754944e-38, %v1905
    %v1907 = vsel %vm1904, %v1906, %v1902
    %v1908 = vmul.f32 1.0, %v1907
    %1910 = vrot.lane.b32.xlu0 %v1499, 32
    %v1911 = vpop.permute.xlu0 %1910
    %v1913 = vmul.f32 %v1908, %v1911
    %v1914 = vpack.c.bf16 %v1913, %v1913
    %1916 = vrot.lane.b32.xlu0 %v1914, 96
    %v1917 = vpop.permute.xlu0 %1916
    %1918 = vrot.lane.b32.xlu0 %v1689, 32
    %v1919 = vpop.permute.xlu0 %1918
    %1920 = vrot.lane.b32.xlu0 %v1690, 32
    %v1921 = vpop.permute.xlu0 %1920
    %v1925 = vsel %vm237, %v1917, 0
    %1927 = vmatpush.bf16.msra.mxu0 0
    %1928 = vmatpush.bf16.msra.mxu0 0
    %1929 = vmatpush.bf16.msra.mxu0 0
    %1930 = vmatpush.bf16.msra.mxu0 0
    %1931 = vmatpush.bf16.msra.mxu0 0
    %1932 = vmatpush.bf16.msra.mxu0 0
    %1933 = vmatpush.bf16.msra.mxu0 %v1921
    %1934 = vmatpush.bf16.msra.mxu0 %v1919
    %1935 = vmatmul.bf16.gmra.mxu0 %v1925
    %v1936 = vpop.f32.mrf.mxu0
    %v1937 = vadd.f32 0.0, %v1936
    %v1938 = vpop.f32.mrf.mxu0
    %1939 = vdwg.mxu0
    %1941 = vrot.lane.b32.xlu0 %v1937, 64
    %v1942 = vpop.permute.xlu0 %1941
    %v1944 = vadd.f32 %v1667, %v1942
    %v1945 = vadd.f32 %v1944, %v1881
    %v1946 = vtanh.pop %v1945
    %v1947 = vsub.f32 1.0, %v1908
    %v1948 = vmul.f32 %v1947, %v1499
    %1950 = vrot.lane.b32.xlu0 %v1946, 64
    %v1951 = vpop.permute.xlu0 %1950
    %v1953 = vmul.f32 %v1908, %v1951
    %v1954 = vadd.f32 %v1948, %v1953
    %1956 = vset.pattern.permute.xlu0 0
    %1957 = vperm.xlu0 %1956, %v58
    %v1958 = vpop.permute.xlu0 %1957
    %v1960 = vmul.f32 %v1958, %v1954
    %v1961 = vsub.f32 1.0, %v58
    %1963 = vset.pattern.permute.xlu0 0
    %1964 = vperm.xlu0 %1963, %v1961
    %v1965 = vpop.permute.xlu0 %1964
    %v1967 = vmul.f32 %v1965, %v1499
    %v1968 = vadd.f32 %v1960, %v1967
    %1969 = vst.msk [vmem:[#allocation3] sm:$0xff] %vm237, %v1968
    %1971 = vrot.lane.b32.xlu0 %v1881, 32
    %v1972 = vpop.permute.xlu0 %1971
    %1974 = vst.msk [vmem:[#allocation4] sm:$0xff] %vm237, %v1972
    %v1975 = vpack.c.bf16 %v1968, %v1968
    %v1977 = vsel %vm237, %v1975, 0
    %1979 = vmatpush.bf16.msra.mxu0 0
    %1980 = vmatpush.bf16.msra.mxu0 0
    %1981 = vmatpush.bf16.msra.mxu0 0
    %1982 = vmatpush.bf16.msra.mxu0 0
    %1983 = vmatpush.bf16.msra.mxu0 0
    %1984 = vmatpush.bf16.msra.mxu0 0
    %1985 = vmatpush.bf16.msra.mxu0 %v1690
    %1986 = vmatpush.bf16.msra.mxu0 %v1689
    %1987 = vmatmul.bf16.gmra.mxu0 %v1977
    %v1988 = vpop.f32.mrf.mxu0
    %v1989 = vadd.f32 0.0, %v1988
    %v1990 = vpop.f32.mrf.mxu0
    %1991 = vdwg.mxu0
    %v1992 = vadd.f32 %v1989, %v1558
    %v1993 = vadd.f32 %v1989, %v1560
    %v1994 = vadd.f32 %v1989, %v1563
    %v1995 = vadd.f32 %v1989, %v1565
    %v1996 = vadd.f32 %v1989, %v1568
    %v1997 = vadd.f32 %v1989, %v1570
    %v1998 = vtanh.pop %v1992
    %v1999 = vtanh.pop %v1993
    %v2000 = vtanh.pop %v1994
    %v2001 = vtanh.pop %v1995
    %v2002 = vtanh.pop %v1996
    %v2003 = vtanh.pop %v1997
    %v2004 = vmul.f32 %v1998, %v1722
    %v2005 = vmul.f32 %v1999, %v1722
    %v2006 = vmul.f32 %v2000, %v1722
    %v2007 = vmul.f32 %v2001, %v1722
    %v2008 = vmul.f32 %v2002, %v1722
    %v2009 = vmul.f32 %v2003, %v1722
    %v2010 = vsel %vm237, %v2004, 0.0
    %2011 = vadd.xlane.f32.xlu0 %v2010
    %v2012 = vpop.xlane.xlu0 %2011
    %v2013 = vsel %vm237, %v2005, 0.0
    %2014 = vadd.xlane.f32.xlu0 %v2013
    %v2015 = vpop.xlane.xlu0 %2014
    %v2016 = vsel %vm237, %v2006, 0.0
    %2017 = vadd.xlane.f32.xlu0 %v2016
    %v2018 = vpop.xlane.xlu0 %2017
    %v2019 = vsel %vm237, %v2007, 0.0
    %2020 = vadd.xlane.f32.xlu0 %v2019
    %v2021 = vpop.xlane.xlu0 %2020
    %v2022 = vsel %vm237, %v2008, 0.0
    %2023 = vadd.xlane.f32.xlu0 %v2022
    %v2024 = vpop.xlane.xlu0 %2023
    %v2025 = vsel %vm237, %v2009, 0.0
    %2026 = vadd.xlane.f32.xlu0 %v2025
    %v2027 = vpop.xlane.xlu0 %2026
    %v2028 = vmax.f32 %v2012, %v2024
    %v2029 = vmax.f32 %v2015, %v2027
    %v2030 = vmax.f32 %v2028, %v2029
    %v2031 = vmax.f32 %v2018, %v2021
    %v2032 = vmax.f32 %v2030, %v2031
    %v2033 = vsub.f32 %v2012, %v2032
    %v2034 = vsub.f32 %v2015, %v2032
    %v2035 = vsub.f32 %v2018, %v2032
    %v2036 = vsub.f32 %v2021, %v2032
    %v2037 = vsub.f32 %v2024, %v2032
    %v2038 = vsub.f32 %v2027, %v2032
    %v2039 = vmul.f32 %v2033, 1.442695
    %v2040 = vpow.pop %v2039
    %v2041 = vmul.f32 %v2034, 1.442695
    %v2042 = vpow.pop %v2041
    %v2043 = vmul.f32 %v2035, 1.442695
    %v2044 = vpow.pop %v2043
    %v2045 = vmul.f32 %v2036, 1.442695
    %v2046 = vpow.pop %v2045
    %v2047 = vmul.f32 %v2037, 1.442695
    %v2048 = vpow.pop %v2047
    %v2049 = vmul.f32 %v2038, 1.442695
    %v2050 = vpow.pop %v2049
    %v2051 = vmul.f32 %v2040, %v52
    %v2052 = vmul.f32 %v2042, %v53
    %v2053 = vmul.f32 %v2044, %v54
    %v2054 = vmul.f32 %v2046, %v55
    %v2055 = vmul.f32 %v2048, %v56
    %v2056 = vmul.f32 %v2050, %v57
    %v2057 = vsel %vm1777, %v2051, 0.0
    %v2058 = vsel %vm1777, %v2052, 0.0
    %v2059 = vadd.f32 %v2057, %v2058
    %v2060 = vsel %vm1777, %v2053, 0.0
    %v2061 = vadd.f32 %v2059, %v2060
    %v2062 = vsel %vm1777, %v2054, 0.0
    %v2063 = vadd.f32 %v2061, %v2062
    %v2064 = vsel %vm1777, %v2055, 0.0
    %v2065 = vadd.f32 %v2063, %v2064
    %v2066 = vsel %vm1777, %v2056, 0.0
    %v2067 = vadd.f32 %v2065, %v2066
    %v2068 = vrcp.pop %v2067
    %v2069 = vmul.f32 %v2051, %v2068
    %v2070 = vmul.f32 %v2052, %v2068
    %v2071 = vmul.f32 %v2053, %v2068
    %v2072 = vmul.f32 %v2054, %v2068
    %v2073 = vmul.f32 %v2055, %v2068
    %v2074 = vmul.f32 %v2056, %v2068
    %2076 = vset.pattern.permute.xlu0 0
    %2077 = vperm.xlu0 %2076, %v2069
    %v2078 = vpop.permute.xlu0 %2077
    %2081 = vset.pattern.permute.xlu0 0
    %2082 = vperm.xlu0 %2081, %v2070
    %v2083 = vpop.permute.xlu0 %2082
    %2086 = vset.pattern.permute.xlu0 0
    %2087 = vperm.xlu0 %2086, %v2071
    %v2088 = vpop.permute.xlu0 %2087
    %2091 = vset.pattern.permute.xlu0 0
    %2092 = vperm.xlu0 %2091, %v2072
    %v2093 = vpop.permute.xlu0 %2092
    %2096 = vset.pattern.permute.xlu0 0
    %2097 = vperm.xlu0 %2096, %v2073
    %v2098 = vpop.permute.xlu0 %2097
    %2101 = vset.pattern.permute.xlu0 0
    %2102 = vperm.xlu0 %2101, %v2074
    %v2103 = vpop.permute.xlu0 %2102
    %v2105 = vmul.f32 %v2078, %v1441
    %v2106 = vmul.f32 %v2083, %v1442
    %v2107 = vmul.f32 %v2088, %v1443
    %v2108 = vmul.f32 %v2093, %v1444
    %v2109 = vmul.f32 %v2098, %v1445
    %v2110 = vmul.f32 %v2103, %v1446
    %v2111 = vsel %vm1538, %v2105, 0.0
    %v2112 = vsel %vm1538, %v2106, 0.0
    %v2113 = vadd.f32 %v2111, %v2112
    %v2114 = vsel %vm1538, %v2107, 0.0
    %v2115 = vadd.f32 %v2113, %v2114
    %v2116 = vsel %vm1538, %v2108, 0.0
    %v2117 = vadd.f32 %v2115, %v2116
    %v2118 = vsel %vm1538, %v2109, 0.0
    %v2119 = vadd.f32 %v2117, %v2118
    %v2120 = vsel %vm1538, %v2110, 0.0
    %v2121 = vadd.f32 %v2119, %v2120
    %v2122 = vpack.c.bf16 %v2121, %v2121
    %v2124 = vsel %vm1538, %v2122, 0
    %2126 = vmatpush.bf16.msra.mxu0 0
    %2127 = vmatpush.bf16.msra.mxu0 0
    %2128 = vmatpush.bf16.msra.mxu0 0
    %2129 = vmatpush.bf16.msra.mxu0 0
    %2130 = vmatpush.bf16.msra.mxu0 %v1863
    %2131 = vmatpush.bf16.msra.mxu0 %v1862
    %2132 = vmatpush.bf16.msra.mxu0 %v1861
    %2133 = vmatpush.bf16.msra.mxu0 %v1860
    %2134 = vmatmul.bf16.gmra.mxu0 %v2124
    %v2135 = vpop.f32.mrf.mxu0
    %v2136 = vadd.f32 0.0, %v2135
    %v2137 = vpop.f32.mrf.mxu0
    %2138 = vdwg.mxu0
    %2140 = vrot.lane.b32.xlu0 %v1989, 96
    %v2141 = vpop.permute.xlu0 %2140
    %v2143 = vadd.f32 %v1669, %v2141
    %v2144 = vadd.f32 %v2143, %v2136
    %v2145 = vxor.u32 %v2144, 2147483648
    %v2146 = vmul.f32 %v2145, 1.442695
    %v2147 = vpow.pop %v2146
    %v2148 = vadd.f32 %v2147, 1.0
    %v2149 = vrcp.pop %v2148
    %v2150 = vmul.f32 %v2148, %v2149
    %v2151 = vsub.f32 1.0, %v2150
    %v2152 = vmul.f32 %v2149, %v2151
    %v2153 = vadd.f32 %v2149, %v2152
    %vm2154 = vweird.f32 %v2148
    %vm2155 = vweird.f32 %v2149
    %vm2156 = vmor %vm2154, %vm2155
    %v2157 = vsel %vm2156, %v2149, %v2153
    %v2158 = vand.u32 2147483647, %v2148
    %vm2159 = vcmp.eq.f32.partialorder %v2158, 8.507059e+37
    %v2160 = vand.u32 %v2148, 2147483648
    %v2161 = vor.u32 1.1754944e-38, %v2160
    %v2162 = vsel %vm2159, %v2161, %v2157
    %v2163 = vmul.f32 1.0, %v2162
    %2165 = vrot.lane.b32.xlu0 %v1968, 32
    %v2166 = vpop.permute.xlu0 %2165
    %v2168 = vmul.f32 %v2163, %v2166
    %v2169 = vpack.c.bf16 %v2168, %v2168
    %2171 = vrot.lane.b32.xlu0 %v2169, 96
    %v2172 = vpop.permute.xlu0 %2171
    %v2174 = vsel %vm237, %v2172, 0
    %2176 = vmatpush.bf16.msra.mxu0 0
    %2177 = vmatpush.bf16.msra.mxu0 0
    %2178 = vmatpush.bf16.msra.mxu0 0
    %2179 = vmatpush.bf16.msra.mxu0 0
    %2180 = vmatpush.bf16.msra.mxu0 0
    %2181 = vmatpush.bf16.msra.mxu0 0
    %2182 = vmatpush.bf16.msra.mxu0 %v1921
    %2183 = vmatpush.bf16.msra.mxu0 %v1919
    %2184 = vmatmul.bf16.gmra.mxu0 %v2174
    %v2185 = vpop.f32.mrf.mxu0
    %v2186 = vadd.f32 0.0, %v2185
    %v2187 = vpop.f32.mrf.mxu0
    %2188 = vdwg.mxu0
    %2190 = vrot.lane.b32.xlu0 %v2186, 64
    %v2191 = vpop.permute.xlu0 %2190
    %v2193 = vadd.f32 %v1669, %v2191
    %v2194 = vadd.f32 %v2193, %v2136
    %v2195 = vtanh.pop %v2194
    %v2196 = vsub.f32 1.0, %v2163
    %v2197 = vmul.f32 %v2196, %v1968
    %2199 = vrot.lane.b32.xlu0 %v2195, 64
    %v2200 = vpop.permute.xlu0 %2199
    %v2202 = vmul.f32 %v2163, %v2200
    %v2203 = vadd.f32 %v2197, %v2202
    %2205 = vset.pattern.permute.xlu0 0
    %2206 = vperm.xlu0 %2205, %v59
    %v2207 = vpop.permute.xlu0 %2206
    %v2209 = vmul.f32 %v2207, %v2203
    %v2210 = vsub.f32 1.0, %v59
    %2212 = vset.pattern.permute.xlu0 0
    %2213 = vperm.xlu0 %2212, %v2210
    %v2214 = vpop.permute.xlu0 %2213
    %v2216 = vmul.f32 %v2214, %v1968
    %v2217 = vadd.f32 %v2209, %v2216
    %2218 = vst.msk [vmem:[#allocation3 + $0x8] sm:$0xff] %vm237, %v2217
    %2220 = vrot.lane.b32.xlu0 %v2136, 32
    %v2221 = vpop.permute.xlu0 %2220
    %2223 = vst.msk [vmem:[#allocation4 + $0x8] sm:$0xff] %vm237, %v2221
    %v2224 = vpack.c.bf16 %v2217, %v2217
    %v2226 = vsel %vm237, %v2224, 0
    %2228 = vmatpush.bf16.msra.mxu0 0
    %2229 = vmatpush.bf16.msra.mxu0 0
    %2230 = vmatpush.bf16.msra.mxu0 0
    %2231 = vmatpush.bf16.msra.mxu0 0
    %2232 = vmatpush.bf16.msra.mxu0 0
    %2233 = vmatpush.bf16.msra.mxu0 0
    %2234 = vmatpush.bf16.msra.mxu0 %v1690
    %2235 = vmatpush.bf16.msra.mxu0 %v1689
    %2236 = vmatmul.bf16.gmra.mxu0 %v2226
    %v2237 = vpop.f32.mrf.mxu0
    %v2238 = vadd.f32 0.0, %v2237
    %v2239 = vpop.f32.mrf.mxu0
    %2240 = vdwg.mxu0
    %v2241 = vadd.f32 %v2238, %v1558
    %v2242 = vadd.f32 %v2238, %v1560
    %v2243 = vadd.f32 %v2238, %v1563
    %v2244 = vadd.f32 %v2238, %v1565
    %v2245 = vadd.f32 %v2238, %v1568
    %v2246 = vadd.f32 %v2238, %v1570
    %v2247 = vtanh.pop %v2241
    %v2248 = vtanh.pop %v2242
    %v2249 = vtanh.pop %v2243
    %v2250 = vtanh.pop %v2244
    %v2251 = vtanh.pop %v2245
    %v2252 = vtanh.pop %v2246
    %v2253 = vmul.f32 %v2247, %v1722
    %v2254 = vmul.f32 %v2248, %v1722
    %v2255 = vmul.f32 %v2249, %v1722
    %v2256 = vmul.f32 %v2250, %v1722
    %v2257 = vmul.f32 %v2251, %v1722
    %v2258 = vmul.f32 %v2252, %v1722
    %v2259 = vsel %vm237, %v2253, 0.0
    %2260 = vadd.xlane.f32.xlu0 %v2259
    %v2261 = vpop.xlane.xlu0 %2260
    %v2262 = vsel %vm237, %v2254, 0.0
    %2263 = vadd.xlane.f32.xlu0 %v2262
    %v2264 = vpop.xlane.xlu0 %2263
    %v2265 = vsel %vm237, %v2255, 0.0
    %2266 = vadd.xlane.f32.xlu0 %v2265
    %v2267 = vpop.xlane.xlu0 %2266
    %v2268 = vsel %vm237, %v2256, 0.0
    %2269 = vadd.xlane.f32.xlu0 %v2268
    %v2270 = vpop.xlane.xlu0 %2269
    %v2271 = vsel %vm237, %v2257, 0.0
    %2272 = vadd.xlane.f32.xlu0 %v2271
    %v2273 = vpop.xlane.xlu0 %2272
    %v2274 = vsel %vm237, %v2258, 0.0
    %2275 = vadd.xlane.f32.xlu0 %v2274
    %v2276 = vpop.xlane.xlu0 %2275
    %v2277 = vmax.f32 %v2261, %v2273
    %v2278 = vmax.f32 %v2264, %v2276
    %v2279 = vmax.f32 %v2277, %v2278
    %v2280 = vmax.f32 %v2267, %v2270
    %v2281 = vmax.f32 %v2279, %v2280
    %v2282 = vsub.f32 %v2261, %v2281
    %v2283 = vsub.f32 %v2264, %v2281
    %v2284 = vsub.f32 %v2267, %v2281
    %v2285 = vsub.f32 %v2270, %v2281
    %v2286 = vsub.f32 %v2273, %v2281
    %v2287 = vsub.f32 %v2276, %v2281
    %v2288 = vmul.f32 %v2282, 1.442695
    %v2289 = vpow.pop %v2288
    %v2290 = vmul.f32 %v2283, 1.442695
    %v2291 = vpow.pop %v2290
    %v2292 = vmul.f32 %v2284, 1.442695
    %v2293 = vpow.pop %v2292
    %v2294 = vmul.f32 %v2285, 1.442695
    %v2295 = vpow.pop %v2294
    %v2296 = vmul.f32 %v2286, 1.442695
    %v2297 = vpow.pop %v2296
    %v2298 = vmul.f32 %v2287, 1.442695
    %v2299 = vpow.pop %v2298
    %v2300 = vmul.f32 %v2289, %v52
    %v2301 = vmul.f32 %v2291, %v53
    %v2302 = vmul.f32 %v2293, %v54
    %v2303 = vmul.f32 %v2295, %v55
    %v2304 = vmul.f32 %v2297, %v56
    %v2305 = vmul.f32 %v2299, %v57
    %v2306 = vsel %vm1777, %v2300, 0.0
    %v2307 = vsel %vm1777, %v2301, 0.0
    %v2308 = vadd.f32 %v2306, %v2307
    %v2309 = vsel %vm1777, %v2302, 0.0
    %v2310 = vadd.f32 %v2308, %v2309
    %v2311 = vsel %vm1777, %v2303, 0.0
    %v2312 = vadd.f32 %v2310, %v2311
    %v2313 = vsel %vm1777, %v2304, 0.0
    %v2314 = vadd.f32 %v2312, %v2313
    %v2315 = vsel %vm1777, %v2305, 0.0
    %v2316 = vadd.f32 %v2314, %v2315
    %v2317 = vrcp.pop %v2316
    %v2318 = vmul.f32 %v2300, %v2317
    %v2319 = vmul.f32 %v2301, %v2317
    %v2320 = vmul.f32 %v2302, %v2317
    %v2321 = vmul.f32 %v2303, %v2317
    %v2322 = vmul.f32 %v2304, %v2317
    %v2323 = vmul.f32 %v2305, %v2317
    %2325 = vset.pattern.permute.xlu0 0
    %2326 = vperm.xlu0 %2325, %v2318
    %v2327 = vpop.permute.xlu0 %2326
    %2330 = vset.pattern.permute.xlu0 0
    %2331 = vperm.xlu0 %2330, %v2319
    %v2332 = vpop.permute.xlu0 %2331
    %2335 = vset.pattern.permute.xlu0 0
    %2336 = vperm.xlu0 %2335, %v2320
    %v2337 = vpop.permute.xlu0 %2336
    %2340 = vset.pattern.permute.xlu0 0
    %2341 = vperm.xlu0 %2340, %v2321
    %v2342 = vpop.permute.xlu0 %2341
    %2345 = vset.pattern.permute.xlu0 0
    %2346 = vperm.xlu0 %2345, %v2322
    %v2347 = vpop.permute.xlu0 %2346
    %2350 = vset.pattern.permute.xlu0 0
    %2351 = vperm.xlu0 %2350, %v2323
    %v2352 = vpop.permute.xlu0 %2351
    %v2354 = vmul.f32 %v2327, %v1441
    %v2355 = vmul.f32 %v2332, %v1442
    %v2356 = vmul.f32 %v2337, %v1443
    %v2357 = vmul.f32 %v2342, %v1444
    %v2358 = vmul.f32 %v2347, %v1445
    %v2359 = vmul.f32 %v2352, %v1446
    %v2360 = vsel %vm1538, %v2354, 0.0
    %v2361 = vsel %vm1538, %v2355, 0.0
    %v2362 = vadd.f32 %v2360, %v2361
    %v2363 = vsel %vm1538, %v2356, 0.0
    %v2364 = vadd.f32 %v2362, %v2363
    %v2365 = vsel %vm1538, %v2357, 0.0
    %v2366 = vadd.f32 %v2364, %v2365
    %v2367 = vsel %vm1538, %v2358, 0.0
    %v2368 = vadd.f32 %v2366, %v2367
    %v2369 = vsel %vm1538, %v2359, 0.0
    %v2370 = vadd.f32 %v2368, %v2369
    %v2371 = vpack.c.bf16 %v2370, %v2370
    %v2373 = vsel %vm1538, %v2371, 0
    %2375 = vmatpush.bf16.msra.mxu0 0
    %2376 = vmatpush.bf16.msra.mxu0 0
    %2377 = vmatpush.bf16.msra.mxu0 0
    %2378 = vmatpush.bf16.msra.mxu0 0
    %2379 = vmatpush.bf16.msra.mxu0 %v1863
    %2380 = vmatpush.bf16.msra.mxu0 %v1862
    %2381 = vmatpush.bf16.msra.mxu0 %v1861
    %2382 = vmatpush.bf16.msra.mxu0 %v1860
    %2383 = vmatmul.bf16.gmra.mxu0 %v2373
    %v2384 = vpop.f32.mrf.mxu0
    %v2385 = vadd.f32 0.0, %v2384
    %v2386 = vpop.f32.mrf.mxu0
    %2387 = vdwg.mxu0
    %2389 = vrot.lane.b32.xlu0 %v2238, 96
    %v2390 = vpop.permute.xlu0 %2389
    %v2392 = vadd.f32 %v1672, %v2390
    %v2393 = vadd.f32 %v2392, %v2385
    %v2394 = vxor.u32 %v2393, 2147483648
    %v2395 = vmul.f32 %v2394, 1.442695
    %v2396 = vpow.pop %v2395
    %v2397 = vadd.f32 %v2396, 1.0
    %v2398 = vrcp.pop %v2397
    %v2399 = vmul.f32 %v2397, %v2398
    %v2400 = vsub.f32 1.0, %v2399
    %v2401 = vmul.f32 %v2398, %v2400
    %v2402 = vadd.f32 %v2398, %v2401
    %vm2403 = vweird.f32 %v2397
    %vm2404 = vweird.f32 %v2398
    %vm2405 = vmor %vm2403, %vm2404
    %v2406 = vsel %vm2405, %v2398, %v2402
    %v2407 = vand.u32 2147483647, %v2397
    %vm2408 = vcmp.eq.f32.partialorder %v2407, 8.507059e+37
    %v2409 = vand.u32 %v2397, 2147483648
    %v2410 = vor.u32 1.1754944e-38, %v2409
    %v2411 = vsel %vm2408, %v2410, %v2406
    %v2412 = vmul.f32 1.0, %v2411
    %2414 = vrot.lane.b32.xlu0 %v2217, 32
    %v2415 = vpop.permute.xlu0 %2414
    %v2417 = vmul.f32 %v2412, %v2415
    %v2418 = vpack.c.bf16 %v2417, %v2417
    %2420 = vrot.lane.b32.xlu0 %v2418, 96
    %v2421 = vpop.permute.xlu0 %2420
    %v2423 = vsel %vm237, %v2421, 0
    %2425 = vmatpush.bf16.msra.mxu0 0
    %2426 = vmatpush.bf16.msra.mxu0 0
    %2427 = vmatpush.bf16.msra.mxu0 0
    %2428 = vmatpush.bf16.msra.mxu0 0
    %2429 = vmatpush.bf16.msra.mxu0 0
    %2430 = vmatpush.bf16.msra.mxu0 0
    %2431 = vmatpush.bf16.msra.mxu0 %v1921
    %2432 = vmatpush.bf16.msra.mxu0 %v1919
    %2433 = vmatmul.bf16.gmra.mxu0 %v2423
    %v2434 = vpop.f32.mrf.mxu0
    %v2435 = vadd.f32 0.0, %v2434
    %v2436 = vpop.f32.mrf.mxu0
    %2437 = vdwg.mxu0
    %2439 = vrot.lane.b32.xlu0 %v2435, 64
    %v2440 = vpop.permute.xlu0 %2439
    %v2442 = vadd.f32 %v1672, %v2440
    %v2443 = vadd.f32 %v2442, %v2385
    %v2444 = vtanh.pop %v2443
    %v2445 = vsub.f32 1.0, %v2412
    %v2446 = vmul.f32 %v2445, %v2217
    %2448 = vrot.lane.b32.xlu0 %v2444, 64
    %v2449 = vpop.permute.xlu0 %2448
    %v2451 = vmul.f32 %v2412, %v2449
    %v2452 = vadd.f32 %v2446, %v2451
    %2454 = vset.pattern.permute.xlu0 0
    %2455 = vperm.xlu0 %2454, %v60
    %v2456 = vpop.permute.xlu0 %2455
    %v2458 = vmul.f32 %v2456, %v2452
    %v2459 = vsub.f32 1.0, %v60
    %2461 = vset.pattern.permute.xlu0 0
    %2462 = vperm.xlu0 %2461, %v2459
    %v2463 = vpop.permute.xlu0 %2462
    %v2465 = vmul.f32 %v2463, %v2217
    %v2466 = vadd.f32 %v2458, %v2465
    %2467 = vst.msk [vmem:[#allocation3 + $0x10] sm:$0xff] %vm237, %v2466
    %2469 = vrot.lane.b32.xlu0 %v2385, 32
    %v2470 = vpop.permute.xlu0 %2469
    %2472 = vst.msk [vmem:[#allocation4 + $0x10] sm:$0xff] %vm237, %v2470
    %v2473 = vpack.c.bf16 %v2466, %v2466
    %v2475 = vsel %vm237, %v2473, 0
    %2477 = vmatpush.bf16.msra.mxu0 0
    %2478 = vmatpush.bf16.msra.mxu0 0
    %2479 = vmatpush.bf16.msra.mxu0 0
    %2480 = vmatpush.bf16.msra.mxu0 0
    %2481 = vmatpush.bf16.msra.mxu0 0
    %2482 = vmatpush.bf16.msra.mxu0 0
    %2483 = vmatpush.bf16.msra.mxu0 %v1690
    %2484 = vmatpush.bf16.msra.mxu0 %v1689
    %2485 = vmatmul.bf16.gmra.mxu0 %v2475
    %v2486 = vpop.f32.mrf.mxu0
    %v2487 = vadd.f32 0.0, %v2486
    %v2488 = vpop.f32.mrf.mxu0
    %2489 = vdwg.mxu0
    %v2490 = vadd.f32 %v2487, %v1558
    %v2491 = vadd.f32 %v2487, %v1560
    %v2492 = vadd.f32 %v2487, %v1563
    %v2493 = vadd.f32 %v2487, %v1565
    %v2494 = vadd.f32 %v2487, %v1568
    %v2495 = vadd.f32 %v2487, %v1570
    %v2496 = vtanh.pop %v2490
    %v2497 = vtanh.pop %v2491
    %v2498 = vtanh.pop %v2492
    %v2499 = vtanh.pop %v2493
    %v2500 = vtanh.pop %v2494
    %v2501 = vtanh.pop %v2495
    %v2502 = vmul.f32 %v2496, %v1722
    %v2503 = vmul.f32 %v2497, %v1722
    %v2504 = vmul.f32 %v2498, %v1722
    %v2505 = vmul.f32 %v2499, %v1722
    %v2506 = vmul.f32 %v2500, %v1722
    %v2507 = vmul.f32 %v2501, %v1722
    %v2508 = vsel %vm237, %v2502, 0.0
    %2509 = vadd.xlane.f32.xlu0 %v2508
    %v2510 = vpop.xlane.xlu0 %2509
    %v2511 = vsel %vm237, %v2503, 0.0
    %2512 = vadd.xlane.f32.xlu0 %v2511
    %v2513 = vpop.xlane.xlu0 %2512
    %v2514 = vsel %vm237, %v2504, 0.0
    %2515 = vadd.xlane.f32.xlu0 %v2514
    %v2516 = vpop.xlane.xlu0 %2515
    %v2517 = vsel %vm237, %v2505, 0.0
    %2518 = vadd.xlane.f32.xlu0 %v2517
    %v2519 = vpop.xlane.xlu0 %2518
    %v2520 = vsel %vm237, %v2506, 0.0
    %2521 = vadd.xlane.f32.xlu0 %v2520
    %v2522 = vpop.xlane.xlu0 %2521
    %v2523 = vsel %vm237, %v2507, 0.0
    %2524 = vadd.xlane.f32.xlu0 %v2523
    %v2525 = vpop.xlane.xlu0 %2524
    %v2526 = vmax.f32 %v2510, %v2522
    %v2527 = vmax.f32 %v2513, %v2525
    %v2528 = vmax.f32 %v2526, %v2527
    %v2529 = vmax.f32 %v2516, %v2519
    %v2530 = vmax.f32 %v2528, %v2529
    %v2531 = vsub.f32 %v2510, %v2530
    %v2532 = vsub.f32 %v2513, %v2530
    %v2533 = vsub.f32 %v2516, %v2530
    %v2534 = vsub.f32 %v2519, %v2530
    %v2535 = vsub.f32 %v2522, %v2530
    %v2536 = vsub.f32 %v2525, %v2530
    %v2537 = vmul.f32 %v2531, 1.442695
    %v2538 = vpow.pop %v2537
    %v2539 = vmul.f32 %v2532, 1.442695
    %v2540 = vpow.pop %v2539
    %v2541 = vmul.f32 %v2533, 1.442695
    %v2542 = vpow.pop %v2541
    %v2543 = vmul.f32 %v2534, 1.442695
    %v2544 = vpow.pop %v2543
    %v2545 = vmul.f32 %v2535, 1.442695
    %v2546 = vpow.pop %v2545
    %v2547 = vmul.f32 %v2536, 1.442695
    %v2548 = vpow.pop %v2547
    %v2549 = vmul.f32 %v2538, %v52
    %v2550 = vmul.f32 %v2540, %v53
    %v2551 = vmul.f32 %v2542, %v54
    %v2552 = vmul.f32 %v2544, %v55
    %v2553 = vmul.f32 %v2546, %v56
    %v2554 = vmul.f32 %v2548, %v57
    %v2555 = vsel %vm1777, %v2549, 0.0
    %v2556 = vsel %vm1777, %v2550, 0.0
    %v2557 = vadd.f32 %v2555, %v2556
    %v2558 = vsel %vm1777, %v2551, 0.0
    %v2559 = vadd.f32 %v2557, %v2558
    %v2560 = vsel %vm1777, %v2552, 0.0
    %v2561 = vadd.f32 %v2559, %v2560
    %v2562 = vsel %vm1777, %v2553, 0.0
    %v2563 = vadd.f32 %v2561, %v2562
    %v2564 = vsel %vm1777, %v2554, 0.0
    %v2565 = vadd.f32 %v2563, %v2564
    %v2566 = vrcp.pop %v2565
    %v2567 = vmul.f32 %v2549, %v2566
    %v2568 = vmul.f32 %v2550, %v2566
    %v2569 = vmul.f32 %v2551, %v2566
    %v2570 = vmul.f32 %v2552, %v2566
    %v2571 = vmul.f32 %v2553, %v2566
    %v2572 = vmul.f32 %v2554, %v2566
    %2574 = vset.pattern.permute.xlu0 0
    %2575 = vperm.xlu0 %2574, %v2567
    %v2576 = vpop.permute.xlu0 %2575
    %2579 = vset.pattern.permute.xlu0 0
    %2580 = vperm.xlu0 %2579, %v2568
    %v2581 = vpop.permute.xlu0 %2580
    %2584 = vset.pattern.permute.xlu0 0
    %2585 = vperm.xlu0 %2584, %v2569
    %v2586 = vpop.permute.xlu0 %2585
    %2589 = vset.pattern.permute.xlu0 0
    %2590 = vperm.xlu0 %2589, %v2570
    %v2591 = vpop.permute.xlu0 %2590
    %2594 = vset.pattern.permute.xlu0 0
    %2595 = vperm.xlu0 %2594, %v2571
    %v2596 = vpop.permute.xlu0 %2595
    %2599 = vset.pattern.permute.xlu0 0
    %2600 = vperm.xlu0 %2599, %v2572
    %v2601 = vpop.permute.xlu0 %2600
    %v2603 = vmul.f32 %v2576, %v1441
    %v2604 = vmul.f32 %v2581, %v1442
    %v2605 = vmul.f32 %v2586, %v1443
    %v2606 = vmul.f32 %v2591, %v1444
    %v2607 = vmul.f32 %v2596, %v1445
    %v2608 = vmul.f32 %v2601, %v1446
    %v2609 = vsel %vm1538, %v2603, 0.0
    %v2610 = vsel %vm1538, %v2604, 0.0
    %v2611 = vadd.f32 %v2609, %v2610
    %v2612 = vsel %vm1538, %v2605, 0.0
    %v2613 = vadd.f32 %v2611, %v2612
    %v2614 = vsel %vm1538, %v2606, 0.0
    %v2615 = vadd.f32 %v2613, %v2614
    %v2616 = vsel %vm1538, %v2607, 0.0
    %v2617 = vadd.f32 %v2615, %v2616
    %v2618 = vsel %vm1538, %v2608, 0.0
    %v2619 = vadd.f32 %v2617, %v2618
    %v2620 = vpack.c.bf16 %v2619, %v2619
    %v2622 = vsel %vm1538, %v2620, 0
    %2624 = vmatpush.bf16.msra.mxu0 0
    %2625 = vmatpush.bf16.msra.mxu0 0
    %2626 = vmatpush.bf16.msra.mxu0 0
    %2627 = vmatpush.bf16.msra.mxu0 0
    %2628 = vmatpush.bf16.msra.mxu0 %v1863
    %2629 = vmatpush.bf16.msra.mxu0 %v1862
    %2630 = vmatpush.bf16.msra.mxu0 %v1861
    %2631 = vmatpush.bf16.msra.mxu0 %v1860
    %2632 = vmatmul.bf16.gmra.mxu0 %v2622
    %v2633 = vpop.f32.mrf.mxu0
    %v2634 = vadd.f32 0.0, %v2633
    %v2635 = vpop.f32.mrf.mxu0
    %2636 = vdwg.mxu0
    %2638 = vrot.lane.b32.xlu0 %v2487, 96
    %v2639 = vpop.permute.xlu0 %2638
    %v2641 = vadd.f32 %v1674, %v2639
    %v2642 = vadd.f32 %v2641, %v2634
    %v2643 = vxor.u32 %v2642, 2147483648
    %v2644 = vmul.f32 %v2643, 1.442695
    %v2645 = vpow.pop %v2644
    %v2646 = vadd.f32 %v2645, 1.0
    %v2647 = vrcp.pop %v2646
    %v2648 = vmul.f32 %v2646, %v2647
    %v2649 = vsub.f32 1.0, %v2648
    %v2650 = vmul.f32 %v2647, %v2649
    %v2651 = vadd.f32 %v2647, %v2650
    %vm2652 = vweird.f32 %v2646
    %vm2653 = vweird.f32 %v2647
    %vm2654 = vmor %vm2652, %vm2653
    %v2655 = vsel %vm2654, %v2647, %v2651
    %v2656 = vand.u32 2147483647, %v2646
    %vm2657 = vcmp.eq.f32.partialorder %v2656, 8.507059e+37
    %v2658 = vand.u32 %v2646, 2147483648
    %v2659 = vor.u32 1.1754944e-38, %v2658
    %v2660 = vsel %vm2657, %v2659, %v2655
    %v2661 = vmul.f32 1.0, %v2660
    %2663 = vrot.lane.b32.xlu0 %v2466, 32
    %v2664 = vpop.permute.xlu0 %2663
    %v2666 = vmul.f32 %v2661, %v2664
    %v2667 = vpack.c.bf16 %v2666, %v2666
    %2669 = vrot.lane.b32.xlu0 %v2667, 96
    %v2670 = vpop.permute.xlu0 %2669
    %v2672 = vsel %vm237, %v2670, 0
    %2674 = vmatpush.bf16.msra.mxu0 0
    %2675 = vmatpush.bf16.msra.mxu0 0
    %2676 = vmatpush.bf16.msra.mxu0 0
    %2677 = vmatpush.bf16.msra.mxu0 0
    %2678 = vmatpush.bf16.msra.mxu0 0
    %2679 = vmatpush.bf16.msra.mxu0 0
    %2680 = vmatpush.bf16.msra.mxu0 %v1921
    %2681 = vmatpush.bf16.msra.mxu0 %v1919
    %2682 = vmatmul.bf16.gmra.mxu0 %v2672
    %v2683 = vpop.f32.mrf.mxu0
    %v2684 = vadd.f32 0.0, %v2683
    %v2685 = vpop.f32.mrf.mxu0
    %2686 = vdwg.mxu0
    %2688 = vrot.lane.b32.xlu0 %v2684, 64
    %v2689 = vpop.permute.xlu0 %2688
    %v2691 = vadd.f32 %v1674, %v2689
    %v2692 = vadd.f32 %v2691, %v2634
    %v2693 = vtanh.pop %v2692
    %v2694 = vsub.f32 1.0, %v2661
    %v2695 = vmul.f32 %v2694, %v2466
    %2697 = vrot.lane.b32.xlu0 %v2693, 64
    %v2698 = vpop.permute.xlu0 %2697
    %v2700 = vmul.f32 %v2661, %v2698
    %v2701 = vadd.f32 %v2695, %v2700
    %2703 = vset.pattern.permute.xlu0 0
    %2704 = vperm.xlu0 %2703, %v61
    %v2705 = vpop.permute.xlu0 %2704
    %v2707 = vmul.f32 %v2705, %v2701
    %v2708 = vsub.f32 1.0, %v61
    %2710 = vset.pattern.permute.xlu0 0
    %2711 = vperm.xlu0 %2710, %v2708
    %v2712 = vpop.permute.xlu0 %2711
    %v2714 = vmul.f32 %v2712, %v2466
    %v2715 = vadd.f32 %v2707, %v2714
    %2716 = vst.msk [vmem:[#allocation3 + $0x18] sm:$0xff] %vm237, %v2715
    %2718 = vrot.lane.b32.xlu0 %v2634, 32
    %v2719 = vpop.permute.xlu0 %2718
    %2721 = vst.msk [vmem:[#allocation4 + $0x18] sm:$0xff] %vm237, %v2719
    %v2722 = vpack.c.bf16 %v2715, %v2715
    %v2724 = vsel %vm237, %v2722, 0
    %2726 = vmatpush.bf16.msra.mxu0 0
    %2727 = vmatpush.bf16.msra.mxu0 0
    %2728 = vmatpush.bf16.msra.mxu0 0
    %2729 = vmatpush.bf16.msra.mxu0 0
    %2730 = vmatpush.bf16.msra.mxu0 0
    %2731 = vmatpush.bf16.msra.mxu0 0
    %2732 = vmatpush.bf16.msra.mxu0 %v1690
    %2733 = vmatpush.bf16.msra.mxu0 %v1689
    %2734 = vmatmul.bf16.gmra.mxu0 %v2724
    %v2735 = vpop.f32.mrf.mxu0
    %v2736 = vadd.f32 0.0, %v2735
    %v2737 = vpop.f32.mrf.mxu0
    %2738 = vdwg.mxu0
    %v2739 = vadd.f32 %v2736, %v1558
    %v2740 = vadd.f32 %v2736, %v1560
    %v2741 = vadd.f32 %v2736, %v1563
    %v2742 = vadd.f32 %v2736, %v1565
    %v2743 = vadd.f32 %v2736, %v1568
    %v2744 = vadd.f32 %v2736, %v1570
    %v2745 = vtanh.pop %v2739
    %v2746 = vtanh.pop %v2740
    %v2747 = vtanh.pop %v2741
    %v2748 = vtanh.pop %v2742
    %v2749 = vtanh.pop %v2743
    %v2750 = vtanh.pop %v2744
    %v2751 = vmul.f32 %v2745, %v1722
    %v2752 = vmul.f32 %v2746, %v1722
    %v2753 = vmul.f32 %v2747, %v1722
    %v2754 = vmul.f32 %v2748, %v1722
    %v2755 = vmul.f32 %v2749, %v1722
    %v2756 = vmul.f32 %v2750, %v1722
    %v2757 = vsel %vm237, %v2751, 0.0
    %2758 = vadd.xlane.f32.xlu0 %v2757
    %v2759 = vpop.xlane.xlu0 %2758
    %v2760 = vsel %vm237, %v2752, 0.0
    %2761 = vadd.xlane.f32.xlu0 %v2760
    %v2762 = vpop.xlane.xlu0 %2761
    %v2763 = vsel %vm237, %v2753, 0.0
    %2764 = vadd.xlane.f32.xlu0 %v2763
    %v2765 = vpop.xlane.xlu0 %2764
    %v2766 = vsel %vm237, %v2754, 0.0
    %2767 = vadd.xlane.f32.xlu0 %v2766
    %v2768 = vpop.xlane.xlu0 %2767
    %v2769 = vsel %vm237, %v2755, 0.0
    %2770 = vadd.xlane.f32.xlu0 %v2769
    %v2771 = vpop.xlane.xlu0 %2770
    %v2772 = vsel %vm237, %v2756, 0.0
    %2773 = vadd.xlane.f32.xlu0 %v2772
    %v2774 = vpop.xlane.xlu0 %2773
    %v2775 = vmax.f32 %v2759, %v2771
    %v2776 = vmax.f32 %v2762, %v2774
    %v2777 = vmax.f32 %v2775, %v2776
    %v2778 = vmax.f32 %v2765, %v2768
    %v2779 = vmax.f32 %v2777, %v2778
    %v2780 = vsub.f32 %v2759, %v2779
    %v2781 = vsub.f32 %v2762, %v2779
    %v2782 = vsub.f32 %v2765, %v2779
    %v2783 = vsub.f32 %v2768, %v2779
    %v2784 = vsub.f32 %v2771, %v2779
    %v2785 = vsub.f32 %v2774, %v2779
    %v2786 = vmul.f32 %v2780, 1.442695
    %v2787 = vpow.pop %v2786
    %v2788 = vmul.f32 %v2781, 1.442695
    %v2789 = vpow.pop %v2788
    %v2790 = vmul.f32 %v2782, 1.442695
    %v2791 = vpow.pop %v2790
    %v2792 = vmul.f32 %v2783, 1.442695
    %v2793 = vpow.pop %v2792
    %v2794 = vmul.f32 %v2784, 1.442695
    %v2795 = vpow.pop %v2794
    %v2796 = vmul.f32 %v2785, 1.442695
    %v2797 = vpow.pop %v2796
    %v2798 = vmul.f32 %v2787, %v52
    %v2799 = vmul.f32 %v2789, %v53
    %v2800 = vmul.f32 %v2791, %v54
    %v2801 = vmul.f32 %v2793, %v55
    %v2802 = vmul.f32 %v2795, %v56
    %v2803 = vmul.f32 %v2797, %v57
    %v2804 = vsel %vm1777, %v2798, 0.0
    %v2805 = vsel %vm1777, %v2799, 0.0
    %v2806 = vadd.f32 %v2804, %v2805
    %v2807 = vsel %vm1777, %v2800, 0.0
    %v2808 = vadd.f32 %v2806, %v2807
    %v2809 = vsel %vm1777, %v2801, 0.0
    %v2810 = vadd.f32 %v2808, %v2809
    %v2811 = vsel %vm1777, %v2802, 0.0
    %v2812 = vadd.f32 %v2810, %v2811
    %v2813 = vsel %vm1777, %v2803, 0.0
    %v2814 = vadd.f32 %v2812, %v2813
    %v2815 = vrcp.pop %v2814
    %v2816 = vmul.f32 %v2798, %v2815
    %v2817 = vmul.f32 %v2799, %v2815
    %v2818 = vmul.f32 %v2800, %v2815
    %v2819 = vmul.f32 %v2801, %v2815
    %v2820 = vmul.f32 %v2802, %v2815
    %v2821 = vmul.f32 %v2803, %v2815
    %2823 = vset.pattern.permute.xlu0 0
    %2824 = vperm.xlu0 %2823, %v2816
    %v2825 = vpop.permute.xlu0 %2824
    %2828 = vset.pattern.permute.xlu0 0
    %2829 = vperm.xlu0 %2828, %v2817
    %v2830 = vpop.permute.xlu0 %2829
    %2833 = vset.pattern.permute.xlu0 0
    %2834 = vperm.xlu0 %2833, %v2818
    %v2835 = vpop.permute.xlu0 %2834
    %2838 = vset.pattern.permute.xlu0 0
    %2839 = vperm.xlu0 %2838, %v2819
    %v2840 = vpop.permute.xlu0 %2839
    %2843 = vset.pattern.permute.xlu0 0
    %2844 = vperm.xlu0 %2843, %v2820
    %v2845 = vpop.permute.xlu0 %2844
    %2848 = vset.pattern.permute.xlu0 0
    %2849 = vperm.xlu0 %2848, %v2821
    %v2850 = vpop.permute.xlu0 %2849
    %v2852 = vmul.f32 %v2825, %v1441
    %v2853 = vmul.f32 %v2830, %v1442
    %v2854 = vmul.f32 %v2835, %v1443
    %v2855 = vmul.f32 %v2840, %v1444
    %v2856 = vmul.f32 %v2845, %v1445
    %v2857 = vmul.f32 %v2850, %v1446
    %v2858 = vsel %vm1538, %v2852, 0.0
    %v2859 = vsel %vm1538, %v2853, 0.0
    %v2860 = vadd.f32 %v2858, %v2859
    %v2861 = vsel %vm1538, %v2854, 0.0
    %v2862 = vadd.f32 %v2860, %v2861
    %v2863 = vsel %vm1538, %v2855, 0.0
    %v2864 = vadd.f32 %v2862, %v2863
    %v2865 = vsel %vm1538, %v2856, 0.0
    %v2866 = vadd.f32 %v2864, %v2865
    %v2867 = vsel %vm1538, %v2857, 0.0
    %v2868 = vadd.f32 %v2866, %v2867
    %v2869 = vpack.c.bf16 %v2868, %v2868
    %v2871 = vsel %vm1538, %v2869, 0
    %2873 = vmatpush.bf16.msra.mxu0 0
    %2874 = vmatpush.bf16.msra.mxu0 0
    %2875 = vmatpush.bf16.msra.mxu0 0
    %2876 = vmatpush.bf16.msra.mxu0 0
    %2877 = vmatpush.bf16.msra.mxu0 %v1863
    %2878 = vmatpush.bf16.msra.mxu0 %v1862
    %2879 = vmatpush.bf16.msra.mxu0 %v1861
    %2880 = vmatpush.bf16.msra.mxu0 %v1860
    %2881 = vmatmul.bf16.gmra.mxu0 %v2871
    %v2882 = vpop.f32.mrf.mxu0
    %v2883 = vadd.f32 0.0, %v2882
    %v2884 = vpop.f32.mrf.mxu0
    %2885 = vdwg.mxu0
    %2887 = vrot.lane.b32.xlu0 %v2736, 96
    %v2888 = vpop.permute.xlu0 %2887
    %v2890 = vadd.f32 %v1677, %v2888
    %v2891 = vadd.f32 %v2890, %v2883
    %v2892 = vxor.u32 %v2891, 2147483648
    %v2893 = vmul.f32 %v2892, 1.442695
    %v2894 = vpow.pop %v2893
    %v2895 = vadd.f32 %v2894, 1.0
    %v2896 = vrcp.pop %v2895
    %v2897 = vmul.f32 %v2895, %v2896
    %v2898 = vsub.f32 1.0, %v2897
    %v2899 = vmul.f32 %v2896, %v2898
    %v2900 = vadd.f32 %v2896, %v2899
    %vm2901 = vweird.f32 %v2895
    %vm2902 = vweird.f32 %v2896
    %vm2903 = vmor %vm2901, %vm2902
    %v2904 = vsel %vm2903, %v2896, %v2900
    %v2905 = vand.u32 2147483647, %v2895
    %vm2906 = vcmp.eq.f32.partialorder %v2905, 8.507059e+37
    %v2907 = vand.u32 %v2895, 2147483648
    %v2908 = vor.u32 1.1754944e-38, %v2907
    %v2909 = vsel %vm2906, %v2908, %v2904
    %v2910 = vmul.f32 1.0, %v2909
    %2912 = vrot.lane.b32.xlu0 %v2715, 32
    %v2913 = vpop.permute.xlu0 %2912
    %v2915 = vmul.f32 %v2910, %v2913
    %v2916 = vpack.c.bf16 %v2915, %v2915
    %2918 = vrot.lane.b32.xlu0 %v2916, 96
    %v2919 = vpop.permute.xlu0 %2918
    %v2921 = vsel %vm237, %v2919, 0
    %2923 = vmatpush.bf16.msra.mxu0 0
    %2924 = vmatpush.bf16.msra.mxu0 0
    %2925 = vmatpush.bf16.msra.mxu0 0
    %2926 = vmatpush.bf16.msra.mxu0 0
    %2927 = vmatpush.bf16.msra.mxu0 0
    %2928 = vmatpush.bf16.msra.mxu0 0
    %2929 = vmatpush.bf16.msra.mxu0 %v1921
    %2930 = vmatpush.bf16.msra.mxu0 %v1919
    %2931 = vmatmul.bf16.gmra.mxu0 %v2921
    %v2932 = vpop.f32.mrf.mxu0
    %v2933 = vadd.f32 0.0, %v2932
    %v2934 = vpop.f32.mrf.mxu0
    %2935 = vdwg.mxu0
    %2937 = vrot.lane.b32.xlu0 %v2933, 64
    %v2938 = vpop.permute.xlu0 %2937
    %v2940 = vadd.f32 %v1677, %v2938
    %v2941 = vadd.f32 %v2940, %v2883
    %v2942 = vtanh.pop %v2941
    %v2943 = vsub.f32 1.0, %v2910
    %v2944 = vmul.f32 %v2943, %v2715
    %2946 = vrot.lane.b32.xlu0 %v2942, 64
    %v2947 = vpop.permute.xlu0 %2946
    %v2949 = vmul.f32 %v2910, %v2947
    %v2950 = vadd.f32 %v2944, %v2949
    %2952 = vset.pattern.permute.xlu0 0
    %2953 = vperm.xlu0 %2952, %v62
    %v2954 = vpop.permute.xlu0 %2953
    %v2956 = vmul.f32 %v2954, %v2950
    %v2957 = vsub.f32 1.0, %v62
    %2959 = vset.pattern.permute.xlu0 0
    %2960 = vperm.xlu0 %2959, %v2957
    %v2961 = vpop.permute.xlu0 %2960
    %v2963 = vmul.f32 %v2961, %v2715
    %v2964 = vadd.f32 %v2956, %v2963
    %2965 = vst.msk [vmem:[#allocation3 + $0x20] sm:$0xff] %vm237, %v2964
    %2967 = vrot.lane.b32.xlu0 %v2883, 32
    %v2968 = vpop.permute.xlu0 %2967
    %2970 = vst.msk [vmem:[#allocation4 + $0x20] sm:$0xff] %vm237, %v2968
    %v2971 = vld [vmem:[#allocation3] sm:$0xff]
    %v2972 = vld [vmem:[#allocation3 + $0x8] sm:$0xff]
    %v2973 = vld [vmem:[#allocation3 + $0x10] sm:$0xff]
    %v2974 = vld [vmem:[#allocation3 + $0x18] sm:$0xff]
    %v2975 = vld [vmem:[#allocation3 + $0x20] sm:$0xff]
    %v2976 = vpack.c.bf16 %v2972, %v2971
    %v2977 = vpack.c.bf16 %v2974, %v2973
    %v2978 = vpack.c.bf16 %v2975, %v2975
    %v2979 = vunpack.c.h.b16 %v1448
    %v2980 = vunpack.c.h.b16 %v1449
    %v2981 = vunpack.c.h.b16 %v1450
    %v2982 = vunpack.c.h.b16 %v1451
    %v2983 = vpack.c.b16 %v2980, %v2979
    %v2984 = vpack.c.b16 %v2982, %v2981
    %2992 = vrot.lane.b32.xlu0 %v1667, 32
    %v2993 = vpop.permute.xlu0 %2992
    %2994 = vrot.lane.b32.xlu0 %v1669, 32
    %v2995 = vpop.permute.xlu0 %2994
    %2996 = vrot.lane.b32.xlu0 %v1672, 32
    %v2997 = vpop.permute.xlu0 %2996
    %2998 = vrot.lane.b32.xlu0 %v1674, 32
    %v2999 = vpop.permute.xlu0 %2998
    %3000 = vrot.lane.b32.xlu0 %v1677, 32
    %v3001 = vpop.permute.xlu0 %3000
    %v3008 = vsel %vm237, %v2976, 0
    %v3011 = vsel %vm237, %v2977, 0
    %v3014 = vsel %vm237, %v2978, 0
    %3016 = vmatpush.bf16.msra.mxu0 0
    %3017 = vmatpush.bf16.msra.mxu0 0
    %3018 = vmatpush.bf16.msra.mxu0 0
    %3019 = vmatpush.bf16.msra.mxu0 0
    %3020 = vmatpush.bf16.msra.mxu0 0
    %3021 = vmatpush.bf16.msra.mxu0 0
    %3022 = vmatpush.bf16.msra.mxu0 %v2984
    %3023 = vmatpush.bf16.msra.mxu0 %v2983
    %3024 = vmatmul.bf16.gmra.mxu0 %v3008
    %v3025 = vpop.f32.mrf.mxu0
    %v3026 = vadd.f32 %v2993, %v3025
    %v3027 = vpop.f32.mrf.mxu0
    %v3028 = vadd.f32 %v2995, %v3027
    %3029 = vmatmul.bf16.gmra.mxu0 %v3011
    %v3030 = vpop.f32.mrf.mxu0
    %v3031 = vadd.f32 %v2997, %v3030
    %v3032 = vpop.f32.mrf.mxu0
    %v3033 = vadd.f32 %v2999, %v3032
    %3034 = vmatmul.bf16.gmra.mxu0 %v3014
    %v3035 = vpop.f32.mrf.mxu0
    %v3036 = vadd.f32 %v3001, %v3035
    %v3037 = vpop.f32.mrf.mxu0
    %3038 = vdwg.mxu0
    %v3039 = vld [vmem:[#allocation4] sm:$0xff]
    %v3040 = vld [vmem:[#allocation4 + $0x8] sm:$0xff]
    %v3041 = vld [vmem:[#allocation4 + $0x10] sm:$0xff]
    %v3042 = vld [vmem:[#allocation4 + $0x18] sm:$0xff]
    %v3043 = vld [vmem:[#allocation4 + $0x20] sm:$0xff]
    %v3044 = vadd.f32 %v3026, %v3039
    %v3045 = vadd.f32 %v3028, %v3040
    %v3046 = vadd.f32 %v3031, %v3041
    %v3047 = vadd.f32 %v3033, %v3042
    %v3048 = vadd.f32 %v3036, %v3043
    %3054 = vrot.lane.b32.xlu0 %v3044, 112
    %v3055 = vpop.permute.xlu0 %3054
    %3056 = vrot.lane.b32.xlu0 %v3045, 112
    %v3057 = vpop.permute.xlu0 %3056
    %3058 = vrot.lane.b32.xlu0 %v3046, 112
    %v3059 = vpop.permute.xlu0 %3058
    %3060 = vrot.lane.b32.xlu0 %v3047, 112
    %v3061 = vpop.permute.xlu0 %3060
    %3062 = vrot.lane.b32.xlu0 %v3048, 112
    %v3063 = vpop.permute.xlu0 %3062
    %v3069 = vmax.f32 %v3044, %v3055
    %v3070 = vmax.f32 %v3045, %v3057
    %v3071 = vmax.f32 %v3046, %v3059
    %v3072 = vmax.f32 %v3047, %v3061
    %v3073 = vmax.f32 %v3048, %v3063
    %v3074 = vld [vmem:[%s4] sm:$0xff]
    %v3075 = vld [vmem:[%s4 + $0x8] sm:$0xff]
    %v3076 = vld [vmem:[%s4 + $0x10] sm:$0xff]
    %v3077 = vld [vmem:[%s4 + $0x18] sm:$0xff]
    %v3078 = vld [vmem:[%s4 + $0x20] sm:$0xff]
    %3080 = vset.pattern.permute.xlu0 0
    %3081 = vperm.xlu0 %3080, %v3074
    %v3082 = vpop.permute.xlu0 %3081
    %3085 = vset.pattern.permute.xlu0 0
    %3086 = vperm.xlu0 %3085, %v3075
    %v3087 = vpop.permute.xlu0 %3086
    %3090 = vset.pattern.permute.xlu0 0
    %3091 = vperm.xlu0 %3090, %v3076
    %v3092 = vpop.permute.xlu0 %3091
    %3095 = vset.pattern.permute.xlu0 0
    %3096 = vperm.xlu0 %3095, %v3077
    %v3097 = vpop.permute.xlu0 %3096
    %3100 = vset.pattern.permute.xlu0 0
    %3101 = vperm.xlu0 %3100, %v3078
    %v3102 = vpop.permute.xlu0 %3101
    %v3104 = vmul.f32 %v3069, %v3082
    %v3105 = vmul.f32 %v3070, %v3087
    %v3106 = vmul.f32 %v3071, %v3092
    %v3107 = vmul.f32 %v3072, %v3097
    %v3108 = vmul.f32 %v3073, %v3102
    %vm3109 = vcmask 130048
    %3110 = vst.msk [vmem:[#allocation5] sm:$0xff] %vm3109, %v3104
    %3111 = vst.msk [vmem:[#allocation5 + $0x8] sm:$0xff] %vm3109, %v3105
    %3112 = vst.msk [vmem:[#allocation5 + $0x10] sm:$0xff] %vm3109, %v3106
    %3113 = vst.msk [vmem:[#allocation5 + $0x18] sm:$0xff] %vm3109, %v3107
    %3114 = vst.msk [vmem:[#allocation5 + $0x20] sm:$0xff] %vm3109, %v3108
    // Predicated region
    $region62: #{nmt_forward.1} parent=1 // pred_check
      _
    $region63: #{nmt_forward.1} parent=1 // pred_check_branch
      %3116 = sbr.rel (0) target = $region65
    $region64: #{nmt_forward.1} parent=1 // pred_region
      %3118 = vsyncadd [#allocation6], 0
      %s3119 = sshll.u32 [#allocation5], 4
      %s3120 = int_to_ptr.vmem [resolvable:$true] %s3119
      %s3121 = sshll.u32 %s15, 4
      %s3122 = int_to_ptr.hbm [resolvable:$true] %s3121
      %3127 = dma.vmem_to_hbm [thread:$0]  %s3120, 640, %s3122, [#allocation6], 128, 128, 8
    $region65: #{nmt_forward.1} parent=1 // pred_fallthru
      _
    // Predicated region
    $region66: #{nmt_forward.1} parent=1 // pred_check
      _
    $region67: #{nmt_forward.1} parent=1 // pred_check_branch
      %3129 = sbr.rel (0) target = $region69
    $region68: #{nmt_forward.1} parent=1 // pred_region
      %3131 = dma.done [#allocation6], 640
    $region69: #{nmt_forward.1} parent=1 // pred_fallthru
      _
    %3132 = vsyncpa [#allocation6], 1

</llo_original>
